<compile_context>
chip_gen: v7x
topology: tpu7x:2x2x1
jax: 0.10.0
libtpu: 0.0.40
codegen_flags: <defaults>
</compile_context>

<pallas_src>
import functools

import jax
import jax.numpy as jnp
from jax.experimental import pallas as pl
from jax.experimental.pallas import tpu as pltpu

# ---- stand-ins for the external `config` module -----------------------------
GROUPS = 2              # len(config.step1_idx)
LANDMARK_NUM = 4        # config.landmark_num
DIMS = [3, 16, 32, 64]
EPS = 1e-5              # nn.BatchNorm2d default eps

# ---- derived static shapes (12x12 input for this PNET head) -----------------
C_IN = GROUPS * DIMS[0]            # 6
C1 = GROUPS * DIMS[1]              # 32
C2 = GROUPS * DIMS[2]              # 64
C3 = GROUPS * DIMS[3]              # 128
H_IN = W_IN = 12
H1 = W1 = H_IN - 3 + 1             # 10 : conv1 (3x3 valid) output
HP1 = WP1 = H1 // 2                # 5  : maxpool 2x2/2 out = conv2 (pad 1) out
HP2 = WP2 = (HP1 - 3) // 2 + 1     # 2  : maxpool 3x3/2 out = conv3 input
OUT_DIM = 2 * LANDMARK_NUM         # 8
K1 = 3 * W_IN * C_IN               # 216: conv1 per-row K (3 H-taps concat)
PW1 = WP1 * C1                     # 160: pooled conv1 row width
PW2 = WP1 * C2                     # 320: conv2 row width


# =============================== Pallas kernel ===============================
def _pnet_fused_kernel(xcat_ref, m1k_ref, sc1_ref, sh1_ref, m2_ref, sc2_ref,
                       sh2_ref, w3_ref, b3_ref, fc1w_ref, fc1b_ref,
                       fc2w_ref, fc2b_ref, o_ref, *, cdt):
    """One grid step = bt samples; batch is the M dim of every matmul."""
    f32 = jnp.float32
    sc1 = sc1_ref[...]
    sh1 = sh1_ref[...]
    sc2 = sc2_ref[...]
    sh2 = sh2_ref[...]

    # ---- m1: conv1 3x3 valid (BN1 folded, groups block-dense) + BN2 + ReLU
    #      + 2x2/2 maxpool.  One [bt,216]@[216,320] matmul per conv1 output
    #      row (3 H-taps pre-concatenated host-side in K, even/odd W parity
    #      packed side by side in N so pool-W is a single elementwise max).
    pooled1 = []
    for hp in range(HP1):                                  # 5 pooled rows
        prow = None
        for h in (2 * hp, 2 * hp + 1):                     # 2 conv rows / pool row
            t = jnp.dot(xcat_ref[h], m1k_ref[...],
                        preferred_element_type=f32)        # [bt, 320]
            t = jnp.maximum(t * sc1 + sh1, 0.0)            # BN2 + ReLU (f32)
            r = jnp.maximum(t[:, :PW1], t[:, PW1:])        # W-pool (parity halves)
            prow = r if prow is None else jnp.maximum(prow, r)   # H-pool
        pooled1.append(prow)                               # [bt, 160]

    # ---- m2: conv2 3x3 pad 1 (groups block-dense, W-padding folded into the
    #      banded weights) + BN3 + ReLU.  Per-tap accumulation at M=bt; the
    #      zero H-pad taps contribute nothing and are simply skipped.
    rows2 = []
    for r in range(HP1):                                   # 5 output rows
        acc = None
        for i in range(3):                                 # tap i reads row r+i-1
            src = r + i - 1
            if 0 <= src < HP1:
                t = jnp.dot(pooled1[src].astype(cdt), m2_ref[i],
                            preferred_element_type=f32)    # [bt, 320]
                acc = t if acc is None else acc + t
        rows2.append(jnp.maximum(acc * sc2 + sh2, 0.0))    # [bt, 320]

    # ---- pool2 (3x3/2) fused with conv3 (2x2 valid) + bias + ReLU.  Each
    #      pooled (hp, wp) chunk is exactly one conv3 tap -> 4 accumulated
    #      [bt,64]@[64,128] matmuls; nothing materialized in scratch.
    acc3 = None
    for hp in range(HP2):                                  # 2
        rmax = jnp.maximum(jnp.maximum(rows2[2 * hp], rows2[2 * hp + 1]),
                           rows2[2 * hp + 2])              # [bt, 320]
        for wp in range(WP2):                              # 2
            c = jnp.maximum(
                jnp.maximum(rmax[:, (2 * wp) * C2:(2 * wp + 1) * C2],
                            rmax[:, (2 * wp + 1) * C2:(2 * wp + 2) * C2]),
                rmax[:, (2 * wp + 2) * C2:(2 * wp + 3) * C2])     # [bt, 64]
            t = jnp.dot(c.astype(cdt), w3_ref[2 * hp + wp],
                        preferred_element_type=f32)
            acc3 = t if acc3 is None else acc3 + t
    h3 = jnp.maximum(acc3 + b3_ref[...], 0.0)              # [bt, 128]

    # ---- pd: Linear -> ReLU -> Linear; one coalesced [bt, 8] store.
    h = jnp.maximum(jnp.dot(h3.astype(cdt), fc1w_ref[...],
                            preferred_element_type=f32) + fc1b_ref[...], 0.0)
    o_ref[...] = jnp.dot(h.astype(cdt), fc2w_ref[...],
                         preferred_element_type=f32) + fc2b_ref[...]


# ============================== Pallas wrapper ===============================
def pnet_pallas(x_nchw, pp, block_b=64):
    B = x_nchw.shape[0]
    cdt = pp['m1k'].dtype           # matmul operand dtype (f32 or bf16)

    # Host-side layout glue (the only XLA work in the forward pass):
    # NCHW -> [B, H, W*C] rows, then concatenate the 3 conv1 H-taps along the
    # lane dim (K=216 per conv1 output row) and put H in the leading dim so the
    # kernel slices rows with cheap leading-dim indexing.
    x = jnp.transpose(x_nchw, (0, 2, 3, 1)).astype(jnp.float32)       # [B,12,12,6]
    rows = x.reshape(B, H_IN, W_IN * C_IN)                            # [B,12,72]
    xcat = jnp.concatenate([rows[:, i:i + H1, :] for i in range(3)],
                           axis=-1)                                   # [B,10,216]
    xcat = jnp.transpose(xcat, (1, 0, 2)).astype(cdt)                 # [10,B,216]

    # Batch tile: sublane-aligned, and >=2 grid steps when the batch allows
    # (v7x has two TensorCores; "parallel" shards grid steps across them).
    half8 = (((B + 1) // 2) + 7) // 8 * 8
    bt = max(8, min(block_b, half8))
    b_pad = ((B + bt - 1) // bt) * bt
    if b_pad != B:
        xcat = jnp.pad(xcat, ((0, 0), (0, b_pad - B), (0, 0)))
    grid = (b_pad // bt,)

    weight_args = (pp['m1k'], pp['sc1'], pp['sh1'], pp['m2'], pp['sc2'],
                   pp['sh2'], pp['w3'], pp['b3'], pp['fc1_w'], pp['fc1_b'],
                   pp['fc2_w'], pp['fc2_b'])

    def const_spec(shape):
        return pl.BlockSpec(shape, lambda b, _s=len(shape): (0,) * _s)

    # Advisory cost estimate (per-sample MACs x 2, weights + activations bytes).
    macs = (H1 * K1 * (2 * PW1)                      # conv1: 10 x 216 x 320
            + 13 * PW1 * PW2                         # conv2: 13 taps x 160 x 320
            + 4 * C2 * C3                            # conv3: 4 taps x 64 x 128
            + C3 * 256 + 256 * OUT_DIM)              # fc1 + fc2
    w_bytes = sum(int(a.size) * a.dtype.itemsize for a in weight_args)
    cost = pl.CostEstimate(
        flops=int(2 * b_pad * macs),
        transcendentals=0,
        bytes_accessed=int(w_bytes + xcat.size * xcat.dtype.itemsize
                           + b_pad * OUT_DIM * 4))

    out = pl.pallas_call(
        functools.partial(_pnet_fused_kernel, cdt=cdt),
        out_shape=jax.ShapeDtypeStruct((b_pad, OUT_DIM), jnp.float32),
        grid=grid,
        in_specs=[pl.BlockSpec((H1, bt, K1), lambda b: (0, b, 0))] +
                 [const_spec(a.shape) for a in weight_args],
        out_specs=pl.BlockSpec((bt, OUT_DIM), lambda b: (b, 0)),
        compiler_params=pltpu.CompilerParams(
            dimension_semantics=("parallel",)),      # 2 TCs on v7x; no-op v5e/v6e
        cost_estimate=cost,
    )(xcat, *weight_args)
    return out[:B]


# ===================== host-side weight packing (runs once) ==================
def grouped_to_dense(w_pt, groups):
    """PyTorch grouped conv weight [Cout, Cg, KH, KW] -> block-dense
    [KH, KW, Cin, Cout] with zeros across groups (groups fused into one GEMM)."""
    cout, cg, kh, kw = w_pt.shape
    coutg = cout // groups
    cin = cg * groups
    w = jnp.zeros((kh, kw, cin, cout), jnp.float32)
    for g in range(groups):
        wg = jnp.transpose(w_pt[g * coutg:(g + 1) * coutg], (2, 3, 1, 0))
        w = w.at[:, :, g * cg:(g + 1) * cg, g * coutg:(g + 1) * coutg].set(wg)
    return w


def banded_rows(w_dense, w_in, pad):
    """Dense [KH,KW,Cin,Cout] -> list over KH of banded (Toeplitz-over-W)
    matrices [w_in*Cin, Wo*Cout] so conv == sum_i  x[h+i-pad, :] @ M_i,
    with W-direction zero padding folded into the band structure."""
    kh, kw, cin, cout = w_dense.shape
    wo_n = w_in + 2 * pad - kw + 1
    mats = []
    for i in range(kh):
        m = jnp.zeros((w_in * cin, wo_n * cout), jnp.float32)
        for wo in range(wo_n):
            for j in range(kw):
                w_pos = wo + j - pad
                if 0 <= w_pos < w_in:
                    m = m.at[w_pos * cin:(w_pos + 1) * cin,
                             wo * cout:(wo + 1) * cout].set(w_dense[i, j])
        mats.append(m)
    return mats


def split_w_parity(m, wo_n, cout):
    """Split banded-matmul output columns into even-w / odd-w halves (makes the
    2x2 max-pool W-direction a single elementwise max in the kernel)."""
    cols = m.reshape(m.shape[0], wo_n, cout)
    return (cols[:, 0::2, :].reshape(m.shape[0], -1),
            cols[:, 1::2, :].reshape(m.shape[0], -1))


def prep_pallas_params(p, dtype=jnp.float32):
    """Pack PyTorch-layout params into Pallas matmul weights.

    `dtype` is the matmul operand dtype (jnp.float32 or jnp.bfloat16); BN/bias
    epilogue vectors always stay f32 (accumulation is f32 either way)."""
    g = GROUPS
    # fold input BatchNorm (bn1) exactly into conv1 weights/bias.
    a1 = p['bn1_gamma'] / jnp.sqrt(p['bn1_var'] + EPS)
    o1 = p['bn1_beta'] - p['bn1_mean'] * a1
    w1_dense = grouped_to_dense(p['w1'], g)                     # [3,3,6,32]
    w1_fold = w1_dense * a1[None, None, :, None]
    b1_fold = p['b1'] + jnp.einsum('ijco,c->o', w1_dense, o1)

    # post-conv BN epilogues: y = conv * scale + shift (conv bias folded in).
    s2 = p['bn2_gamma'] / jnp.sqrt(p['bn2_var'] + EPS)
    t2 = p['bn2_beta'] - p['bn2_mean'] * s2
    s3 = p['bn3_gamma'] / jnp.sqrt(p['bn3_var'] + EPS)
    t3 = p['bn3_beta'] - p['bn3_mean'] * s3

    # conv1: 3 H-tap band matrices, parity-split columns packed side by side,
    # then the taps stacked along K -> one [216, 320] weight.
    m1_taps = []
    for m in banded_rows(w1_fold, W_IN, 0):                     # 3 x [72, 320]
        e, o = split_w_parity(m, W1, C1)                        # [72,160] each
        m1_taps.append(jnp.concatenate([e, o], axis=1))         # [72, 320]
    m1k = jnp.concatenate(m1_taps, axis=0)                      # [216, 320]

    m2 = jnp.stack(banded_rows(grouped_to_dense(p['w2'], g), WP1, 1))  # [3,160,320]
    w3_dense = grouped_to_dense(p['w3'], g)                     # [2,2,64,128]
    w3 = jnp.stack([w3_dense[i, j] for i in range(2) for j in range(2)])

    return {
        'm1k': m1k.astype(dtype),                               # [216, 320]
        'sc1': jnp.tile(s2, 2 * WP1).reshape(1, -1),            # [1, 320] f32
        'sh1': jnp.tile(b1_fold * s2 + t2, 2 * WP1).reshape(1, -1),
        'm2': m2.astype(dtype),                                 # [3, 160, 320]
        'sc2': jnp.tile(s3, WP1).reshape(1, -1),                # [1, 320] f32
        'sh2': jnp.tile(p['b2'] * s3 + t3, WP1).reshape(1, -1),
        'w3': w3.astype(dtype),                                 # [4, 64, 128]
        'b3': p['b3'].reshape(1, -1),                           # [1, 128] f32
        'fc1_w': p['fc1_w'].T.astype(dtype),                    # [128, 256]
        'fc1_b': p['fc1_b'].reshape(1, -1),                     # [1, 256] f32
        'fc2_w': p['fc2_w'].T.astype(dtype),                    # [256, 8]
        'fc2_b': p['fc2_b'].reshape(1, -1),                     # [1, 8] f32
    }


# ============================ parameter handling =============================
def init_params(key):
    """Deterministic synthetic parameters in PyTorch layouts."""
    ks = jax.random.split(key, 24)
    g = GROUPS
    in_ch, c1, c2, c3 = g * 3, g * DIMS[1], g * DIMS[2], g * DIMS[3]
    n = lambda k, shp, s=0.1: s * jax.random.normal(k, shp, jnp.float32)
    u = lambda k, shp: jax.random.uniform(k, shp, jnp.float32, 0.5, 1.5)
    return {
        'bn1_gamma': 1.0 + n(ks[0], (in_ch,)), 'bn1_beta': n(ks[1], (in_ch,)),
        'bn1_mean': n(ks[2], (in_ch,)),        'bn1_var': u(ks[3], (in_ch,)),
        'w1': n(ks[4], (c1, 3, 3, 3)),         'b1': n(ks[5], (c1,), 0.05),
        'bn2_gamma': 1.0 + n(ks[6], (c1,)),    'bn2_beta': n(ks[7], (c1,)),
        'bn2_mean': n(ks[8], (c1,)),           'bn2_var': u(ks[9], (c1,)),
        'w2': n(ks[10], (c2, DIMS[1], 3, 3)),  'b2': n(ks[11], (c2,), 0.05),
        'bn3_gamma': 1.0 + n(ks[12], (c2,)),   'bn3_beta': n(ks[13], (c2,)),
        'bn3_mean': n(ks[14], (c2,)),          'bn3_var': u(ks[15], (c2,)),
        'w3': n(ks[16], (c3, DIMS[2], 2, 2)),  'b3': n(ks[17], (c3,), 0.05),
        'fc1_w': n(ks[18], (256, c3)),         'fc1_b': n(ks[19], (256,), 0.05),
        'fc2_w': n(ks[20], (OUT_DIM, 256)),    'fc2_b': n(ks[21], (OUT_DIM,), 0.05),
    }


# ===================== pure-JAX reference (correctness check) ================
def _bn_eval(x, g, b, m, v):
    return (x - m) / jnp.sqrt(v + EPS) * g + b


def _ref_grouped_conv(x, w_pt, b_pt, groups, pad):
    cout, cg, kh, kw = w_pt.shape
    coutg = cout // groups
    outs = []
    for gi in range(groups):
        xg = x[..., gi * cg:(gi + 1) * cg]
        wg = jnp.transpose(w_pt[gi * coutg:(gi + 1) * coutg], (2, 3, 1, 0))
        og = jax.lax.conv_general_dilated(
            xg, wg, (1, 1), [(pad, pad), (pad, pad)],
            dimension_numbers=('NHWC', 'HWIO', 'NHWC'))
        outs.append(og + b_pt[gi * coutg:(gi + 1) * coutg])
    return jnp.concatenate(outs, axis=-1)


def _ref_maxpool(x, k, s):
    return jax.lax.reduce_window(x, -jnp.inf, jax.lax.max,
                                 (1, k, k, 1), (1, s, s, 1), 'VALID')


def pnet_ref(x_nchw, p):
    x = jnp.transpose(x_nchw, (0, 2, 3, 1)).astype(jnp.float32)
    h = _bn_eval(x, p['bn1_gamma'], p['bn1_beta'], p['bn1_mean'], p['bn1_var'])
    h = _ref_grouped_conv(h, p['w1'], p['b1'], GROUPS, 0)
    h = jnp.maximum(_bn_eval(h, p['bn2_gamma'], p['bn2_beta'],
                             p['bn2_mean'], p['bn2_var']), 0.0)
    h = _ref_maxpool(h, 2, 2)
    h = _ref_grouped_conv(h, p['w2'], p['b2'], GROUPS, 1)
    h = jnp.maximum(_bn_eval(h, p['bn3_gamma'], p['bn3_beta'],
                             p['bn3_mean'], p['bn3_var']), 0.0)
    h = _ref_maxpool(h, 3, 2)
    h = jnp.maximum(_ref_grouped_conv(h, p['w3'], p['b3'], GROUPS, 0), 0.0)
    flat = h.reshape(h.shape[0], -1)
    h = jnp.maximum(flat @ p['fc1_w'].T + p['fc1_b'], 0.0)
    return h @ p['fc2_w'].T + p['fc2_b']


# ==================================== main ===================================
if __name__ == "__main__":
    key = jax.random.PRNGKey(0)
    kx, kp = jax.random.split(key)
    B = 16
    # 12x12 input -> conv1: 10 -> pool 5 -> conv2: 5 -> pool 2 -> conv3: 1
    x = jax.random.normal(kx, (B, GROUPS * 3, 12, 12), jnp.float32)
    params = init_params(kp)
    ref = pnet_ref(x, params)

    # f32 matmul-operand path: tight correctness gate vs. the pure-JAX reference.
    pp32 = prep_pallas_params(params, jnp.float32)
    out = jax.block_until_ready(jax.jit(pnet_pallas)(x, pp32))
    assert out.shape == (B, OUT_DIM), out.shape
    rel_err = float(jnp.max(jnp.abs(out - ref)) / (jnp.max(jnp.abs(ref)) + 1e-6))
    assert rel_err < 5e-3, f"f32 mismatch vs reference: rel_err={rel_err}"

    # bf16 matmul-operand path (v6e/v7x native MXU; f32 accumulation/epilogues).
    ppbf = prep_pallas_params(params, jnp.bfloat16)
    outb = jax.block_until_ready(jax.jit(pnet_pallas)(x, ppbf))
    rel_b = float(jnp.max(jnp.abs(outb - ref)) / (jnp.max(jnp.abs(ref)) + 1e-6))
    assert rel_b < 5e-2, f"bf16 mismatch vs reference: rel_err={rel_b}"

    print("KERNEL_OK")
</pallas_src>

<mosaic_0001>
module attributes {stable_mosaic.version = 11 : i64} {
  func.func @_pnet_fused_kernel(%arg0: i32, %arg1: memref<10x8x216xf32, #tpu.memory_space<vmem>>, %arg2: memref<216x320xf32, #tpu.memory_space<vmem>>, %arg3: memref<1x320xf32, #tpu.memory_space<vmem>>, %arg4: memref<1x320xf32, #tpu.memory_space<vmem>>, %arg5: memref<3x160x320xf32, #tpu.memory_space<vmem>>, %arg6: memref<1x320xf32, #tpu.memory_space<vmem>>, %arg7: memref<1x320xf32, #tpu.memory_space<vmem>>, %arg8: memref<4x64x128xf32, #tpu.memory_space<vmem>>, %arg9: memref<1x128xf32, #tpu.memory_space<vmem>>, %arg10: memref<128x256xf32, #tpu.memory_space<vmem>>, %arg11: memref<1x256xf32, #tpu.memory_space<vmem>>, %arg12: memref<256x8xf32, #tpu.memory_space<vmem>>, %arg13: memref<1x8xf32, #tpu.memory_space<vmem>>, %arg14: memref<8x8xf32, #tpu.memory_space<vmem>>) attributes {dimension_semantics = [#tpu.dimension_semantics<parallel>], iteration_bounds = array<i64: 2>, scalar_prefetch = 0 : i64, scratch_operands = 0 : i64, tpu.core_type = #tpu.core_type<tc>, window_params = [{transform_indices = @transform_0, window_bounds = array<i64: 10, 8, 216>}, {pipeline_mode = #tpu.pipeline_mode<synchronous>, transform_indices = @transform_1, window_bounds = array<i64: 216, 320>}, {pipeline_mode = #tpu.pipeline_mode<synchronous>, transform_indices = @transform_2, window_bounds = array<i64: 1, 320>}, {pipeline_mode = #tpu.pipeline_mode<synchronous>, transform_indices = @transform_3, window_bounds = array<i64: 1, 320>}, {pipeline_mode = #tpu.pipeline_mode<synchronous>, transform_indices = @transform_4, window_bounds = array<i64: 3, 160, 320>}, {pipeline_mode = #tpu.pipeline_mode<synchronous>, transform_indices = @transform_5, window_bounds = array<i64: 1, 320>}, {pipeline_mode = #tpu.pipeline_mode<synchronous>, transform_indices = @transform_6, window_bounds = array<i64: 1, 320>}, {pipeline_mode = #tpu.pipeline_mode<synchronous>, transform_indices = @transform_7, window_bounds = array<i64: 4, 64, 128>}, {pipeline_mode = #tpu.pipeline_mode<synchronous>, transform_indices = @transform_8, window_bounds = array<i64: 1, 128>}, {pipeline_mode = #tpu.pipeline_mode<synchronous>, transform_indices = @transform_9, window_bounds = array<i64: 128, 256>}, {pipeline_mode = #tpu.pipeline_mode<synchronous>, transform_indices = @transform_10, window_bounds = array<i64: 1, 256>}, {pipeline_mode = #tpu.pipeline_mode<synchronous>, transform_indices = @transform_11, window_bounds = array<i64: 256, 8>}, {pipeline_mode = #tpu.pipeline_mode<synchronous>, transform_indices = @transform_12, window_bounds = array<i64: 1, 8>}, {transform_indices = @transform_13, window_bounds = array<i64: 8, 8>}]} {
    %c0 = arith.constant 0 : index
    %c0_0 = arith.constant 0 : index
    %0 = vector.load %arg3[%c0, %c0_0] : memref<1x320xf32, #tpu.memory_space<vmem>>, vector<1x320xf32>
    %c0_1 = arith.constant 0 : index
    %c0_2 = arith.constant 0 : index
    %1 = vector.load %arg4[%c0_1, %c0_2] : memref<1x320xf32, #tpu.memory_space<vmem>>, vector<1x320xf32>
    %c0_3 = arith.constant 0 : index
    %c0_4 = arith.constant 0 : index
    %2 = vector.load %arg6[%c0_3, %c0_4] : memref<1x320xf32, #tpu.memory_space<vmem>>, vector<1x320xf32>
    %c0_5 = arith.constant 0 : index
    %c0_6 = arith.constant 0 : index
    %3 = vector.load %arg7[%c0_5, %c0_6] : memref<1x320xf32, #tpu.memory_space<vmem>>, vector<1x320xf32>
    %c0_7 = arith.constant 0 : index
    %c0_8 = arith.constant 0 : index
    %c0_9 = arith.constant 0 : index
    %4 = vector.load %arg1[%c0_7, %c0_8, %c0_9] : memref<10x8x216xf32, #tpu.memory_space<vmem>>, vector<1x8x216xf32>
    %5 = vector.shape_cast %4 : vector<1x8x216xf32> to vector<8x216xf32>
    %c0_10 = arith.constant 0 : index
    %c0_11 = arith.constant 0 : index
    %6 = vector.load %arg2[%c0_10, %c0_11] : memref<216x320xf32, #tpu.memory_space<vmem>>, vector<216x320xf32>
    %cst = arith.constant dense<0.000000e+00> : vector<8x320xf32>
    %7 = tpu.matmul %5, %6, %cst {dimension_numbers = #tpu.dot_dimension_numbers<[1], [0], [0], [1], [0, 0, 1, 1], [], []>} : vector<8x216xf32>, vector<216x320xf32>, vector<8x320xf32> -> vector<8x320xf32>
    %8 = vector.broadcast %0 : vector<1x320xf32> to vector<8x320xf32>
    %9 = arith.mulf %7, %8 : vector<8x320xf32>
    %10 = vector.broadcast %1 : vector<1x320xf32> to vector<8x320xf32>
    %11 = arith.addf %9, %10 : vector<8x320xf32>
    %cst_12 = arith.constant 0.000000e+00 : f32
    %12 = vector.broadcast %cst_12 : f32 to vector<8x320xf32>
    %13 = arith.maximumf %11, %12 : vector<8x320xf32>
    %14 = vector.extract_strided_slice %13 {offsets = [0, 0], sizes = [8, 160], strides = [1, 1]} : vector<8x320xf32> to vector<8x160xf32>
    %15 = vector.extract_strided_slice %13 {offsets = [0, 160], sizes = [8, 160], strides = [1, 1]} : vector<8x320xf32> to vector<8x160xf32>
    %16 = arith.maximumf %14, %15 : vector<8x160xf32>
    %c1 = arith.constant 1 : index
    %c0_13 = arith.constant 0 : index
    %c0_14 = arith.constant 0 : index
    %17 = vector.load %arg1[%c1, %c0_13, %c0_14] : memref<10x8x216xf32, #tpu.memory_space<vmem>>, vector<1x8x216xf32>
    %18 = vector.shape_cast %17 : vector<1x8x216xf32> to vector<8x216xf32>
    %c0_15 = arith.constant 0 : index
    %c0_16 = arith.constant 0 : index
    %19 = vector.load %arg2[%c0_15, %c0_16] : memref<216x320xf32, #tpu.memory_space<vmem>>, vector<216x320xf32>
    %cst_17 = arith.constant dense<0.000000e+00> : vector<8x320xf32>
    %20 = tpu.matmul %18, %19, %cst_17 {dimension_numbers = #tpu.dot_dimension_numbers<[1], [0], [0], [1], [0, 0, 1, 1], [], []>} : vector<8x216xf32>, vector<216x320xf32>, vector<8x320xf32> -> vector<8x320xf32>
    %21 = vector.broadcast %0 : vector<1x320xf32> to vector<8x320xf32>
    %22 = arith.mulf %20, %21 : vector<8x320xf32>
    %23 = vector.broadcast %1 : vector<1x320xf32> to vector<8x320xf32>
    %24 = arith.addf %22, %23 : vector<8x320xf32>
    %cst_18 = arith.constant 0.000000e+00 : f32
    %25 = vector.broadcast %cst_18 : f32 to vector<8x320xf32>
    %26 = arith.maximumf %24, %25 : vector<8x320xf32>
    %27 = vector.extract_strided_slice %26 {offsets = [0, 0], sizes = [8, 160], strides = [1, 1]} : vector<8x320xf32> to vector<8x160xf32>
    %28 = vector.extract_strided_slice %26 {offsets = [0, 160], sizes = [8, 160], strides = [1, 1]} : vector<8x320xf32> to vector<8x160xf32>
    %29 = arith.maximumf %27, %28 : vector<8x160xf32>
    %30 = arith.maximumf %16, %29 : vector<8x160xf32>
    %c2 = arith.constant 2 : index
    %c0_19 = arith.constant 0 : index
    %c0_20 = arith.constant 0 : index
    %31 = vector.load %arg1[%c2, %c0_19, %c0_20] : memref<10x8x216xf32, #tpu.memory_space<vmem>>, vector<1x8x216xf32>
    %32 = vector.shape_cast %31 : vector<1x8x216xf32> to vector<8x216xf32>
    %c0_21 = arith.constant 0 : index
    %c0_22 = arith.constant 0 : index
    %33 = vector.load %arg2[%c0_21, %c0_22] : memref<216x320xf32, #tpu.memory_space<vmem>>, vector<216x320xf32>
    %cst_23 = arith.constant dense<0.000000e+00> : vector<8x320xf32>
    %34 = tpu.matmul %32, %33, %cst_23 {dimension_numbers = #tpu.dot_dimension_numbers<[1], [0], [0], [1], [0, 0, 1, 1], [], []>} : vector<8x216xf32>, vector<216x320xf32>, vector<8x320xf32> -> vector<8x320xf32>
    %35 = vector.broadcast %0 : vector<1x320xf32> to vector<8x320xf32>
    %36 = arith.mulf %34, %35 : vector<8x320xf32>
    %37 = vector.broadcast %1 : vector<1x320xf32> to vector<8x320xf32>
    %38 = arith.addf %36, %37 : vector<8x320xf32>
    %cst_24 = arith.constant 0.000000e+00 : f32
    %39 = vector.broadcast %cst_24 : f32 to vector<8x320xf32>
    %40 = arith.maximumf %38, %39 : vector<8x320xf32>
    %41 = vector.extract_strided_slice %40 {offsets = [0, 0], sizes = [8, 160], strides = [1, 1]} : vector<8x320xf32> to vector<8x160xf32>
    %42 = vector.extract_strided_slice %40 {offsets = [0, 160], sizes = [8, 160], strides = [1, 1]} : vector<8x320xf32> to vector<8x160xf32>
    %43 = arith.maximumf %41, %42 : vector<8x160xf32>
    %c3 = arith.constant 3 : index
    %c0_25 = arith.constant 0 : index
    %c0_26 = arith.constant 0 : index
    %44 = vector.load %arg1[%c3, %c0_25, %c0_26] : memref<10x8x216xf32, #tpu.memory_space<vmem>>, vector<1x8x216xf32>
    %45 = vector.shape_cast %44 : vector<1x8x216xf32> to vector<8x216xf32>
    %c0_27 = arith.constant 0 : index
    %c0_28 = arith.constant 0 : index
    %46 = vector.load %arg2[%c0_27, %c0_28] : memref<216x320xf32, #tpu.memory_space<vmem>>, vector<216x320xf32>
    %cst_29 = arith.constant dense<0.000000e+00> : vector<8x320xf32>
    %47 = tpu.matmul %45, %46, %cst_29 {dimension_numbers = #tpu.dot_dimension_numbers<[1], [0], [0], [1], [0, 0, 1, 1], [], []>} : vector<8x216xf32>, vector<216x320xf32>, vector<8x320xf32> -> vector<8x320xf32>
    %48 = vector.broadcast %0 : vector<1x320xf32> to vector<8x320xf32>
    %49 = arith.mulf %47, %48 : vector<8x320xf32>
    %50 = vector.broadcast %1 : vector<1x320xf32> to vector<8x320xf32>
    %51 = arith.addf %49, %50 : vector<8x320xf32>
    %cst_30 = arith.constant 0.000000e+00 : f32
    %52 = vector.broadcast %cst_30 : f32 to vector<8x320xf32>
    %53 = arith.maximumf %51, %52 : vector<8x320xf32>
    %54 = vector.extract_strided_slice %53 {offsets = [0, 0], sizes = [8, 160], strides = [1, 1]} : vector<8x320xf32> to vector<8x160xf32>
    %55 = vector.extract_strided_slice %53 {offsets = [0, 160], sizes = [8, 160], strides = [1, 1]} : vector<8x320xf32> to vector<8x160xf32>
    %56 = arith.maximumf %54, %55 : vector<8x160xf32>
    %57 = arith.maximumf %43, %56 : vector<8x160xf32>
    %c4 = arith.constant 4 : index
    %c0_31 = arith.constant 0 : index
    %c0_32 = arith.constant 0 : index
    %58 = vector.load %arg1[%c4, %c0_31, %c0_32] : memref<10x8x216xf32, #tpu.memory_space<vmem>>, vector<1x8x216xf32>
    %59 = vector.shape_cast %58 : vector<1x8x216xf32> to vector<8x216xf32>
    %c0_33 = arith.constant 0 : index
    %c0_34 = arith.constant 0 : index
    %60 = vector.load %arg2[%c0_33, %c0_34] : memref<216x320xf32, #tpu.memory_space<vmem>>, vector<216x320xf32>
    %cst_35 = arith.constant dense<0.000000e+00> : vector<8x320xf32>
    %61 = tpu.matmul %59, %60, %cst_35 {dimension_numbers = #tpu.dot_dimension_numbers<[1], [0], [0], [1], [0, 0, 1, 1], [], []>} : vector<8x216xf32>, vector<216x320xf32>, vector<8x320xf32> -> vector<8x320xf32>
    %62 = vector.broadcast %0 : vector<1x320xf32> to vector<8x320xf32>
    %63 = arith.mulf %61, %62 : vector<8x320xf32>
    %64 = vector.broadcast %1 : vector<1x320xf32> to vector<8x320xf32>
    %65 = arith.addf %63, %64 : vector<8x320xf32>
    %cst_36 = arith.constant 0.000000e+00 : f32
    %66 = vector.broadcast %cst_36 : f32 to vector<8x320xf32>
    %67 = arith.maximumf %65, %66 : vector<8x320xf32>
    %68 = vector.extract_strided_slice %67 {offsets = [0, 0], sizes = [8, 160], strides = [1, 1]} : vector<8x320xf32> to vector<8x160xf32>
    %69 = vector.extract_strided_slice %67 {offsets = [0, 160], sizes = [8, 160], strides = [1, 1]} : vector<8x320xf32> to vector<8x160xf32>
    %70 = arith.maximumf %68, %69 : vector<8x160xf32>
    %c5 = arith.constant 5 : index
    %c0_37 = arith.constant 0 : index
    %c0_38 = arith.constant 0 : index
    %71 = vector.load %arg1[%c5, %c0_37, %c0_38] : memref<10x8x216xf32, #tpu.memory_space<vmem>>, vector<1x8x216xf32>
    %72 = vector.shape_cast %71 : vector<1x8x216xf32> to vector<8x216xf32>
    %c0_39 = arith.constant 0 : index
    %c0_40 = arith.constant 0 : index
    %73 = vector.load %arg2[%c0_39, %c0_40] : memref<216x320xf32, #tpu.memory_space<vmem>>, vector<216x320xf32>
    %cst_41 = arith.constant dense<0.000000e+00> : vector<8x320xf32>
    %74 = tpu.matmul %72, %73, %cst_41 {dimension_numbers = #tpu.dot_dimension_numbers<[1], [0], [0], [1], [0, 0, 1, 1], [], []>} : vector<8x216xf32>, vector<216x320xf32>, vector<8x320xf32> -> vector<8x320xf32>
    %75 = vector.broadcast %0 : vector<1x320xf32> to vector<8x320xf32>
    %76 = arith.mulf %74, %75 : vector<8x320xf32>
    %77 = vector.broadcast %1 : vector<1x320xf32> to vector<8x320xf32>
    %78 = arith.addf %76, %77 : vector<8x320xf32>
    %cst_42 = arith.constant 0.000000e+00 : f32
    %79 = vector.broadcast %cst_42 : f32 to vector<8x320xf32>
    %80 = arith.maximumf %78, %79 : vector<8x320xf32>
    %81 = vector.extract_strided_slice %80 {offsets = [0, 0], sizes = [8, 160], strides = [1, 1]} : vector<8x320xf32> to vector<8x160xf32>
    %82 = vector.extract_strided_slice %80 {offsets = [0, 160], sizes = [8, 160], strides = [1, 1]} : vector<8x320xf32> to vector<8x160xf32>
    %83 = arith.maximumf %81, %82 : vector<8x160xf32>
    %84 = arith.maximumf %70, %83 : vector<8x160xf32>
    %c6 = arith.constant 6 : index
    %c0_43 = arith.constant 0 : index
    %c0_44 = arith.constant 0 : index
    %85 = vector.load %arg1[%c6, %c0_43, %c0_44] : memref<10x8x216xf32, #tpu.memory_space<vmem>>, vector<1x8x216xf32>
    %86 = vector.shape_cast %85 : vector<1x8x216xf32> to vector<8x216xf32>
    %c0_45 = arith.constant 0 : index
    %c0_46 = arith.constant 0 : index
    %87 = vector.load %arg2[%c0_45, %c0_46] : memref<216x320xf32, #tpu.memory_space<vmem>>, vector<216x320xf32>
    %cst_47 = arith.constant dense<0.000000e+00> : vector<8x320xf32>
    %88 = tpu.matmul %86, %87, %cst_47 {dimension_numbers = #tpu.dot_dimension_numbers<[1], [0], [0], [1], [0, 0, 1, 1], [], []>} : vector<8x216xf32>, vector<216x320xf32>, vector<8x320xf32> -> vector<8x320xf32>
    %89 = vector.broadcast %0 : vector<1x320xf32> to vector<8x320xf32>
    %90 = arith.mulf %88, %89 : vector<8x320xf32>
    %91 = vector.broadcast %1 : vector<1x320xf32> to vector<8x320xf32>
    %92 = arith.addf %90, %91 : vector<8x320xf32>
    %cst_48 = arith.constant 0.000000e+00 : f32
    %93 = vector.broadcast %cst_48 : f32 to vector<8x320xf32>
    %94 = arith.maximumf %92, %93 : vector<8x320xf32>
    %95 = vector.extract_strided_slice %94 {offsets = [0, 0], sizes = [8, 160], strides = [1, 1]} : vector<8x320xf32> to vector<8x160xf32>
    %96 = vector.extract_strided_slice %94 {offsets = [0, 160], sizes = [8, 160], strides = [1, 1]} : vector<8x320xf32> to vector<8x160xf32>
    %97 = arith.maximumf %95, %96 : vector<8x160xf32>
    %c7 = arith.constant 7 : index
    %c0_49 = arith.constant 0 : index
    %c0_50 = arith.constant 0 : index
    %98 = vector.load %arg1[%c7, %c0_49, %c0_50] : memref<10x8x216xf32, #tpu.memory_space<vmem>>, vector<1x8x216xf32>
    %99 = vector.shape_cast %98 : vector<1x8x216xf32> to vector<8x216xf32>
    %c0_51 = arith.constant 0 : index
    %c0_52 = arith.constant 0 : index
    %100 = vector.load %arg2[%c0_51, %c0_52] : memref<216x320xf32, #tpu.memory_space<vmem>>, vector<216x320xf32>
    %cst_53 = arith.constant dense<0.000000e+00> : vector<8x320xf32>
    %101 = tpu.matmul %99, %100, %cst_53 {dimension_numbers = #tpu.dot_dimension_numbers<[1], [0], [0], [1], [0, 0, 1, 1], [], []>} : vector<8x216xf32>, vector<216x320xf32>, vector<8x320xf32> -> vector<8x320xf32>
    %102 = vector.broadcast %0 : vector<1x320xf32> to vector<8x320xf32>
    %103 = arith.mulf %101, %102 : vector<8x320xf32>
    %104 = vector.broadcast %1 : vector<1x320xf32> to vector<8x320xf32>
    %105 = arith.addf %103, %104 : vector<8x320xf32>
    %cst_54 = arith.constant 0.000000e+00 : f32
    %106 = vector.broadcast %cst_54 : f32 to vector<8x320xf32>
    %107 = arith.maximumf %105, %106 : vector<8x320xf32>
    %108 = vector.extract_strided_slice %107 {offsets = [0, 0], sizes = [8, 160], strides = [1, 1]} : vector<8x320xf32> to vector<8x160xf32>
    %109 = vector.extract_strided_slice %107 {offsets = [0, 160], sizes = [8, 160], strides = [1, 1]} : vector<8x320xf32> to vector<8x160xf32>
    %110 = arith.maximumf %108, %109 : vector<8x160xf32>
    %111 = arith.maximumf %97, %110 : vector<8x160xf32>
    %c8 = arith.constant 8 : index
    %c0_55 = arith.constant 0 : index
    %c0_56 = arith.constant 0 : index
    %112 = vector.load %arg1[%c8, %c0_55, %c0_56] : memref<10x8x216xf32, #tpu.memory_space<vmem>>, vector<1x8x216xf32>
    %113 = vector.shape_cast %112 : vector<1x8x216xf32> to vector<8x216xf32>
    %c0_57 = arith.constant 0 : index
    %c0_58 = arith.constant 0 : index
    %114 = vector.load %arg2[%c0_57, %c0_58] : memref<216x320xf32, #tpu.memory_space<vmem>>, vector<216x320xf32>
    %cst_59 = arith.constant dense<0.000000e+00> : vector<8x320xf32>
    %115 = tpu.matmul %113, %114, %cst_59 {dimension_numbers = #tpu.dot_dimension_numbers<[1], [0], [0], [1], [0, 0, 1, 1], [], []>} : vector<8x216xf32>, vector<216x320xf32>, vector<8x320xf32> -> vector<8x320xf32>
    %116 = vector.broadcast %0 : vector<1x320xf32> to vector<8x320xf32>
    %117 = arith.mulf %115, %116 : vector<8x320xf32>
    %118 = vector.broadcast %1 : vector<1x320xf32> to vector<8x320xf32>
    %119 = arith.addf %117, %118 : vector<8x320xf32>
    %cst_60 = arith.constant 0.000000e+00 : f32
    %120 = vector.broadcast %cst_60 : f32 to vector<8x320xf32>
    %121 = arith.maximumf %119, %120 : vector<8x320xf32>
    %122 = vector.extract_strided_slice %121 {offsets = [0, 0], sizes = [8, 160], strides = [1, 1]} : vector<8x320xf32> to vector<8x160xf32>
    %123 = vector.extract_strided_slice %121 {offsets = [0, 160], sizes = [8, 160], strides = [1, 1]} : vector<8x320xf32> to vector<8x160xf32>
    %124 = arith.maximumf %122, %123 : vector<8x160xf32>
    %c9 = arith.constant 9 : index
    %c0_61 = arith.constant 0 : index
    %c0_62 = arith.constant 0 : index
    %125 = vector.load %arg1[%c9, %c0_61, %c0_62] : memref<10x8x216xf32, #tpu.memory_space<vmem>>, vector<1x8x216xf32>
    %126 = vector.shape_cast %125 : vector<1x8x216xf32> to vector<8x216xf32>
    %c0_63 = arith.constant 0 : index
    %c0_64 = arith.constant 0 : index
    %127 = vector.load %arg2[%c0_63, %c0_64] : memref<216x320xf32, #tpu.memory_space<vmem>>, vector<216x320xf32>
    %cst_65 = arith.constant dense<0.000000e+00> : vector<8x320xf32>
    %128 = tpu.matmul %126, %127, %cst_65 {dimension_numbers = #tpu.dot_dimension_numbers<[1], [0], [0], [1], [0, 0, 1, 1], [], []>} : vector<8x216xf32>, vector<216x320xf32>, vector<8x320xf32> -> vector<8x320xf32>
    %129 = vector.broadcast %0 : vector<1x320xf32> to vector<8x320xf32>
    %130 = arith.mulf %128, %129 : vector<8x320xf32>
    %131 = vector.broadcast %1 : vector<1x320xf32> to vector<8x320xf32>
    %132 = arith.addf %130, %131 : vector<8x320xf32>
    %cst_66 = arith.constant 0.000000e+00 : f32
    %133 = vector.broadcast %cst_66 : f32 to vector<8x320xf32>
    %134 = arith.maximumf %132, %133 : vector<8x320xf32>
    %135 = vector.extract_strided_slice %134 {offsets = [0, 0], sizes = [8, 160], strides = [1, 1]} : vector<8x320xf32> to vector<8x160xf32>
    %136 = vector.extract_strided_slice %134 {offsets = [0, 160], sizes = [8, 160], strides = [1, 1]} : vector<8x320xf32> to vector<8x160xf32>
    %137 = arith.maximumf %135, %136 : vector<8x160xf32>
    %138 = arith.maximumf %124, %137 : vector<8x160xf32>
    %c1_67 = arith.constant 1 : index
    %c0_68 = arith.constant 0 : index
    %c0_69 = arith.constant 0 : index
    %139 = vector.load %arg5[%c1_67, %c0_68, %c0_69] : memref<3x160x320xf32, #tpu.memory_space<vmem>>, vector<1x160x320xf32>
    %140 = vector.shape_cast %139 : vector<1x160x320xf32> to vector<160x320xf32>
    %cst_70 = arith.constant dense<0.000000e+00> : vector<8x320xf32>
    %141 = tpu.matmul %30, %140, %cst_70 {dimension_numbers = #tpu.dot_dimension_numbers<[1], [0], [0], [1], [0, 0, 1, 1], [], []>} : vector<8x160xf32>, vector<160x320xf32>, vector<8x320xf32> -> vector<8x320xf32>
    %c2_71 = arith.constant 2 : index
    %c0_72 = arith.constant 0 : index
    %c0_73 = arith.constant 0 : index
    %142 = vector.load %arg5[%c2_71, %c0_72, %c0_73] : memref<3x160x320xf32, #tpu.memory_space<vmem>>, vector<1x160x320xf32>
    %143 = vector.shape_cast %142 : vector<1x160x320xf32> to vector<160x320xf32>
    %cst_74 = arith.constant dense<0.000000e+00> : vector<8x320xf32>
    %144 = tpu.matmul %57, %143, %cst_74 {dimension_numbers = #tpu.dot_dimension_numbers<[1], [0], [0], [1], [0, 0, 1, 1], [], []>} : vector<8x160xf32>, vector<160x320xf32>, vector<8x320xf32> -> vector<8x320xf32>
    %145 = arith.addf %141, %144 : vector<8x320xf32>
    %146 = vector.broadcast %2 : vector<1x320xf32> to vector<8x320xf32>
    %147 = arith.mulf %145, %146 : vector<8x320xf32>
    %148 = vector.broadcast %3 : vector<1x320xf32> to vector<8x320xf32>
    %149 = arith.addf %147, %148 : vector<8x320xf32>
    %cst_75 = arith.constant 0.000000e+00 : f32
    %150 = vector.broadcast %cst_75 : f32 to vector<8x320xf32>
    %151 = arith.maximumf %149, %150 : vector<8x320xf32>
    %c0_76 = arith.constant 0 : index
    %c0_77 = arith.constant 0 : index
    %c0_78 = arith.constant 0 : index
    %152 = vector.load %arg5[%c0_76, %c0_77, %c0_78] : memref<3x160x320xf32, #tpu.memory_space<vmem>>, vector<1x160x320xf32>
    %153 = vector.shape_cast %152 : vector<1x160x320xf32> to vector<160x320xf32>
    %cst_79 = arith.constant dense<0.000000e+00> : vector<8x320xf32>
    %154 = tpu.matmul %30, %153, %cst_79 {dimension_numbers = #tpu.dot_dimension_numbers<[1], [0], [0], [1], [0, 0, 1, 1], [], []>} : vector<8x160xf32>, vector<160x320xf32>, vector<8x320xf32> -> vector<8x320xf32>
    %c1_80 = arith.constant 1 : index
    %c0_81 = arith.constant 0 : index
    %c0_82 = arith.constant 0 : index
    %155 = vector.load %arg5[%c1_80, %c0_81, %c0_82] : memref<3x160x320xf32, #tpu.memory_space<vmem>>, vector<1x160x320xf32>
    %156 = vector.shape_cast %155 : vector<1x160x320xf32> to vector<160x320xf32>
    %cst_83 = arith.constant dense<0.000000e+00> : vector<8x320xf32>
    %157 = tpu.matmul %57, %156, %cst_83 {dimension_numbers = #tpu.dot_dimension_numbers<[1], [0], [0], [1], [0, 0, 1, 1], [], []>} : vector<8x160xf32>, vector<160x320xf32>, vector<8x320xf32> -> vector<8x320xf32>
    %158 = arith.addf %154, %157 : vector<8x320xf32>
    %c2_84 = arith.constant 2 : index
    %c0_85 = arith.constant 0 : index
    %c0_86 = arith.constant 0 : index
    %159 = vector.load %arg5[%c2_84, %c0_85, %c0_86] : memref<3x160x320xf32, #tpu.memory_space<vmem>>, vector<1x160x320xf32>
    %160 = vector.shape_cast %159 : vector<1x160x320xf32> to vector<160x320xf32>
    %cst_87 = arith.constant dense<0.000000e+00> : vector<8x320xf32>
    %161 = tpu.matmul %84, %160, %cst_87 {dimension_numbers = #tpu.dot_dimension_numbers<[1], [0], [0], [1], [0, 0, 1, 1], [], []>} : vector<8x160xf32>, vector<160x320xf32>, vector<8x320xf32> -> vector<8x320xf32>
    %162 = arith.addf %158, %161 : vector<8x320xf32>
    %163 = vector.broadcast %2 : vector<1x320xf32> to vector<8x320xf32>
    %164 = arith.mulf %162, %163 : vector<8x320xf32>
    %165 = vector.broadcast %3 : vector<1x320xf32> to vector<8x320xf32>
    %166 = arith.addf %164, %165 : vector<8x320xf32>
    %cst_88 = arith.constant 0.000000e+00 : f32
    %167 = vector.broadcast %cst_88 : f32 to vector<8x320xf32>
    %168 = arith.maximumf %166, %167 : vector<8x320xf32>
    %c0_89 = arith.constant 0 : index
    %c0_90 = arith.constant 0 : index
    %c0_91 = arith.constant 0 : index
    %169 = vector.load %arg5[%c0_89, %c0_90, %c0_91] : memref<3x160x320xf32, #tpu.memory_space<vmem>>, vector<1x160x320xf32>
    %170 = vector.shape_cast %169 : vector<1x160x320xf32> to vector<160x320xf32>
    %cst_92 = arith.constant dense<0.000000e+00> : vector<8x320xf32>
    %171 = tpu.matmul %57, %170, %cst_92 {dimension_numbers = #tpu.dot_dimension_numbers<[1], [0], [0], [1], [0, 0, 1, 1], [], []>} : vector<8x160xf32>, vector<160x320xf32>, vector<8x320xf32> -> vector<8x320xf32>
    %c1_93 = arith.constant 1 : index
    %c0_94 = arith.constant 0 : index
    %c0_95 = arith.constant 0 : index
    %172 = vector.load %arg5[%c1_93, %c0_94, %c0_95] : memref<3x160x320xf32, #tpu.memory_space<vmem>>, vector<1x160x320xf32>
    %173 = vector.shape_cast %172 : vector<1x160x320xf32> to vector<160x320xf32>
    %cst_96 = arith.constant dense<0.000000e+00> : vector<8x320xf32>
    %174 = tpu.matmul %84, %173, %cst_96 {dimension_numbers = #tpu.dot_dimension_numbers<[1], [0], [0], [1], [0, 0, 1, 1], [], []>} : vector<8x160xf32>, vector<160x320xf32>, vector<8x320xf32> -> vector<8x320xf32>
    %175 = arith.addf %171, %174 : vector<8x320xf32>
    %c2_97 = arith.constant 2 : index
    %c0_98 = arith.constant 0 : index
    %c0_99 = arith.constant 0 : index
    %176 = vector.load %arg5[%c2_97, %c0_98, %c0_99] : memref<3x160x320xf32, #tpu.memory_space<vmem>>, vector<1x160x320xf32>
    %177 = vector.shape_cast %176 : vector<1x160x320xf32> to vector<160x320xf32>
    %cst_100 = arith.constant dense<0.000000e+00> : vector<8x320xf32>
    %178 = tpu.matmul %111, %177, %cst_100 {dimension_numbers = #tpu.dot_dimension_numbers<[1], [0], [0], [1], [0, 0, 1, 1], [], []>} : vector<8x160xf32>, vector<160x320xf32>, vector<8x320xf32> -> vector<8x320xf32>
    %179 = arith.addf %175, %178 : vector<8x320xf32>
    %180 = vector.broadcast %2 : vector<1x320xf32> to vector<8x320xf32>
    %181 = arith.mulf %179, %180 : vector<8x320xf32>
    %182 = vector.broadcast %3 : vector<1x320xf32> to vector<8x320xf32>
    %183 = arith.addf %181, %182 : vector<8x320xf32>
    %cst_101 = arith.constant 0.000000e+00 : f32
    %184 = vector.broadcast %cst_101 : f32 to vector<8x320xf32>
    %185 = arith.maximumf %183, %184 : vector<8x320xf32>
    %c0_102 = arith.constant 0 : index
    %c0_103 = arith.constant 0 : index
    %c0_104 = arith.constant 0 : index
    %186 = vector.load %arg5[%c0_102, %c0_103, %c0_104] : memref<3x160x320xf32, #tpu.memory_space<vmem>>, vector<1x160x320xf32>
    %187 = vector.shape_cast %186 : vector<1x160x320xf32> to vector<160x320xf32>
    %cst_105 = arith.constant dense<0.000000e+00> : vector<8x320xf32>
    %188 = tpu.matmul %84, %187, %cst_105 {dimension_numbers = #tpu.dot_dimension_numbers<[1], [0], [0], [1], [0, 0, 1, 1], [], []>} : vector<8x160xf32>, vector<160x320xf32>, vector<8x320xf32> -> vector<8x320xf32>
    %c1_106 = arith.constant 1 : index
    %c0_107 = arith.constant 0 : index
    %c0_108 = arith.constant 0 : index
    %189 = vector.load %arg5[%c1_106, %c0_107, %c0_108] : memref<3x160x320xf32, #tpu.memory_space<vmem>>, vector<1x160x320xf32>
    %190 = vector.shape_cast %189 : vector<1x160x320xf32> to vector<160x320xf32>
    %cst_109 = arith.constant dense<0.000000e+00> : vector<8x320xf32>
    %191 = tpu.matmul %111, %190, %cst_109 {dimension_numbers = #tpu.dot_dimension_numbers<[1], [0], [0], [1], [0, 0, 1, 1], [], []>} : vector<8x160xf32>, vector<160x320xf32>, vector<8x320xf32> -> vector<8x320xf32>
    %192 = arith.addf %188, %191 : vector<8x320xf32>
    %c2_110 = arith.constant 2 : index
    %c0_111 = arith.constant 0 : index
    %c0_112 = arith.constant 0 : index
    %193 = vector.load %arg5[%c2_110, %c0_111, %c0_112] : memref<3x160x320xf32, #tpu.memory_space<vmem>>, vector<1x160x320xf32>
    %194 = vector.shape_cast %193 : vector<1x160x320xf32> to vector<160x320xf32>
    %cst_113 = arith.constant dense<0.000000e+00> : vector<8x320xf32>
    %195 = tpu.matmul %138, %194, %cst_113 {dimension_numbers = #tpu.dot_dimension_numbers<[1], [0], [0], [1], [0, 0, 1, 1], [], []>} : vector<8x160xf32>, vector<160x320xf32>, vector<8x320xf32> -> vector<8x320xf32>
    %196 = arith.addf %192, %195 : vector<8x320xf32>
    %197 = vector.broadcast %2 : vector<1x320xf32> to vector<8x320xf32>
    %198 = arith.mulf %196, %197 : vector<8x320xf32>
    %199 = vector.broadcast %3 : vector<1x320xf32> to vector<8x320xf32>
    %200 = arith.addf %198, %199 : vector<8x320xf32>
    %cst_114 = arith.constant 0.000000e+00 : f32
    %201 = vector.broadcast %cst_114 : f32 to vector<8x320xf32>
    %202 = arith.maximumf %200, %201 : vector<8x320xf32>
    %c0_115 = arith.constant 0 : index
    %c0_116 = arith.constant 0 : index
    %c0_117 = arith.constant 0 : index
    %203 = vector.load %arg5[%c0_115, %c0_116, %c0_117] : memref<3x160x320xf32, #tpu.memory_space<vmem>>, vector<1x160x320xf32>
    %204 = vector.shape_cast %203 : vector<1x160x320xf32> to vector<160x320xf32>
    %cst_118 = arith.constant dense<0.000000e+00> : vector<8x320xf32>
    %205 = tpu.matmul %111, %204, %cst_118 {dimension_numbers = #tpu.dot_dimension_numbers<[1], [0], [0], [1], [0, 0, 1, 1], [], []>} : vector<8x160xf32>, vector<160x320xf32>, vector<8x320xf32> -> vector<8x320xf32>
    %c1_119 = arith.constant 1 : index
    %c0_120 = arith.constant 0 : index
    %c0_121 = arith.constant 0 : index
    %206 = vector.load %arg5[%c1_119, %c0_120, %c0_121] : memref<3x160x320xf32, #tpu.memory_space<vmem>>, vector<1x160x320xf32>
    %207 = vector.shape_cast %206 : vector<1x160x320xf32> to vector<160x320xf32>
    %cst_122 = arith.constant dense<0.000000e+00> : vector<8x320xf32>
    %208 = tpu.matmul %138, %207, %cst_122 {dimension_numbers = #tpu.dot_dimension_numbers<[1], [0], [0], [1], [0, 0, 1, 1], [], []>} : vector<8x160xf32>, vector<160x320xf32>, vector<8x320xf32> -> vector<8x320xf32>
    %209 = arith.addf %205, %208 : vector<8x320xf32>
    %210 = vector.broadcast %2 : vector<1x320xf32> to vector<8x320xf32>
    %211 = arith.mulf %209, %210 : vector<8x320xf32>
    %212 = vector.broadcast %3 : vector<1x320xf32> to vector<8x320xf32>
    %213 = arith.addf %211, %212 : vector<8x320xf32>
    %cst_123 = arith.constant 0.000000e+00 : f32
    %214 = vector.broadcast %cst_123 : f32 to vector<8x320xf32>
    %215 = arith.maximumf %213, %214 : vector<8x320xf32>
    %216 = arith.maximumf %151, %168 : vector<8x320xf32>
    %217 = arith.maximumf %216, %185 : vector<8x320xf32>
    %218 = vector.extract_strided_slice %217 {offsets = [0, 0], sizes = [8, 64], strides = [1, 1]} : vector<8x320xf32> to vector<8x64xf32>
    %219 = vector.extract_strided_slice %217 {offsets = [0, 64], sizes = [8, 64], strides = [1, 1]} : vector<8x320xf32> to vector<8x64xf32>
    %220 = arith.maximumf %218, %219 : vector<8x64xf32>
    %221 = vector.extract_strided_slice %217 {offsets = [0, 128], sizes = [8, 64], strides = [1, 1]} : vector<8x320xf32> to vector<8x64xf32>
    %222 = arith.maximumf %220, %221 : vector<8x64xf32>
    %c0_124 = arith.constant 0 : index
    %c0_125 = arith.constant 0 : index
    %c0_126 = arith.constant 0 : index
    %223 = vector.load %arg8[%c0_124, %c0_125, %c0_126] : memref<4x64x128xf32, #tpu.memory_space<vmem>>, vector<1x64x128xf32>
    %224 = vector.shape_cast %223 : vector<1x64x128xf32> to vector<64x128xf32>
    %cst_127 = arith.constant dense<0.000000e+00> : vector<8x128xf32>
    %225 = tpu.matmul %222, %224, %cst_127 {dimension_numbers = #tpu.dot_dimension_numbers<[1], [0], [0], [1], [0, 0, 1, 1], [], []>} : vector<8x64xf32>, vector<64x128xf32>, vector<8x128xf32> -> vector<8x128xf32>
    %226 = vector.extract_strided_slice %217 {offsets = [0, 128], sizes = [8, 64], strides = [1, 1]} : vector<8x320xf32> to vector<8x64xf32>
    %227 = vector.extract_strided_slice %217 {offsets = [0, 192], sizes = [8, 64], strides = [1, 1]} : vector<8x320xf32> to vector<8x64xf32>
    %228 = arith.maximumf %226, %227 : vector<8x64xf32>
    %229 = vector.extract_strided_slice %217 {offsets = [0, 256], sizes = [8, 64], strides = [1, 1]} : vector<8x320xf32> to vector<8x64xf32>
    %230 = arith.maximumf %228, %229 : vector<8x64xf32>
    %c1_128 = arith.constant 1 : index
    %c0_129 = arith.constant 0 : index
    %c0_130 = arith.constant 0 : index
    %231 = vector.load %arg8[%c1_128, %c0_129, %c0_130] : memref<4x64x128xf32, #tpu.memory_space<vmem>>, vector<1x64x128xf32>
    %232 = vector.shape_cast %231 : vector<1x64x128xf32> to vector<64x128xf32>
    %cst_131 = arith.constant dense<0.000000e+00> : vector<8x128xf32>
    %233 = tpu.matmul %230, %232, %cst_131 {dimension_numbers = #tpu.dot_dimension_numbers<[1], [0], [0], [1], [0, 0, 1, 1], [], []>} : vector<8x64xf32>, vector<64x128xf32>, vector<8x128xf32> -> vector<8x128xf32>
    %234 = arith.addf %225, %233 : vector<8x128xf32>
    %235 = arith.maximumf %185, %202 : vector<8x320xf32>
    %236 = arith.maximumf %235, %215 : vector<8x320xf32>
    %237 = vector.extract_strided_slice %236 {offsets = [0, 0], sizes = [8, 64], strides = [1, 1]} : vector<8x320xf32> to vector<8x64xf32>
    %238 = vector.extract_strided_slice %236 {offsets = [0, 64], sizes = [8, 64], strides = [1, 1]} : vector<8x320xf32> to vector<8x64xf32>
    %239 = arith.maximumf %237, %238 : vector<8x64xf32>
    %240 = vector.extract_strided_slice %236 {offsets = [0, 128], sizes = [8, 64], strides = [1, 1]} : vector<8x320xf32> to vector<8x64xf32>
    %241 = arith.maximumf %239, %240 : vector<8x64xf32>
    %c2_132 = arith.constant 2 : index
    %c0_133 = arith.constant 0 : index
    %c0_134 = arith.constant 0 : index
    %242 = vector.load %arg8[%c2_132, %c0_133, %c0_134] : memref<4x64x128xf32, #tpu.memory_space<vmem>>, vector<1x64x128xf32>
    %243 = vector.shape_cast %242 : vector<1x64x128xf32> to vector<64x128xf32>
    %cst_135 = arith.constant dense<0.000000e+00> : vector<8x128xf32>
    %244 = tpu.matmul %241, %243, %cst_135 {dimension_numbers = #tpu.dot_dimension_numbers<[1], [0], [0], [1], [0, 0, 1, 1], [], []>} : vector<8x64xf32>, vector<64x128xf32>, vector<8x128xf32> -> vector<8x128xf32>
    %245 = arith.addf %234, %244 : vector<8x128xf32>
    %246 = vector.extract_strided_slice %236 {offsets = [0, 128], sizes = [8, 64], strides = [1, 1]} : vector<8x320xf32> to vector<8x64xf32>
    %247 = vector.extract_strided_slice %236 {offsets = [0, 192], sizes = [8, 64], strides = [1, 1]} : vector<8x320xf32> to vector<8x64xf32>
    %248 = arith.maximumf %246, %247 : vector<8x64xf32>
    %249 = vector.extract_strided_slice %236 {offsets = [0, 256], sizes = [8, 64], strides = [1, 1]} : vector<8x320xf32> to vector<8x64xf32>
    %250 = arith.maximumf %248, %249 : vector<8x64xf32>
    %c3_136 = arith.constant 3 : index
    %c0_137 = arith.constant 0 : index
    %c0_138 = arith.constant 0 : index
    %251 = vector.load %arg8[%c3_136, %c0_137, %c0_138] : memref<4x64x128xf32, #tpu.memory_space<vmem>>, vector<1x64x128xf32>
    %252 = vector.shape_cast %251 : vector<1x64x128xf32> to vector<64x128xf32>
    %cst_139 = arith.constant dense<0.000000e+00> : vector<8x128xf32>
    %253 = tpu.matmul %250, %252, %cst_139 {dimension_numbers = #tpu.dot_dimension_numbers<[1], [0], [0], [1], [0, 0, 1, 1], [], []>} : vector<8x64xf32>, vector<64x128xf32>, vector<8x128xf32> -> vector<8x128xf32>
    %254 = arith.addf %245, %253 : vector<8x128xf32>
    %c0_140 = arith.constant 0 : index
    %c0_141 = arith.constant 0 : index
    %255 = vector.load %arg9[%c0_140, %c0_141] : memref<1x128xf32, #tpu.memory_space<vmem>>, vector<1x128xf32>
    %256 = vector.broadcast %255 : vector<1x128xf32> to vector<8x128xf32>
    %257 = arith.addf %254, %256 : vector<8x128xf32>
    %cst_142 = arith.constant 0.000000e+00 : f32
    %258 = vector.broadcast %cst_142 : f32 to vector<8x128xf32>
    %259 = arith.maximumf %257, %258 : vector<8x128xf32>
    %c0_143 = arith.constant 0 : index
    %c0_144 = arith.constant 0 : index
    %260 = vector.load %arg10[%c0_143, %c0_144] : memref<128x256xf32, #tpu.memory_space<vmem>>, vector<128x256xf32>
    %cst_145 = arith.constant dense<0.000000e+00> : vector<8x256xf32>
    %261 = tpu.matmul %259, %260, %cst_145 {dimension_numbers = #tpu.dot_dimension_numbers<[1], [0], [0], [1], [0, 0, 1, 1], [], []>} : vector<8x128xf32>, vector<128x256xf32>, vector<8x256xf32> -> vector<8x256xf32>
    %c0_146 = arith.constant 0 : index
    %c0_147 = arith.constant 0 : index
    %262 = vector.load %arg11[%c0_146, %c0_147] : memref<1x256xf32, #tpu.memory_space<vmem>>, vector<1x256xf32>
    %263 = vector.broadcast %262 : vector<1x256xf32> to vector<8x256xf32>
    %264 = arith.addf %261, %263 : vector<8x256xf32>
    %cst_148 = arith.constant 0.000000e+00 : f32
    %265 = vector.broadcast %cst_148 : f32 to vector<8x256xf32>
    %266 = arith.maximumf %264, %265 : vector<8x256xf32>
    %c0_149 = arith.constant 0 : index
    %c0_150 = arith.constant 0 : index
    %267 = vector.load %arg12[%c0_149, %c0_150] : memref<256x8xf32, #tpu.memory_space<vmem>>, vector<256x8xf32>
    %cst_151 = arith.constant dense<0.000000e+00> : vector<8x8xf32>
    %268 = tpu.matmul %266, %267, %cst_151 {dimension_numbers = #tpu.dot_dimension_numbers<[1], [0], [0], [1], [0, 0, 1, 1], [], []>} : vector<8x256xf32>, vector<256x8xf32>, vector<8x8xf32> -> vector<8x8xf32>
    %c0_152 = arith.constant 0 : index
    %c0_153 = arith.constant 0 : index
    %269 = vector.load %arg13[%c0_152, %c0_153] : memref<1x8xf32, #tpu.memory_space<vmem>>, vector<1x8xf32>
    %270 = vector.broadcast %269 : vector<1x8xf32> to vector<8x8xf32>
    %271 = arith.addf %268, %270 : vector<8x8xf32>
    %c0_154 = arith.constant 0 : index
    %c0_155 = arith.constant 0 : index
    %272 = vector.load %arg14[%c0_154, %c0_155] : memref<8x8xf32, #tpu.memory_space<vmem>>, vector<8x8xf32>
    tpu.vector_store %arg14[%c0_154, %c0_155], %271 {strides = array<i32>} : memref<8x8xf32, #tpu.memory_space<vmem>>, vector<8x8xf32>,
    return
  }
  func.func @transform_0(%arg0: i32) -> (i32, i32, i32) {
    %c0_i32 = arith.constant 0 : i32
    %c0_i32_0 = arith.constant 0 : i32
    %c0_i32_1 = arith.constant 0 : i32
    return %c0_i32, %arg0, %c0_i32_0 : i32, i32, i32
  }
  func.func @transform_1(%arg0: i32) -> (i32, i32) {
    %c0_i32 = arith.constant 0 : i32
    %c0_i32_0 = arith.constant 0 : i32
    %c0_i32_1 = arith.constant 0 : i32
    return %c0_i32, %c0_i32_0 : i32, i32
  }
  func.func @transform_2(%arg0: i32) -> (i32, i32) {
    %c0_i32 = arith.constant 0 : i32
    %c0_i32_0 = arith.constant 0 : i32
    %c0_i32_1 = arith.constant 0 : i32
    return %c0_i32, %c0_i32_0 : i32, i32
  }
  func.func @transform_3(%arg0: i32) -> (i32, i32) {
    %c0_i32 = arith.constant 0 : i32
    %c0_i32_0 = arith.constant 0 : i32
    %c0_i32_1 = arith.constant 0 : i32
    return %c0_i32, %c0_i32_0 : i32, i32
  }
  func.func @transform_4(%arg0: i32) -> (i32, i32, i32) {
    %c0_i32 = arith.constant 0 : i32
    %c0_i32_0 = arith.constant 0 : i32
    %c0_i32_1 = arith.constant 0 : i32
    %c0_i32_2 = arith.constant 0 : i32
    return %c0_i32, %c0_i32_0, %c0_i32_1 : i32, i32, i32
  }
  func.func @transform_5(%arg0: i32) -> (i32, i32) {
    %c0_i32 = arith.constant 0 : i32
    %c0_i32_0 = arith.constant 0 : i32
    %c0_i32_1 = arith.constant 0 : i32
    return %c0_i32, %c0_i32_0 : i32, i32
  }
  func.func @transform_6(%arg0: i32) -> (i32, i32) {
    %c0_i32 = arith.constant 0 : i32
    %c0_i32_0 = arith.constant 0 : i32
    %c0_i32_1 = arith.constant 0 : i32
    return %c0_i32, %c0_i32_0 : i32, i32
  }
  func.func @transform_7(%arg0: i32) -> (i32, i32, i32) {
    %c0_i32 = arith.constant 0 : i32
    %c0_i32_0 = arith.constant 0 : i32
    %c0_i32_1 = arith.constant 0 : i32
    %c0_i32_2 = arith.constant 0 : i32
    return %c0_i32, %c0_i32_0, %c0_i32_1 : i32, i32, i32
  }
  func.func @transform_8(%arg0: i32) -> (i32, i32) {
    %c0_i32 = arith.constant 0 : i32
    %c0_i32_0 = arith.constant 0 : i32
    %c0_i32_1 = arith.constant 0 : i32
    return %c0_i32, %c0_i32_0 : i32, i32
  }
  func.func @transform_9(%arg0: i32) -> (i32, i32) {
    %c0_i32 = arith.constant 0 : i32
    %c0_i32_0 = arith.constant 0 : i32
    %c0_i32_1 = arith.constant 0 : i32
    return %c0_i32, %c0_i32_0 : i32, i32
  }
  func.func @transform_10(%arg0: i32) -> (i32, i32) {
    %c0_i32 = arith.constant 0 : i32
    %c0_i32_0 = arith.constant 0 : i32
    %c0_i32_1 = arith.constant 0 : i32
    return %c0_i32, %c0_i32_0 : i32, i32
  }
  func.func @transform_11(%arg0: i32) -> (i32, i32) {
    %c0_i32 = arith.constant 0 : i32
    %c0_i32_0 = arith.constant 0 : i32
    %c0_i32_1 = arith.constant 0 : i32
    return %c0_i32, %c0_i32_0 : i32, i32
  }
  func.func @transform_12(%arg0: i32) -> (i32, i32) {
    %c0_i32 = arith.constant 0 : i32
    %c0_i32_0 = arith.constant 0 : i32
    %c0_i32_1 = arith.constant 0 : i32
    return %c0_i32, %c0_i32_0 : i32, i32
  }
  func.func @transform_13(%arg0: i32) -> (i32, i32) {
    %c0_i32 = arith.constant 0 : i32
    %c0_i32_0 = arith.constant 0 : i32
    return %arg0, %c0_i32 : i32, i32
  }
}

</mosaic_0001>

<llo_original>
// kernel: pnet_pallas.1
$region0: #{pnet_pallas.1}
  #allocation0 [shape = 'u32[]', space=smem, size = 0x4, offset = 0x4, fixed_abs, tag = 'smem constant byte address 0x4 - core index']
  #allocation1 [shape = 'u32[144,128]{1,0:T(1,128)}', space=vmem, size = 0x12000, scoped, tag = 'internal scratch']
  %s0 = inlined_call_operand.vmem [shape: f32[10,16,216], index: 0, kind: input, shape index: {}]
  %s1 = inlined_call_operand.vmem [shape: f32[216,320], index: 1, kind: input, shape index: {}]
  %s2 = inlined_call_operand.vmem [shape: f32[1,320], index: 2, kind: input, shape index: {}]
  %s3 = inlined_call_operand.vmem [shape: f32[1,320], index: 3, kind: input, shape index: {}]
  %s4 = inlined_call_operand.vmem [shape: f32[3,160,320], index: 4, kind: input, shape index: {}]
  %s5 = inlined_call_operand.vmem [shape: f32[1,320], index: 5, kind: input, shape index: {}]
  %s6 = inlined_call_operand.vmem [shape: f32[1,320], index: 6, kind: input, shape index: {}]
  %s7 = inlined_call_operand.vmem [shape: f32[4,64,128], index: 7, kind: input, shape index: {}]
  %s8 = inlined_call_operand.vmem [shape: f32[1,128], index: 8, kind: input, shape index: {}]
  %s9 = inlined_call_operand.vmem [shape: f32[128,256], index: 9, kind: input, shape index: {}]
  %s10 = inlined_call_operand.vmem [shape: f32[1,256], index: 10, kind: input, shape index: {}]
  %s11 = inlined_call_operand.vmem [shape: f32[256,8], index: 11, kind: input, shape index: {}]
  %s12 = inlined_call_operand.vmem [shape: f32[1,8], index: 12, kind: input, shape index: {}]
  %s13 = inlined_call_operand.vmem [shape: f32[16,8], index: 13, kind: output, shape index: {}]
  %s14 = sld [smem:[#allocation0]]
  $region108: #{pnet_pallas.1} parent=0
    _
  %s16 = ssub.s32 1, %s14
  %s17 = scalar_select 0, %s16, %s14
  $region1: #{pnet_pallas.1} parent=0
    #allocation2 [shape = 'u8[163840]{0}', space=vmem, size = 0x28000, scoped, tag = 'input window, operand 0']
    loop: start=0, step=1, limit=4
    $region2: #{pnet_pallas.1} parent=1 // loop_pre_header
      _
    $region3: #{pnet_pallas.1} parent=1 // loop_header
      %s19 = sphi 0, %s23
      %p20 = scmp.ge.s32.totalorder %s19, 4
      %s29 = sphi 0, %s31
      %s32 = sphi 0, %s29
      %s33 = sphi 0, %s32
      %s49 = sphi 0, %s33
      %s53 = sphi 0, %s53
      %s55 = sphi 0, %s53
      %s56 = sphi 0, %s55
      %s70 = sphi 0, %s56
      %s74 = sphi 0, %s74
      %s76 = sphi 0, %s74
      %s77 = sphi 0, %s76
      %s91 = sphi 0, %s77
      %s95 = sphi 0, %s95
      %s97 = sphi 0, %s95
      %s98 = sphi 0, %s97
      %s112 = sphi 0, %s98
      %s116 = sphi 0, %s116
      %s118 = sphi 0, %s116
      %s119 = sphi 0, %s118
      %s133 = sphi 0, %s119
      %s137 = sphi 0, %s137
      %s139 = sphi 0, %s137
      %s140 = sphi 0, %s139
      %s154 = sphi 0, %s140
      %s158 = sphi 0, %s158
      %s160 = sphi 0, %s158
      %s161 = sphi 0, %s160
      %s175 = sphi 0, %s161
      %s179 = sphi 0, %s179
      %s181 = sphi 0, %s179
      %s182 = sphi 0, %s181
      %s196 = sphi 0, %s182
      %s200 = sphi 0, %s200
      %s202 = sphi 0, %s200
      %s203 = sphi 0, %s202
      %s217 = sphi 0, %s203
      %s221 = sphi 0, %s221
      %s223 = sphi 0, %s221
      %s224 = sphi 0, %s223
      %s238 = sphi 0, %s224
      %s242 = sphi 0, %s242
      %s244 = sphi 0, %s242
      %s245 = sphi 0, %s244
      %s259 = sphi 0, %s245
      %s263 = sphi 0, %s263
      %s265 = sphi 0, %s263
      %s266 = sphi 0, %s265
      %s280 = sphi 0, %s266
      %s284 = sphi 0, %s284
      %s286 = sphi 0, %s284
      %s287 = sphi 0, %s286
      %s301 = sphi 0, %s287
      %s307 = sphi 0, %s309
      %s310 = sphi 0, %s307
      %s311 = sphi 0, %s310
      %s327 = sphi 0, %s311
    $region4: #{pnet_pallas.1} parent=1 // loop_header_branch
      %22 = sbr.rel (%p20) target = $region8
    $region5: #{pnet_pallas.1} parent=1 // loop_body
      %s24 = ssub.s32 %s19, 1
      %s25 = ssub.s32 %s19, 2
      %s26 = sadd.s32 %s19, 1
      %s27 = ssub.s32 %s19, %s26
      %p28 = scmp.eq.s32.totalorder %s27, 0
      %s30 = sadd.s32 %s29, 1
      %s31 = scalar_select %p28, %s29, %s30
      %p34 = pneg %p28
      %p35 = scmp.eq.s32.totalorder %s19, 1
      %p36 = por %p34, %p35
      %p37 = scmp.ne.s32.totalorder %s29, %s32
      %p38 = scmp.eq.s32.totalorder %s19, 0
      %p39 = por %p37, %p38
      %p40 = scmp.ne.s32.totalorder %s29, %s32
      %p41 = scmp.eq.s32.totalorder %s24, 1
      %p42 = por %p40, %p41
      %p43 = scmp.ne.s32.totalorder %s32, %s33
      %p44 = scmp.eq.s32.totalorder %s24, 0
      %p45 = por %p43, %p44
      %p46 = scmp.ne.s32.totalorder %s32, %s33
      %p47 = scmp.eq.s32.totalorder %s25, 1
      %p48 = por %p46, %p47
      %p50 = scmp.ne.s32.totalorder %s33, %s49
      %p51 = scmp.eq.s32.totalorder %s25, 0
      %p52 = por %p50, %p51
      %s54 = sadd.s32 %s53, 1
      %p57 = scmp.eq.s32.totalorder %s19, 1
      %p58 = scmp.ne.s32.totalorder %s53, %s55
      %p59 = scmp.eq.s32.totalorder %s19, 0
      %p60 = por %p58, %p59
      %p61 = scmp.ne.s32.totalorder %s53, %s55
      %p62 = scmp.eq.s32.totalorder %s24, 1
      %p63 = por %p61, %p62
      %p64 = scmp.ne.s32.totalorder %s55, %s56
      %p65 = scmp.eq.s32.totalorder %s24, 0
      %p66 = por %p64, %p65
      %p67 = scmp.ne.s32.totalorder %s55, %s56
      %p68 = scmp.eq.s32.totalorder %s25, 1
      %p69 = por %p67, %p68
      %p71 = scmp.ne.s32.totalorder %s56, %s70
      %p72 = scmp.eq.s32.totalorder %s25, 0
      %p73 = por %p71, %p72
      %s75 = sadd.s32 %s74, 1
      %p78 = scmp.eq.s32.totalorder %s19, 1
      %p79 = scmp.ne.s32.totalorder %s74, %s76
      %p80 = scmp.eq.s32.totalorder %s19, 0
      %p81 = por %p79, %p80
      %p82 = scmp.ne.s32.totalorder %s74, %s76
      %p83 = scmp.eq.s32.totalorder %s24, 1
      %p84 = por %p82, %p83
      %p85 = scmp.ne.s32.totalorder %s76, %s77
      %p86 = scmp.eq.s32.totalorder %s24, 0
      %p87 = por %p85, %p86
      %p88 = scmp.ne.s32.totalorder %s76, %s77
      %p89 = scmp.eq.s32.totalorder %s25, 1
      %p90 = por %p88, %p89
      %p92 = scmp.ne.s32.totalorder %s77, %s91
      %p93 = scmp.eq.s32.totalorder %s25, 0
      %p94 = por %p92, %p93
      %s96 = sadd.s32 %s95, 1
      %p99 = scmp.eq.s32.totalorder %s19, 1
      %p100 = scmp.ne.s32.totalorder %s95, %s97
      %p101 = scmp.eq.s32.totalorder %s19, 0
      %p102 = por %p100, %p101
      %p103 = scmp.ne.s32.totalorder %s95, %s97
      %p104 = scmp.eq.s32.totalorder %s24, 1
      %p105 = por %p103, %p104
      %p106 = scmp.ne.s32.totalorder %s97, %s98
      %p107 = scmp.eq.s32.totalorder %s24, 0
      %p108 = por %p106, %p107
      %p109 = scmp.ne.s32.totalorder %s97, %s98
      %p110 = scmp.eq.s32.totalorder %s25, 1
      %p111 = por %p109, %p110
      %p113 = scmp.ne.s32.totalorder %s98, %s112
      %p114 = scmp.eq.s32.totalorder %s25, 0
      %p115 = por %p113, %p114
      %s117 = sadd.s32 %s116, 1
      %p120 = scmp.eq.s32.totalorder %s19, 1
      %p121 = scmp.ne.s32.totalorder %s116, %s118
      %p122 = scmp.eq.s32.totalorder %s19, 0
      %p123 = por %p121, %p122
      %p124 = scmp.ne.s32.totalorder %s116, %s118
      %p125 = scmp.eq.s32.totalorder %s24, 1
      %p126 = por %p124, %p125
      %p127 = scmp.ne.s32.totalorder %s118, %s119
      %p128 = scmp.eq.s32.totalorder %s24, 0
      %p129 = por %p127, %p128
      %p130 = scmp.ne.s32.totalorder %s118, %s119
      %p131 = scmp.eq.s32.totalorder %s25, 1
      %p132 = por %p130, %p131
      %p134 = scmp.ne.s32.totalorder %s119, %s133
      %p135 = scmp.eq.s32.totalorder %s25, 0
      %p136 = por %p134, %p135
      %s138 = sadd.s32 %s137, 1
      %p141 = scmp.eq.s32.totalorder %s19, 1
      %p142 = scmp.ne.s32.totalorder %s137, %s139
      %p143 = scmp.eq.s32.totalorder %s19, 0
      %p144 = por %p142, %p143
      %p145 = scmp.ne.s32.totalorder %s137, %s139
      %p146 = scmp.eq.s32.totalorder %s24, 1
      %p147 = por %p145, %p146
      %p148 = scmp.ne.s32.totalorder %s139, %s140
      %p149 = scmp.eq.s32.totalorder %s24, 0
      %p150 = por %p148, %p149
      %p151 = scmp.ne.s32.totalorder %s139, %s140
      %p152 = scmp.eq.s32.totalorder %s25, 1
      %p153 = por %p151, %p152
      %p155 = scmp.ne.s32.totalorder %s140, %s154
      %p156 = scmp.eq.s32.totalorder %s25, 0
      %p157 = por %p155, %p156
      %s159 = sadd.s32 %s158, 1
      %p162 = scmp.eq.s32.totalorder %s19, 1
      %p163 = scmp.ne.s32.totalorder %s158, %s160
      %p164 = scmp.eq.s32.totalorder %s19, 0
      %p165 = por %p163, %p164
      %p166 = scmp.ne.s32.totalorder %s158, %s160
      %p167 = scmp.eq.s32.totalorder %s24, 1
      %p168 = por %p166, %p167
      %p169 = scmp.ne.s32.totalorder %s160, %s161
      %p170 = scmp.eq.s32.totalorder %s24, 0
      %p171 = por %p169, %p170
      %p172 = scmp.ne.s32.totalorder %s160, %s161
      %p173 = scmp.eq.s32.totalorder %s25, 1
      %p174 = por %p172, %p173
      %p176 = scmp.ne.s32.totalorder %s161, %s175
      %p177 = scmp.eq.s32.totalorder %s25, 0
      %p178 = por %p176, %p177
      %s180 = sadd.s32 %s179, 1
      %p183 = scmp.eq.s32.totalorder %s19, 1
      %p184 = scmp.ne.s32.totalorder %s179, %s181
      %p185 = scmp.eq.s32.totalorder %s19, 0
      %p186 = por %p184, %p185
      %p187 = scmp.ne.s32.totalorder %s179, %s181
      %p188 = scmp.eq.s32.totalorder %s24, 1
      %p189 = por %p187, %p188
      %p190 = scmp.ne.s32.totalorder %s181, %s182
      %p191 = scmp.eq.s32.totalorder %s24, 0
      %p192 = por %p190, %p191
      %p193 = scmp.ne.s32.totalorder %s181, %s182
      %p194 = scmp.eq.s32.totalorder %s25, 1
      %p195 = por %p193, %p194
      %p197 = scmp.ne.s32.totalorder %s182, %s196
      %p198 = scmp.eq.s32.totalorder %s25, 0
      %p199 = por %p197, %p198
      %s201 = sadd.s32 %s200, 1
      %p204 = scmp.eq.s32.totalorder %s19, 1
      %p205 = scmp.ne.s32.totalorder %s200, %s202
      %p206 = scmp.eq.s32.totalorder %s19, 0
      %p207 = por %p205, %p206
      %p208 = scmp.ne.s32.totalorder %s200, %s202
      %p209 = scmp.eq.s32.totalorder %s24, 1
      %p210 = por %p208, %p209
      %p211 = scmp.ne.s32.totalorder %s202, %s203
      %p212 = scmp.eq.s32.totalorder %s24, 0
      %p213 = por %p211, %p212
      %p214 = scmp.ne.s32.totalorder %s202, %s203
      %p215 = scmp.eq.s32.totalorder %s25, 1
      %p216 = por %p214, %p215
      %p218 = scmp.ne.s32.totalorder %s203, %s217
      %p219 = scmp.eq.s32.totalorder %s25, 0
      %p220 = por %p218, %p219
      %s222 = sadd.s32 %s221, 1
      %p225 = scmp.eq.s32.totalorder %s19, 1
      %p226 = scmp.ne.s32.totalorder %s221, %s223
      %p227 = scmp.eq.s32.totalorder %s19, 0
      %p228 = por %p226, %p227
      %p229 = scmp.ne.s32.totalorder %s221, %s223
      %p230 = scmp.eq.s32.totalorder %s24, 1
      %p231 = por %p229, %p230
      %p232 = scmp.ne.s32.totalorder %s223, %s224
      %p233 = scmp.eq.s32.totalorder %s24, 0
      %p234 = por %p232, %p233
      %p235 = scmp.ne.s32.totalorder %s223, %s224
      %p236 = scmp.eq.s32.totalorder %s25, 1
      %p237 = por %p235, %p236
      %p239 = scmp.ne.s32.totalorder %s224, %s238
      %p240 = scmp.eq.s32.totalorder %s25, 0
      %p241 = por %p239, %p240
      %s243 = sadd.s32 %s242, 1
      %p246 = scmp.eq.s32.totalorder %s19, 1
      %p247 = scmp.ne.s32.totalorder %s242, %s244
      %p248 = scmp.eq.s32.totalorder %s19, 0
      %p249 = por %p247, %p248
      %p250 = scmp.ne.s32.totalorder %s242, %s244
      %p251 = scmp.eq.s32.totalorder %s24, 1
      %p252 = por %p250, %p251
      %p253 = scmp.ne.s32.totalorder %s244, %s245
      %p254 = scmp.eq.s32.totalorder %s24, 0
      %p255 = por %p253, %p254
      %p256 = scmp.ne.s32.totalorder %s244, %s245
      %p257 = scmp.eq.s32.totalorder %s25, 1
      %p258 = por %p256, %p257
      %p260 = scmp.ne.s32.totalorder %s245, %s259
      %p261 = scmp.eq.s32.totalorder %s25, 0
      %p262 = por %p260, %p261
      %s264 = sadd.s32 %s263, 1
      %p267 = scmp.eq.s32.totalorder %s19, 1
      %p268 = scmp.ne.s32.totalorder %s263, %s265
      %p269 = scmp.eq.s32.totalorder %s19, 0
      %p270 = por %p268, %p269
      %p271 = scmp.ne.s32.totalorder %s263, %s265
      %p272 = scmp.eq.s32.totalorder %s24, 1
      %p273 = por %p271, %p272
      %p274 = scmp.ne.s32.totalorder %s265, %s266
      %p275 = scmp.eq.s32.totalorder %s24, 0
      %p276 = por %p274, %p275
      %p277 = scmp.ne.s32.totalorder %s265, %s266
      %p278 = scmp.eq.s32.totalorder %s25, 1
      %p279 = por %p277, %p278
      %p281 = scmp.ne.s32.totalorder %s266, %s280
      %p282 = scmp.eq.s32.totalorder %s25, 0
      %p283 = por %p281, %p282
      %s285 = sadd.s32 %s284, 1
      %p288 = scmp.eq.s32.totalorder %s19, 1
      %p289 = scmp.ne.s32.totalorder %s284, %s286
      %p290 = scmp.eq.s32.totalorder %s19, 0
      %p291 = por %p289, %p290
      %p292 = scmp.ne.s32.totalorder %s284, %s286
      %p293 = scmp.eq.s32.totalorder %s24, 1
      %p294 = por %p292, %p293
      %p295 = scmp.ne.s32.totalorder %s286, %s287
      %p296 = scmp.eq.s32.totalorder %s24, 0
      %p297 = por %p295, %p296
      %p298 = scmp.ne.s32.totalorder %s286, %s287
      %p299 = scmp.eq.s32.totalorder %s25, 1
      %p300 = por %p298, %p299
      %p302 = scmp.ne.s32.totalorder %s287, %s301
      %p303 = scmp.eq.s32.totalorder %s25, 0
      %p304 = por %p302, %p303
      %s305 = ssub.s32 %s19, %s26
      %p306 = scmp.eq.s32.totalorder %s305, 0
      %s308 = sadd.s32 %s307, 1
      %s309 = scalar_select %p306, %s307, %s308
      %p312 = pneg %p306
      %p313 = scmp.eq.s32.totalorder %s19, 1
      %p314 = por %p312, %p313
      %p315 = scmp.ne.s32.totalorder %s307, %s310
      %p316 = scmp.eq.s32.totalorder %s19, 0
      %p317 = por %p315, %p316
      %p318 = scmp.ne.s32.totalorder %s307, %s310
      %p319 = scmp.eq.s32.totalorder %s24, 1
      %p320 = por %p318, %p319
      %p321 = scmp.ne.s32.totalorder %s310, %s311
      %p322 = scmp.eq.s32.totalorder %s24, 0
      %p323 = por %p321, %p322
      %p324 = scmp.ne.s32.totalorder %s310, %s311
      %p325 = scmp.eq.s32.totalorder %s25, 1
      %p326 = por %p324, %p325
      %p328 = scmp.ne.s32.totalorder %s311, %s327
      %p329 = scmp.eq.s32.totalorder %s25, 0
      %p330 = por %p328, %p329
      %p331 = scmp.le.s32.totalorder 1, %s19
      %p332 = scmp.lt.s32.totalorder %s19, 3
      %p333 = pnand %p331, %p332
      %p334 = pneg %p333
      // Predicated region
      $region9: #{pnet_pallas.1} parent=5 // pred_check
        _
      $region10: #{pnet_pallas.1} parent=5 // pred_check_branch
        %336 = sbr.rel (%p333) target = $region12
      $region11: #{pnet_pallas.1} parent=5 // pred_region
        %s337 = ssub.s32 %s19, 1
        // Predicated region
        $region13: #{pnet_pallas.1} parent=11 // pred_check
          %p338 = pneg %p66
        $region14: #{pnet_pallas.1} parent=11 // pred_check_branch
          %340 = sbr.rel (%p338) target = $region16
        $region15: #{pnet_pallas.1} parent=11 // pred_region
          _
        $region16: #{pnet_pallas.1} parent=11 // pred_fallthru
          _
        // Predicated region
        $region17: #{pnet_pallas.1} parent=11 // pred_check
          %p341 = pneg %p87
        $region18: #{pnet_pallas.1} parent=11 // pred_check_branch
          %343 = sbr.rel (%p341) target = $region20
        $region19: #{pnet_pallas.1} parent=11 // pred_region
          _
        $region20: #{pnet_pallas.1} parent=11 // pred_fallthru
          _
        // Predicated region
        $region21: #{pnet_pallas.1} parent=11 // pred_check
          %p344 = pneg %p108
        $region22: #{pnet_pallas.1} parent=11 // pred_check_branch
          %346 = sbr.rel (%p344) target = $region24
        $region23: #{pnet_pallas.1} parent=11 // pred_region
          _
        $region24: #{pnet_pallas.1} parent=11 // pred_fallthru
          _
        // Predicated region
        $region25: #{pnet_pallas.1} parent=11 // pred_check
          %p347 = pneg %p129
        $region26: #{pnet_pallas.1} parent=11 // pred_check_branch
          %349 = sbr.rel (%p347) target = $region28
        $region27: #{pnet_pallas.1} parent=11 // pred_region
          _
        $region28: #{pnet_pallas.1} parent=11 // pred_fallthru
          _
        // Predicated region
        $region29: #{pnet_pallas.1} parent=11 // pred_check
          %p350 = pneg %p150
        $region30: #{pnet_pallas.1} parent=11 // pred_check_branch
          %352 = sbr.rel (%p350) target = $region32
        $region31: #{pnet_pallas.1} parent=11 // pred_region
          _
        $region32: #{pnet_pallas.1} parent=11 // pred_fallthru
          _
        // Predicated region
        $region33: #{pnet_pallas.1} parent=11 // pred_check
          %p353 = pneg %p171
        $region34: #{pnet_pallas.1} parent=11 // pred_check_branch
          %355 = sbr.rel (%p353) target = $region36
        $region35: #{pnet_pallas.1} parent=11 // pred_region
          _
        $region36: #{pnet_pallas.1} parent=11 // pred_fallthru
          _
        // Predicated region
        $region37: #{pnet_pallas.1} parent=11 // pred_check
          %p356 = pneg %p192
        $region38: #{pnet_pallas.1} parent=11 // pred_check_branch
          %358 = sbr.rel (%p356) target = $region40
        $region39: #{pnet_pallas.1} parent=11 // pred_region
          _
        $region40: #{pnet_pallas.1} parent=11 // pred_fallthru
          _
        // Predicated region
        $region41: #{pnet_pallas.1} parent=11 // pred_check
          %p359 = pneg %p213
        $region42: #{pnet_pallas.1} parent=11 // pred_check_branch
          %361 = sbr.rel (%p359) target = $region44
        $region43: #{pnet_pallas.1} parent=11 // pred_region
          _
        $region44: #{pnet_pallas.1} parent=11 // pred_fallthru
          _
        // Predicated region
        $region45: #{pnet_pallas.1} parent=11 // pred_check
          %p362 = pneg %p234
        $region46: #{pnet_pallas.1} parent=11 // pred_check_branch
          %364 = sbr.rel (%p362) target = $region48
        $region47: #{pnet_pallas.1} parent=11 // pred_region
          _
        $region48: #{pnet_pallas.1} parent=11 // pred_fallthru
          _
        // Predicated region
        $region49: #{pnet_pallas.1} parent=11 // pred_check
          %p365 = pneg %p255
        $region50: #{pnet_pallas.1} parent=11 // pred_check_branch
          %367 = sbr.rel (%p365) target = $region52
        $region51: #{pnet_pallas.1} parent=11 // pred_region
          _
        $region52: #{pnet_pallas.1} parent=11 // pred_fallthru
          _
        // Predicated region
        $region53: #{pnet_pallas.1} parent=11 // pred_check
          %p368 = pneg %p276
        $region54: #{pnet_pallas.1} parent=11 // pred_check_branch
          %370 = sbr.rel (%p368) target = $region56
        $region55: #{pnet_pallas.1} parent=11 // pred_region
          _
        $region56: #{pnet_pallas.1} parent=11 // pred_fallthru
          _
        // Predicated region
        $region57: #{pnet_pallas.1} parent=11 // pred_check
          %p371 = pneg %p297
        $region58: #{pnet_pallas.1} parent=11 // pred_check_branch
          %373 = sbr.rel (%p371) target = $region60
        $region59: #{pnet_pallas.1} parent=11 // pred_region
          _
        $region60: #{pnet_pallas.1} parent=11 // pred_fallthru
          _
      $region12: #{pnet_pallas.1} parent=5 // pred_fallthru
        _
      %p374 = scmp.lt.s32.totalorder %s19, 2
      // Predicated region
      $region61: #{pnet_pallas.1} parent=5 // pred_check
        %p375 = pneg %p374
      $region62: #{pnet_pallas.1} parent=5 // pred_check_branch
        %377 = sbr.rel (%p375) target = $region64
      $region63: #{pnet_pallas.1} parent=5 // pred_region
        // Predicated region
        $region65: #{pnet_pallas.1} parent=63 // pred_check
          %p378 = pneg %p39
        $region66: #{pnet_pallas.1} parent=63 // pred_check_branch
          %380 = sbr.rel (%p378) target = $region68
        $region67: #{pnet_pallas.1} parent=63 // pred_region
          %s381 = sand.u32 %s29, 1
          %s382 = sand.u32 %s29, 1
          %s383 = smul.addr %s382, 160
          %s384 = scalar_lea.vmem [#allocation2], %s383
          %s385 = smul.addr %s19, 2
          %s386 = smul.addr %s385, 8
          %s387 = scalar_lea.vmem %s0, %s386
          // Predicated region
          $region69: #{pnet_pallas.1} parent=67 // pred_check
            _
          $region70: #{pnet_pallas.1} parent=67 // pred_check_branch
            %389 = sbr.rel (0) target = $region72
          $region71: #{pnet_pallas.1} parent=67 // pred_region
            // Predicated region
            $region73: #{pnet_pallas.1} parent=71 // pred_check
              _
            $region74: #{pnet_pallas.1} parent=71 // pred_check_branch
              %391 = sbr.rel (0) target = $region76
            $region75: #{pnet_pallas.1} parent=71 // pred_region
              loop: start=0, step=1, limit=1
              $region77: #{pnet_pallas.1} parent=75 // loop_pre_header
                _
              $region78: #{pnet_pallas.1} parent=75 // loop_header
                %s393 = sphi 0, %s397
                %p394 = scmp.ge.s32.totalorder %s393, 1
                %s398 = sphi %s387, %s387
                %s399 = sphi %s384, %s384
              $region79: #{pnet_pallas.1} parent=75 // loop_header_branch
                %396 = sbr.rel (%p394) target = $region83
              $region80: #{pnet_pallas.1} parent=75 // loop_body
                %v400 = vld [vmem:[%s398] sm:$0xff]
                %401 = vst [vmem:[%s399] sm:$0xff] %v400
                %v402 = vld [vmem:[%s398 + $0x8] sm:$0xff]
                %403 = vst [vmem:[%s399 + $0x8] sm:$0xff] %v402
                %v404 = vld [vmem:[%s398 + $0x20] sm:$0xff]
                %405 = vst [vmem:[%s399 + $0x10] sm:$0xff] %v404
                %v406 = vld [vmem:[%s398 + $0x28] sm:$0xff]
                %407 = vst [vmem:[%s399 + $0x18] sm:$0xff] %v406
                %v408 = vld [vmem:[%s398 + $0x40] sm:$0xff]
                %409 = vst [vmem:[%s399 + $0x20] sm:$0xff] %v408
                %v410 = vld [vmem:[%s398 + $0x48] sm:$0xff]
                %411 = vst [vmem:[%s399 + $0x28] sm:$0xff] %v410
                %v412 = vld [vmem:[%s398 + $0x60] sm:$0xff]
                %413 = vst [vmem:[%s399 + $0x30] sm:$0xff] %v412
                %v414 = vld [vmem:[%s398 + $0x68] sm:$0xff]
                %415 = vst [vmem:[%s399 + $0x38] sm:$0xff] %v414
                %v416 = vld [vmem:[%s398 + $0x80] sm:$0xff]
                %417 = vst [vmem:[%s399 + $0x40] sm:$0xff] %v416
                %v418 = vld [vmem:[%s398 + $0x88] sm:$0xff]
                %419 = vst [vmem:[%s399 + $0x48] sm:$0xff] %v418
                %v420 = vld [vmem:[%s398 + $0xa0] sm:$0xff]
                %421 = vst [vmem:[%s399 + $0x50] sm:$0xff] %v420
                %v422 = vld [vmem:[%s398 + $0xa8] sm:$0xff]
                %423 = vst [vmem:[%s399 + $0x58] sm:$0xff] %v422
                %v424 = vld [vmem:[%s398 + $0xc0] sm:$0xff]
                %425 = vst [vmem:[%s399 + $0x60] sm:$0xff] %v424
                %v426 = vld [vmem:[%s398 + $0xc8] sm:$0xff]
                %427 = vst [vmem:[%s399 + $0x68] sm:$0xff] %v426
                %v428 = vld [vmem:[%s398 + $0xe0] sm:$0xff]
                %429 = vst [vmem:[%s399 + $0x70] sm:$0xff] %v428
                %v430 = vld [vmem:[%s398 + $0xe8] sm:$0xff]
                %431 = vst [vmem:[%s399 + $0x78] sm:$0xff] %v430
                %v432 = vld [vmem:[%s398 + $0x100] sm:$0xff]
                %433 = vst [vmem:[%s399 + $0x80] sm:$0xff] %v432
                %v434 = vld [vmem:[%s398 + $0x108] sm:$0xff]
                %435 = vst [vmem:[%s399 + $0x88] sm:$0xff] %v434
                %v436 = vld [vmem:[%s398 + $0x120] sm:$0xff]
                %437 = vst [vmem:[%s399 + $0x90] sm:$0xff] %v436
                %v438 = vld [vmem:[%s398 + $0x128] sm:$0xff]
                %439 = vst [vmem:[%s399 + $0x98] sm:$0xff] %v438
              $region81: #{pnet_pallas.1} parent=75 // loop_footer
                %s397 = sadd.s32 1, %s393
              $region82: #{pnet_pallas.1} parent=75 // loop_footer_branch
                %392 = sbr.rel target = $region78
              $region83: #{pnet_pallas.1} parent=75 // loop_exit
                _
            $region76: #{pnet_pallas.1} parent=71 // pred_fallthru
              _
            // Predicated region
            $region84: #{pnet_pallas.1} parent=71 // pred_check
              _
            $region85: #{pnet_pallas.1} parent=71 // pred_check_branch
              %441 = sbr.rel target = $region87
            $region86: #{pnet_pallas.1} parent=71 // pred_region
              _
            $region87: #{pnet_pallas.1} parent=71 // pred_fallthru
              _
          $region72: #{pnet_pallas.1} parent=67 // pred_fallthru
            _
          %442 = vnop
        $region68: #{pnet_pallas.1} parent=63 // pred_fallthru
          _
      $region64: #{pnet_pallas.1} parent=5 // pred_fallthru
        _
      %p443 = scmp.le.s32.totalorder 1, %s19
      %p444 = scmp.lt.s32.totalorder %s19, 3
      %p445 = pnand %p443, %p444
      %p446 = pneg %p445
      // Predicated region
      $region88: #{pnet_pallas.1} parent=5 // pred_check
        _
      $region89: #{pnet_pallas.1} parent=5 // pred_check_branch
        %448 = sbr.rel (%p445) target = $region91
      $region90: #{pnet_pallas.1} parent=5 // pred_region
        %s449 = ssub.s32 %s19, 1
        %s450 = sand.u32 %s32, 1
        %s451 = sand.u32 %s32, 1
        %s452 = smul.addr %s451, 160
        %s453 = scalar_lea.vmem [#allocation2], %s452
        // Predicated region
        $region92: #{pnet_pallas.1} parent=90 // pred_check
          %p454 = pneg %p45
        $region93: #{pnet_pallas.1} parent=90 // pred_check_branch
          %456 = sbr.rel (%p454) target = $region95
        $region94: #{pnet_pallas.1} parent=90 // pred_region
          _
        $region95: #{pnet_pallas.1} parent=90 // pred_fallthru
          _
        %s457 = sand.u32 %s32, 1
        %s458 = sand.u32 %s32, 1
        %s459 = smul.addr %s458, 160
        %s460 = scalar_lea.vmem [#allocation2], %s459
        %p461 = pneg %p45
        %p462 = pneg %p42
        %p463 = pneg %p66
        %p464 = pneg %p63
        %p465 = pneg %p87
        %p466 = pneg %p84
        %p467 = pneg %p108
        %p468 = pneg %p105
        %p469 = pneg %p129
        %p470 = pneg %p126
        %p471 = pneg %p150
        %p472 = pneg %p147
        %p473 = pneg %p171
        %p474 = pneg %p168
        %p475 = pneg %p192
        %p476 = pneg %p189
        %p477 = pneg %p213
        %p478 = pneg %p210
        %p479 = pneg %p234
        %p480 = pneg %p231
        %p481 = pneg %p255
        %p482 = pneg %p252
        %p483 = pneg %p276
        %p484 = pneg %p273
        %p485 = pneg %p297
        %p486 = pneg %p294
        %p487 = pneg %p323
        %p488 = pneg %p320
        %p489 = scmp.lt.s32.totalorder %s24, 1
        %s490 = scalar_select %p489, %s24, 1
        %s491 = smul.addr %s490, 8
        %s492 = scalar_lea.vmem %s13, %s491
        %p493 = scmp.lt.s32.totalorder %s24, 1
        %s494 = scalar_select %p493, %s24, 1
        %s495 = smul.addr %s494, 8
        %s496 = scalar_lea.vmem %s13, %s495
        %v497 = vld [vmem:[%s2] sm:$0x7]
        %v498 = vld [vmem:[%s3] sm:$0x7]
        %v499 = vld [vmem:[%s5] sm:$0x7]
        %v500 = vld [vmem:[%s6] sm:$0x7]
        %v501 = vld [vmem:[%s453] sm:$0xff]
        %v502 = vld [vmem:[%s453 + $0x8] sm:$0xff]
        %v503 = vld [vmem:[%s1] sm:$0xff]
        %v504 = vld [vmem:[%s1 + $0x8] sm:$0xff]
        %v505 = vld [vmem:[%s1 + $0x10] sm:$0xff]
        %v506 = vld [vmem:[%s1 + $0x18] sm:$0xff]
        %v507 = vld [vmem:[%s1 + $0x20] sm:$0xff]
        %v508 = vld [vmem:[%s1 + $0x28] sm:$0xff]
        %v509 = vld [vmem:[%s1 + $0x30] sm:$0xff]
        %v510 = vld [vmem:[%s1 + $0x38] sm:$0xff]
        %v511 = vld [vmem:[%s1 + $0x40] sm:$0xff]
        %v512 = vld [vmem:[%s1 + $0x48] sm:$0xff]
        %v513 = vld [vmem:[%s1 + $0x50] sm:$0xff]
        %v514 = vld [vmem:[%s1 + $0x58] sm:$0xff]
        %v515 = vld [vmem:[%s1 + $0x60] sm:$0xff]
        %v516 = vld [vmem:[%s1 + $0x68] sm:$0xff]
        %v517 = vld [vmem:[%s1 + $0x70] sm:$0xff]
        %v518 = vld [vmem:[%s1 + $0x78] sm:$0xff]
        %v519 = vld [vmem:[%s1 + $0x80] sm:$0xff]
        %v520 = vld [vmem:[%s1 + $0x88] sm:$0xff]
        %v521 = vld [vmem:[%s1 + $0x90] sm:$0xff]
        %v522 = vld [vmem:[%s1 + $0x98] sm:$0xff]
        %v523 = vld [vmem:[%s1 + $0xa0] sm:$0xff]
        %v524 = vld [vmem:[%s1 + $0xa8] sm:$0xff]
        %v525 = vld [vmem:[%s1 + $0xb0] sm:$0xff]
        %v526 = vld [vmem:[%s1 + $0xb8] sm:$0xff]
        %v527 = vld [vmem:[%s1 + $0xc0] sm:$0xff]
        %v528 = vld [vmem:[%s1 + $0xc8] sm:$0xff]
        %v529 = vld [vmem:[%s1 + $0xd0] sm:$0xff]
        %v530 = vld [vmem:[%s1 + $0xd8] sm:$0xff]
        %v531 = vld [vmem:[%s1 + $0xe0] sm:$0xff]
        %v532 = vld [vmem:[%s1 + $0xe8] sm:$0xff]
        %v533 = vld [vmem:[%s1 + $0xf0] sm:$0xff]
        %v534 = vld [vmem:[%s1 + $0xf8] sm:$0xff]
        %v535 = vld [vmem:[%s1 + $0x100] sm:$0xff]
        %v536 = vld [vmem:[%s1 + $0x108] sm:$0xff]
        %v537 = vld [vmem:[%s1 + $0x110] sm:$0xff]
        %v538 = vld [vmem:[%s1 + $0x118] sm:$0xff]
        %v539 = vld [vmem:[%s1 + $0x120] sm:$0xff]
        %v540 = vld [vmem:[%s1 + $0x128] sm:$0xff]
        %v541 = vld [vmem:[%s1 + $0x130] sm:$0xff]
        %v542 = vld [vmem:[%s1 + $0x138] sm:$0xff]
        %v543 = vld [vmem:[%s1 + $0x140] sm:$0xff]
        %v544 = vld [vmem:[%s1 + $0x148] sm:$0xff]
        %v545 = vld [vmem:[%s1 + $0x150] sm:$0xff]
        %v546 = vld [vmem:[%s1 + $0x158] sm:$0xff]
        %v547 = vld [vmem:[%s1 + $0x160] sm:$0xff]
        %v548 = vld [vmem:[%s1 + $0x168] sm:$0xff]
        %v549 = vld [vmem:[%s1 + $0x170] sm:$0xff]
        %v550 = vld [vmem:[%s1 + $0x178] sm:$0xff]
        %v551 = vld [vmem:[%s1 + $0x180] sm:$0xff]
        %v552 = vld [vmem:[%s1 + $0x188] sm:$0xff]
        %v553 = vld [vmem:[%s1 + $0x190] sm:$0xff]
        %v554 = vld [vmem:[%s1 + $0x198] sm:$0xff]
        %v555 = vld [vmem:[%s1 + $0x1a0] sm:$0xff]
        %v556 = vld [vmem:[%s1 + $0x1a8] sm:$0xff]
        %v557 = vld [vmem:[%s1 + $0x1b0] sm:$0xff]
        %v558 = vld [vmem:[%s1 + $0x1b8] sm:$0xff]
        %v559 = vld [vmem:[%s1 + $0x1c0] sm:$0xff]
        %v560 = vld [vmem:[%s1 + $0x1c8] sm:$0xff]
        %v561 = vld [vmem:[%s1 + $0x1d0] sm:$0xff]
        %v562 = vld [vmem:[%s1 + $0x1d8] sm:$0xff]
        %v563 = vld [vmem:[%s1 + $0x1e0] sm:$0xff]
        %v564 = vld [vmem:[%s1 + $0x1e8] sm:$0xff]
        %v565 = vld [vmem:[%s1 + $0x1f0] sm:$0xff]
        %v566 = vld [vmem:[%s1 + $0x1f8] sm:$0xff]
        %v567 = vld [vmem:[%s1 + $0x200] sm:$0xff]
        %v568 = vld [vmem:[%s1 + $0x208] sm:$0xff]
        %v569 = vld [vmem:[%s1 + $0x210] sm:$0xff]
        %v570 = vld [vmem:[%s1 + $0x218] sm:$0xff]
        %v571 = vld [vmem:[%s1 + $0x220] sm:$0xff]
        %v572 = vld [vmem:[%s1 + $0x228] sm:$0xff]
        %v573 = vld [vmem:[%s1 + $0x230] sm:$0xff]
        %v574 = vld [vmem:[%s1 + $0x238] sm:$0xff]
        %v575 = vld [vmem:[%s1 + $0x240] sm:$0xff]
        %v576 = vld [vmem:[%s1 + $0x248] sm:$0xff]
        %v577 = vld [vmem:[%s1 + $0x250] sm:$0xff]
        %v578 = vld [vmem:[%s1 + $0x258] sm:$0xff]
        %v579 = vld [vmem:[%s1 + $0x260] sm:$0xff]
        %v580 = vld [vmem:[%s1 + $0x268] sm:$0xff]
        %v581 = vld [vmem:[%s1 + $0x270] sm:$0xff]
        %v582 = vld [vmem:[%s1 + $0x278] sm:$0xff]
        %v583 = vld [vmem:[%s1 + $0x280] sm:$0xff]
        %vm584 = vcmask 719872
        %v586 = vsel %vm584, %v502, 0
        %588 = vmatprep.subr.mxu0 %v504
        %589 = vmatpush1.msra.mxu0 %v503
        %590 = vmatprep.subr.mxu0 %v507
        %591 = vmatpush1.msra.mxu0 %v506
        %592 = vmatprep.subr.mxu0 %v510
        %593 = vmatpush1.msra.mxu0 %v509
        %594 = vmatprep.subr.mxu0 %v513
        %595 = vmatpush1.msra.mxu0 %v512
        %596 = vmatprep.subr.mxu0 %v516
        %597 = vmatpush1.msra.mxu0 %v515
        %598 = vmatprep.subr.mxu0 %v519
        %599 = vmatpush1.msra.mxu0 %v518
        %600 = vmatprep.subr.mxu0 %v522
        %601 = vmatpush1.msra.mxu0 %v521
        %602 = vmatprep.subr.mxu0 %v525
        %603 = vmatpush1.msra.mxu0 %v524
        %604 = vmatprep.subr.mxu0 %v528
        %605 = vmatpush1.msra.mxu0 %v527
        %606 = vmatprep.subr.mxu0 %v531
        %607 = vmatpush1.msra.mxu0 %v530
        %608 = vmatprep.subr.mxu0 %v534
        %609 = vmatpush1.msra.mxu0 %v533
        %610 = vmatprep.subr.mxu0 %v537
        %611 = vmatpush1.msra.mxu0 %v536
        %612 = vmatprep.subr.mxu0 %v540
        %613 = vmatpush1.msra.mxu0 %v539
        %614 = vmatprep.subr.mxu0 %v543
        %615 = vmatpush1.msra.mxu0 %v542
        %616 = vmatprep.subr.mxu0 %v546
        %617 = vmatpush1.msra.mxu0 %v545
        %618 = vmatprep.subr.mxu0 %v549
        %619 = vmatpush1.msra.mxu0 %v548
        %620 = vmatprep.subr.mxu0 %v552
        %621 = vmatpush1.msra.mxu0 %v551
        %622 = vmatprep.subr.mxu0 %v555
        %623 = vmatpush1.msra.mxu0 %v554
        %624 = vmatprep.subr.mxu0 %v558
        %625 = vmatpush1.msra.mxu0 %v557
        %626 = vmatprep.subr.mxu0 %v561
        %627 = vmatpush1.msra.mxu0 %v560
        %628 = vmatprep.subr.mxu0 %v564
        %629 = vmatpush1.msra.mxu0 %v563
        %630 = vmatprep.subr.mxu0 %v567
        %631 = vmatpush1.msra.mxu0 %v566
        %632 = vmatprep.subr.mxu0 %v570
        %633 = vmatpush1.msra.mxu0 %v569
        %634 = vmatprep.subr.mxu0 %v573
        %635 = vmatpush1.msra.mxu0 %v572
        %636 = vmatprep.subr.mxu0 %v576
        %637 = vmatpush1.msra.mxu0 %v575
        %638 = vmatprep.subr.mxu0 %v579
        %639 = vmatpush1.msra.mxu0 %v578
        %640 = vmatprep.subr.mxu0 %v582
        %641 = vmatpush1.msra.mxu0 %v581
        %642 = vmatprep.subr.mxu0 0.0
        %643 = vmatpush1.msra.mxu0 0.0
        %644 = vmatprep.subr.mxu0 0.0
        %645 = vmatpush1.msra.mxu0 0.0
        %646 = vmatprep.subr.mxu0 0.0
        %647 = vmatpush1.msra.mxu0 0.0
        %648 = vmatprep.subr.mxu0 0.0
        %649 = vmatpush1.msra.mxu0 0.0
        %650 = vmatprep.subr.mxu0 0.0
        %651 = vmatpush1.msra.mxu0 0.0
        %652 = vmatprep.mubr.f32.mxu0 %v586
        %653 = vmatmul.mubr.f32.gmra.mrb[0].mxu0 %v501
        %v654 = vpop.f32.mrb[0].mxu0
        %v655 = vadd.f32 0.0, %v654
        %v656 = vpop.f32.mrb[0].mxu0
        %v657 = vadd.f32 0.0, %v656
        %658 = vdwg.mxu0
        %659 = vmatprep.subr.mxu0 0.0
        %660 = vmatpush1.msra.mxu0 %v505
        %661 = vmatprep.subr.mxu0 0.0
        %662 = vmatpush1.msra.mxu0 %v508
        %663 = vmatprep.subr.mxu0 0.0
        %664 = vmatpush1.msra.mxu0 %v511
        %665 = vmatprep.subr.mxu0 0.0
        %666 = vmatpush1.msra.mxu0 %v514
        %667 = vmatprep.subr.mxu0 0.0
        %668 = vmatpush1.msra.mxu0 %v517
        %669 = vmatprep.subr.mxu0 0.0
        %670 = vmatpush1.msra.mxu0 %v520
        %671 = vmatprep.subr.mxu0 0.0
        %672 = vmatpush1.msra.mxu0 %v523
        %673 = vmatprep.subr.mxu0 0.0
        %674 = vmatpush1.msra.mxu0 %v526
        %675 = vmatprep.subr.mxu0 0.0
        %676 = vmatpush1.msra.mxu0 %v529
        %677 = vmatprep.subr.mxu0 0.0
        %678 = vmatpush1.msra.mxu0 %v532
        %679 = vmatprep.subr.mxu0 0.0
        %680 = vmatpush1.msra.mxu0 %v535
        %681 = vmatprep.subr.mxu0 0.0
        %682 = vmatpush1.msra.mxu0 %v538
        %683 = vmatprep.subr.mxu0 0.0
        %684 = vmatpush1.msra.mxu0 %v541
        %685 = vmatprep.subr.mxu0 0.0
        %686 = vmatpush1.msra.mxu0 %v544
        %687 = vmatprep.subr.mxu0 0.0
        %688 = vmatpush1.msra.mxu0 %v547
        %689 = vmatprep.subr.mxu0 0.0
        %690 = vmatpush1.msra.mxu0 %v550
        %691 = vmatprep.subr.mxu0 0.0
        %692 = vmatpush1.msra.mxu0 %v553
        %693 = vmatprep.subr.mxu0 0.0
        %694 = vmatpush1.msra.mxu0 %v556
        %695 = vmatprep.subr.mxu0 0.0
        %696 = vmatpush1.msra.mxu0 %v559
        %697 = vmatprep.subr.mxu0 0.0
        %698 = vmatpush1.msra.mxu0 %v562
        %699 = vmatprep.subr.mxu0 0.0
        %700 = vmatpush1.msra.mxu0 %v565
        %701 = vmatprep.subr.mxu0 0.0
        %702 = vmatpush1.msra.mxu0 %v568
        %703 = vmatprep.subr.mxu0 0.0
        %704 = vmatpush1.msra.mxu0 %v571
        %705 = vmatprep.subr.mxu0 0.0
        %706 = vmatpush1.msra.mxu0 %v574
        %707 = vmatprep.subr.mxu0 0.0
        %708 = vmatpush1.msra.mxu0 %v577
        %709 = vmatprep.subr.mxu0 0.0
        %710 = vmatpush1.msra.mxu0 %v580
        %711 = vmatprep.subr.mxu0 0.0
        %712 = vmatpush1.msra.mxu0 %v583
        %713 = vmatprep.subr.mxu0 0.0
        %714 = vmatpush1.msra.mxu0 0.0
        %715 = vmatprep.subr.mxu0 0.0
        %716 = vmatpush1.msra.mxu0 0.0
        %717 = vmatprep.subr.mxu0 0.0
        %718 = vmatpush1.msra.mxu0 0.0
        %719 = vmatprep.subr.mxu0 0.0
        %720 = vmatpush1.msra.mxu0 0.0
        %721 = vmatprep.subr.mxu0 0.0
        %722 = vmatpush1.msra.mxu0 0.0
        %723 = vmatprep.mubr.f32.mxu0 %v586
        %724 = vmatmul.mubr.f32.gmra.mrb[0].mxu0 %v501
        %v725 = vpop.f32.mrb[0].mxu0
        %v726 = vadd.f32 0.0, %v725
        %v727 = vpop.f32.mrb[0].mxu0
        %728 = vdwg.mxu0
        %v730 = vlaneseq
        %v731 = vshrl.u32 %v730, 7
        %v732 = vsub.s32 0, %v731
        %v733 = vrot.slane %v497, %v732
        %v734 = vlaneseq
        %v735 = vshrl.u32 %v734, 7
        %v736 = vsub.s32 1, %v735
        %v737 = vrot.slane %v497, %v736
        %v738 = vlaneseq
        %v739 = vshrl.u32 %v738, 7
        %v740 = vsub.s32 2, %v739
        %v741 = vrot.slane %v497, %v740
        %v745 = vmul.f32 %v655, %v733
        %v746 = vmul.f32 %v657, %v737
        %v747 = vmul.f32 %v726, %v741
        %v749 = vlaneseq
        %v750 = vshrl.u32 %v749, 7
        %v751 = vsub.s32 0, %v750
        %v752 = vrot.slane %v498, %v751
        %v753 = vlaneseq
        %v754 = vshrl.u32 %v753, 7
        %v755 = vsub.s32 1, %v754
        %v756 = vrot.slane %v498, %v755
        %v757 = vlaneseq
        %v758 = vshrl.u32 %v757, 7
        %v759 = vsub.s32 2, %v758
        %v760 = vrot.slane %v498, %v759
        %v764 = vadd.f32 %v745, %v752
        %v765 = vadd.f32 %v746, %v756
        %v766 = vadd.f32 %v747, %v760
        %v767 = vmax.f32 %v764, 0.0
        %v768 = vmax.f32 %v765, 0.0
        %v769 = vmax.f32 %v766, 0.0
        %772 = vrot.lane.b32.xlu0 %v768, 96
        %v773 = vpop.permute.xlu0 %772
        %774 = vrot.lane.b32.xlu0 %v769, 96
        %v775 = vpop.permute.xlu0 %774
        %vm776 = vcmask 785408
        %v777 = vsel %vm776, %v773, %v775
        %v780 = vmax.f32 %v767, %v777
        %v781 = vmax.f32 %v768, %v775
        %s782 = scalar_lea.vmem %s453, 16 [#allocation2]
        %v783 = vld [vmem:[%s782] sm:$0xff]
        %v784 = vld [vmem:[%s782 + $0x8] sm:$0xff]
        %v786 = vsel %vm584, %v784, 0
        %788 = vmatprep.subr.mxu0 %v504
        %789 = vmatpush1.msra.mxu0 %v503
        %790 = vmatprep.subr.mxu0 %v507
        %791 = vmatpush1.msra.mxu0 %v506
        %792 = vmatprep.subr.mxu0 %v510
        %793 = vmatpush1.msra.mxu0 %v509
        %794 = vmatprep.subr.mxu0 %v513
        %795 = vmatpush1.msra.mxu0 %v512
        %796 = vmatprep.subr.mxu0 %v516
        %797 = vmatpush1.msra.mxu0 %v515
        %798 = vmatprep.subr.mxu0 %v519
        %799 = vmatpush1.msra.mxu0 %v518
        %800 = vmatprep.subr.mxu0 %v522
        %801 = vmatpush1.msra.mxu0 %v521
        %802 = vmatprep.subr.mxu0 %v525
        %803 = vmatpush1.msra.mxu0 %v524
        %804 = vmatprep.subr.mxu0 %v528
        %805 = vmatpush1.msra.mxu0 %v527
        %806 = vmatprep.subr.mxu0 %v531
        %807 = vmatpush1.msra.mxu0 %v530
        %808 = vmatprep.subr.mxu0 %v534
        %809 = vmatpush1.msra.mxu0 %v533
        %810 = vmatprep.subr.mxu0 %v537
        %811 = vmatpush1.msra.mxu0 %v536
        %812 = vmatprep.subr.mxu0 %v540
        %813 = vmatpush1.msra.mxu0 %v539
        %814 = vmatprep.subr.mxu0 %v543
        %815 = vmatpush1.msra.mxu0 %v542
        %816 = vmatprep.subr.mxu0 %v546
        %817 = vmatpush1.msra.mxu0 %v545
        %818 = vmatprep.subr.mxu0 %v549
        %819 = vmatpush1.msra.mxu0 %v548
        %820 = vmatprep.subr.mxu0 %v552
        %821 = vmatpush1.msra.mxu0 %v551
        %822 = vmatprep.subr.mxu0 %v555
        %823 = vmatpush1.msra.mxu0 %v554
        %824 = vmatprep.subr.mxu0 %v558
        %825 = vmatpush1.msra.mxu0 %v557
        %826 = vmatprep.subr.mxu0 %v561
        %827 = vmatpush1.msra.mxu0 %v560
        %828 = vmatprep.subr.mxu0 %v564
        %829 = vmatpush1.msra.mxu0 %v563
        %830 = vmatprep.subr.mxu0 %v567
        %831 = vmatpush1.msra.mxu0 %v566
        %832 = vmatprep.subr.mxu0 %v570
        %833 = vmatpush1.msra.mxu0 %v569
        %834 = vmatprep.subr.mxu0 %v573
        %835 = vmatpush1.msra.mxu0 %v572
        %836 = vmatprep.subr.mxu0 %v576
        %837 = vmatpush1.msra.mxu0 %v575
        %838 = vmatprep.subr.mxu0 %v579
        %839 = vmatpush1.msra.mxu0 %v578
        %840 = vmatprep.subr.mxu0 %v582
        %841 = vmatpush1.msra.mxu0 %v581
        %842 = vmatprep.subr.mxu0 0.0
        %843 = vmatpush1.msra.mxu0 0.0
        %844 = vmatprep.subr.mxu0 0.0
        %845 = vmatpush1.msra.mxu0 0.0
        %846 = vmatprep.subr.mxu0 0.0
        %847 = vmatpush1.msra.mxu0 0.0
        %848 = vmatprep.subr.mxu0 0.0
        %849 = vmatpush1.msra.mxu0 0.0
        %850 = vmatprep.subr.mxu0 0.0
        %851 = vmatpush1.msra.mxu0 0.0
        %852 = vmatprep.mubr.f32.mxu0 %v786
        %853 = vmatmul.mubr.f32.gmra.mrb[0].mxu0 %v783
        %v854 = vpop.f32.mrb[0].mxu0
        %v855 = vadd.f32 0.0, %v854
        %v856 = vpop.f32.mrb[0].mxu0
        %v857 = vadd.f32 0.0, %v856
        %858 = vdwg.mxu0
        %859 = vmatprep.subr.mxu0 0.0
        %860 = vmatpush1.msra.mxu0 %v505
        %861 = vmatprep.subr.mxu0 0.0
        %862 = vmatpush1.msra.mxu0 %v508
        %863 = vmatprep.subr.mxu0 0.0
        %864 = vmatpush1.msra.mxu0 %v511
        %865 = vmatprep.subr.mxu0 0.0
        %866 = vmatpush1.msra.mxu0 %v514
        %867 = vmatprep.subr.mxu0 0.0
        %868 = vmatpush1.msra.mxu0 %v517
        %869 = vmatprep.subr.mxu0 0.0
        %870 = vmatpush1.msra.mxu0 %v520
        %871 = vmatprep.subr.mxu0 0.0
        %872 = vmatpush1.msra.mxu0 %v523
        %873 = vmatprep.subr.mxu0 0.0
        %874 = vmatpush1.msra.mxu0 %v526
        %875 = vmatprep.subr.mxu0 0.0
        %876 = vmatpush1.msra.mxu0 %v529
        %877 = vmatprep.subr.mxu0 0.0
        %878 = vmatpush1.msra.mxu0 %v532
        %879 = vmatprep.subr.mxu0 0.0
        %880 = vmatpush1.msra.mxu0 %v535
        %881 = vmatprep.subr.mxu0 0.0
        %882 = vmatpush1.msra.mxu0 %v538
        %883 = vmatprep.subr.mxu0 0.0
        %884 = vmatpush1.msra.mxu0 %v541
        %885 = vmatprep.subr.mxu0 0.0
        %886 = vmatpush1.msra.mxu0 %v544
        %887 = vmatprep.subr.mxu0 0.0
        %888 = vmatpush1.msra.mxu0 %v547
        %889 = vmatprep.subr.mxu0 0.0
        %890 = vmatpush1.msra.mxu0 %v550
        %891 = vmatprep.subr.mxu0 0.0
        %892 = vmatpush1.msra.mxu0 %v553
        %893 = vmatprep.subr.mxu0 0.0
        %894 = vmatpush1.msra.mxu0 %v556
        %895 = vmatprep.subr.mxu0 0.0
        %896 = vmatpush1.msra.mxu0 %v559
        %897 = vmatprep.subr.mxu0 0.0
        %898 = vmatpush1.msra.mxu0 %v562
        %899 = vmatprep.subr.mxu0 0.0
        %900 = vmatpush1.msra.mxu0 %v565
        %901 = vmatprep.subr.mxu0 0.0
        %902 = vmatpush1.msra.mxu0 %v568
        %903 = vmatprep.subr.mxu0 0.0
        %904 = vmatpush1.msra.mxu0 %v571
        %905 = vmatprep.subr.mxu0 0.0
        %906 = vmatpush1.msra.mxu0 %v574
        %907 = vmatprep.subr.mxu0 0.0
        %908 = vmatpush1.msra.mxu0 %v577
        %909 = vmatprep.subr.mxu0 0.0
        %910 = vmatpush1.msra.mxu0 %v580
        %911 = vmatprep.subr.mxu0 0.0
        %912 = vmatpush1.msra.mxu0 %v583
        %913 = vmatprep.subr.mxu0 0.0
        %914 = vmatpush1.msra.mxu0 0.0
        %915 = vmatprep.subr.mxu0 0.0
        %916 = vmatpush1.msra.mxu0 0.0
        %917 = vmatprep.subr.mxu0 0.0
        %918 = vmatpush1.msra.mxu0 0.0
        %919 = vmatprep.subr.mxu0 0.0
        %920 = vmatpush1.msra.mxu0 0.0
        %921 = vmatprep.subr.mxu0 0.0
        %922 = vmatpush1.msra.mxu0 0.0
        %923 = vmatprep.mubr.f32.mxu0 %v786
        %924 = vmatmul.mubr.f32.gmra.mrb[0].mxu0 %v783
        %v925 = vpop.f32.mrb[0].mxu0
        %v926 = vadd.f32 0.0, %v925
        %v927 = vpop.f32.mrb[0].mxu0
        %928 = vdwg.mxu0
        %v929 = vmul.f32 %v855, %v733
        %v930 = vmul.f32 %v857, %v737
        %v931 = vmul.f32 %v926, %v741
        %v932 = vadd.f32 %v929, %v752
        %v933 = vadd.f32 %v930, %v756
        %v934 = vadd.f32 %v931, %v760
        %v935 = vmax.f32 %v932, 0.0
        %v936 = vmax.f32 %v933, 0.0
        %v937 = vmax.f32 %v934, 0.0
        %940 = vrot.lane.b32.xlu0 %v936, 96
        %v941 = vpop.permute.xlu0 %940
        %942 = vrot.lane.b32.xlu0 %v937, 96
        %v943 = vpop.permute.xlu0 %942
        %v944 = vsel %vm776, %v941, %v943
        %v947 = vmax.f32 %v935, %v944
        %v948 = vmax.f32 %v936, %v943
        %v949 = vmax.f32 %v780, %v947
        %v950 = vmax.f32 %v781, %v948
        %s951 = scalar_lea.vmem %s453, 32 [#allocation2]
        %v952 = vld [vmem:[%s951] sm:$0xff]
        %v953 = vld [vmem:[%s951 + $0x8] sm:$0xff]
        %v955 = vsel %vm584, %v953, 0
        %957 = vmatprep.subr.mxu0 %v504
        %958 = vmatpush1.msra.mxu0 %v503
        %959 = vmatprep.subr.mxu0 %v507
        %960 = vmatpush1.msra.mxu0 %v506
        %961 = vmatprep.subr.mxu0 %v510
        %962 = vmatpush1.msra.mxu0 %v509
        %963 = vmatprep.subr.mxu0 %v513
        %964 = vmatpush1.msra.mxu0 %v512
        %965 = vmatprep.subr.mxu0 %v516
        %966 = vmatpush1.msra.mxu0 %v515
        %967 = vmatprep.subr.mxu0 %v519
        %968 = vmatpush1.msra.mxu0 %v518
        %969 = vmatprep.subr.mxu0 %v522
        %970 = vmatpush1.msra.mxu0 %v521
        %971 = vmatprep.subr.mxu0 %v525
        %972 = vmatpush1.msra.mxu0 %v524
        %973 = vmatprep.subr.mxu0 %v528
        %974 = vmatpush1.msra.mxu0 %v527
        %975 = vmatprep.subr.mxu0 %v531
        %976 = vmatpush1.msra.mxu0 %v530
        %977 = vmatprep.subr.mxu0 %v534
        %978 = vmatpush1.msra.mxu0 %v533
        %979 = vmatprep.subr.mxu0 %v537
        %980 = vmatpush1.msra.mxu0 %v536
        %981 = vmatprep.subr.mxu0 %v540
        %982 = vmatpush1.msra.mxu0 %v539
        %983 = vmatprep.subr.mxu0 %v543
        %984 = vmatpush1.msra.mxu0 %v542
        %985 = vmatprep.subr.mxu0 %v546
        %986 = vmatpush1.msra.mxu0 %v545
        %987 = vmatprep.subr.mxu0 %v549
        %988 = vmatpush1.msra.mxu0 %v548
        %989 = vmatprep.subr.mxu0 %v552
        %990 = vmatpush1.msra.mxu0 %v551
        %991 = vmatprep.subr.mxu0 %v555
        %992 = vmatpush1.msra.mxu0 %v554
        %993 = vmatprep.subr.mxu0 %v558
        %994 = vmatpush1.msra.mxu0 %v557
        %995 = vmatprep.subr.mxu0 %v561
        %996 = vmatpush1.msra.mxu0 %v560
        %997 = vmatprep.subr.mxu0 %v564
        %998 = vmatpush1.msra.mxu0 %v563
        %999 = vmatprep.subr.mxu0 %v567
        %1000 = vmatpush1.msra.mxu0 %v566
        %1001 = vmatprep.subr.mxu0 %v570
        %1002 = vmatpush1.msra.mxu0 %v569
        %1003 = vmatprep.subr.mxu0 %v573
        %1004 = vmatpush1.msra.mxu0 %v572
        %1005 = vmatprep.subr.mxu0 %v576
        %1006 = vmatpush1.msra.mxu0 %v575
        %1007 = vmatprep.subr.mxu0 %v579
        %1008 = vmatpush1.msra.mxu0 %v578
        %1009 = vmatprep.subr.mxu0 %v582
        %1010 = vmatpush1.msra.mxu0 %v581
        %1011 = vmatprep.subr.mxu0 0.0
        %1012 = vmatpush1.msra.mxu0 0.0
        %1013 = vmatprep.subr.mxu0 0.0
        %1014 = vmatpush1.msra.mxu0 0.0
        %1015 = vmatprep.subr.mxu0 0.0
        %1016 = vmatpush1.msra.mxu0 0.0
        %1017 = vmatprep.subr.mxu0 0.0
        %1018 = vmatpush1.msra.mxu0 0.0
        %1019 = vmatprep.subr.mxu0 0.0
        %1020 = vmatpush1.msra.mxu0 0.0
        %1021 = vmatprep.mubr.f32.mxu0 %v955
        %1022 = vmatmul.mubr.f32.gmra.mrb[0].mxu0 %v952
        %v1023 = vpop.f32.mrb[0].mxu0
        %v1024 = vadd.f32 0.0, %v1023
        %v1025 = vpop.f32.mrb[0].mxu0
        %v1026 = vadd.f32 0.0, %v1025
        %1027 = vdwg.mxu0
        %1028 = vmatprep.subr.mxu0 0.0
        %1029 = vmatpush1.msra.mxu0 %v505
        %1030 = vmatprep.subr.mxu0 0.0
        %1031 = vmatpush1.msra.mxu0 %v508
        %1032 = vmatprep.subr.mxu0 0.0
        %1033 = vmatpush1.msra.mxu0 %v511
        %1034 = vmatprep.subr.mxu0 0.0
        %1035 = vmatpush1.msra.mxu0 %v514
        %1036 = vmatprep.subr.mxu0 0.0
        %1037 = vmatpush1.msra.mxu0 %v517
        %1038 = vmatprep.subr.mxu0 0.0
        %1039 = vmatpush1.msra.mxu0 %v520
        %1040 = vmatprep.subr.mxu0 0.0
        %1041 = vmatpush1.msra.mxu0 %v523
        %1042 = vmatprep.subr.mxu0 0.0
        %1043 = vmatpush1.msra.mxu0 %v526
        %1044 = vmatprep.subr.mxu0 0.0
        %1045 = vmatpush1.msra.mxu0 %v529
        %1046 = vmatprep.subr.mxu0 0.0
        %1047 = vmatpush1.msra.mxu0 %v532
        %1048 = vmatprep.subr.mxu0 0.0
        %1049 = vmatpush1.msra.mxu0 %v535
        %1050 = vmatprep.subr.mxu0 0.0
        %1051 = vmatpush1.msra.mxu0 %v538
        %1052 = vmatprep.subr.mxu0 0.0
        %1053 = vmatpush1.msra.mxu0 %v541
        %1054 = vmatprep.subr.mxu0 0.0
        %1055 = vmatpush1.msra.mxu0 %v544
        %1056 = vmatprep.subr.mxu0 0.0
        %1057 = vmatpush1.msra.mxu0 %v547
        %1058 = vmatprep.subr.mxu0 0.0
        %1059 = vmatpush1.msra.mxu0 %v550
        %1060 = vmatprep.subr.mxu0 0.0
        %1061 = vmatpush1.msra.mxu0 %v553
        %1062 = vmatprep.subr.mxu0 0.0
        %1063 = vmatpush1.msra.mxu0 %v556
        %1064 = vmatprep.subr.mxu0 0.0
        %1065 = vmatpush1.msra.mxu0 %v559
        %1066 = vmatprep.subr.mxu0 0.0
        %1067 = vmatpush1.msra.mxu0 %v562
        %1068 = vmatprep.subr.mxu0 0.0
        %1069 = vmatpush1.msra.mxu0 %v565
        %1070 = vmatprep.subr.mxu0 0.0
        %1071 = vmatpush1.msra.mxu0 %v568
        %1072 = vmatprep.subr.mxu0 0.0
        %1073 = vmatpush1.msra.mxu0 %v571
        %1074 = vmatprep.subr.mxu0 0.0
        %1075 = vmatpush1.msra.mxu0 %v574
        %1076 = vmatprep.subr.mxu0 0.0
        %1077 = vmatpush1.msra.mxu0 %v577
        %1078 = vmatprep.subr.mxu0 0.0
        %1079 = vmatpush1.msra.mxu0 %v580
        %1080 = vmatprep.subr.mxu0 0.0
        %1081 = vmatpush1.msra.mxu0 %v583
        %1082 = vmatprep.subr.mxu0 0.0
        %1083 = vmatpush1.msra.mxu0 0.0
        %1084 = vmatprep.subr.mxu0 0.0
        %1085 = vmatpush1.msra.mxu0 0.0
        %1086 = vmatprep.subr.mxu0 0.0
        %1087 = vmatpush1.msra.mxu0 0.0
        %1088 = vmatprep.subr.mxu0 0.0
        %1089 = vmatpush1.msra.mxu0 0.0
        %1090 = vmatprep.subr.mxu0 0.0
        %1091 = vmatpush1.msra.mxu0 0.0
        %1092 = vmatprep.mubr.f32.mxu0 %v955
        %1093 = vmatmul.mubr.f32.gmra.mrb[0].mxu0 %v952
        %v1094 = vpop.f32.mrb[0].mxu0
        %v1095 = vadd.f32 0.0, %v1094
        %v1096 = vpop.f32.mrb[0].mxu0
        %1097 = vdwg.mxu0
        %v1098 = vmul.f32 %v1024, %v733
        %v1099 = vmul.f32 %v1026, %v737
        %v1100 = vmul.f32 %v1095, %v741
        %v1101 = vadd.f32 %v1098, %v752
        %v1102 = vadd.f32 %v1099, %v756
        %v1103 = vadd.f32 %v1100, %v760
        %v1104 = vmax.f32 %v1101, 0.0
        %v1105 = vmax.f32 %v1102, 0.0
        %v1106 = vmax.f32 %v1103, 0.0
        %1109 = vrot.lane.b32.xlu0 %v1105, 96
        %v1110 = vpop.permute.xlu0 %1109
        %1111 = vrot.lane.b32.xlu0 %v1106, 96
        %v1112 = vpop.permute.xlu0 %1111
        %v1113 = vsel %vm776, %v1110, %v1112
        %v1116 = vmax.f32 %v1104, %v1113
        %v1117 = vmax.f32 %v1105, %v1112
        %s1118 = scalar_lea.vmem %s453, 48 [#allocation2]
        %v1119 = vld [vmem:[%s1118] sm:$0xff]
        %v1120 = vld [vmem:[%s1118 + $0x8] sm:$0xff]
        %v1122 = vsel %vm584, %v1120, 0
        %1124 = vmatprep.subr.mxu0 %v504
        %1125 = vmatpush1.msra.mxu0 %v503
        %1126 = vmatprep.subr.mxu0 %v507
        %1127 = vmatpush1.msra.mxu0 %v506
        %1128 = vmatprep.subr.mxu0 %v510
        %1129 = vmatpush1.msra.mxu0 %v509
        %1130 = vmatprep.subr.mxu0 %v513
        %1131 = vmatpush1.msra.mxu0 %v512
        %1132 = vmatprep.subr.mxu0 %v516
        %1133 = vmatpush1.msra.mxu0 %v515
        %1134 = vmatprep.subr.mxu0 %v519
        %1135 = vmatpush1.msra.mxu0 %v518
        %1136 = vmatprep.subr.mxu0 %v522
        %1137 = vmatpush1.msra.mxu0 %v521
        %1138 = vmatprep.subr.mxu0 %v525
        %1139 = vmatpush1.msra.mxu0 %v524
        %1140 = vmatprep.subr.mxu0 %v528
        %1141 = vmatpush1.msra.mxu0 %v527
        %1142 = vmatprep.subr.mxu0 %v531
        %1143 = vmatpush1.msra.mxu0 %v530
        %1144 = vmatprep.subr.mxu0 %v534
        %1145 = vmatpush1.msra.mxu0 %v533
        %1146 = vmatprep.subr.mxu0 %v537
        %1147 = vmatpush1.msra.mxu0 %v536
        %1148 = vmatprep.subr.mxu0 %v540
        %1149 = vmatpush1.msra.mxu0 %v539
        %1150 = vmatprep.subr.mxu0 %v543
        %1151 = vmatpush1.msra.mxu0 %v542
        %1152 = vmatprep.subr.mxu0 %v546
        %1153 = vmatpush1.msra.mxu0 %v545
        %1154 = vmatprep.subr.mxu0 %v549
        %1155 = vmatpush1.msra.mxu0 %v548
        %1156 = vmatprep.subr.mxu0 %v552
        %1157 = vmatpush1.msra.mxu0 %v551
        %1158 = vmatprep.subr.mxu0 %v555
        %1159 = vmatpush1.msra.mxu0 %v554
        %1160 = vmatprep.subr.mxu0 %v558
        %1161 = vmatpush1.msra.mxu0 %v557
        %1162 = vmatprep.subr.mxu0 %v561
        %1163 = vmatpush1.msra.mxu0 %v560
        %1164 = vmatprep.subr.mxu0 %v564
        %1165 = vmatpush1.msra.mxu0 %v563
        %1166 = vmatprep.subr.mxu0 %v567
        %1167 = vmatpush1.msra.mxu0 %v566
        %1168 = vmatprep.subr.mxu0 %v570
        %1169 = vmatpush1.msra.mxu0 %v569
        %1170 = vmatprep.subr.mxu0 %v573
        %1171 = vmatpush1.msra.mxu0 %v572
        %1172 = vmatprep.subr.mxu0 %v576
        %1173 = vmatpush1.msra.mxu0 %v575
        %1174 = vmatprep.subr.mxu0 %v579
        %1175 = vmatpush1.msra.mxu0 %v578
        %1176 = vmatprep.subr.mxu0 %v582
        %1177 = vmatpush1.msra.mxu0 %v581
        %1178 = vmatprep.subr.mxu0 0.0
        %1179 = vmatpush1.msra.mxu0 0.0
        %1180 = vmatprep.subr.mxu0 0.0
        %1181 = vmatpush1.msra.mxu0 0.0
        %1182 = vmatprep.subr.mxu0 0.0
        %1183 = vmatpush1.msra.mxu0 0.0
        %1184 = vmatprep.subr.mxu0 0.0
        %1185 = vmatpush1.msra.mxu0 0.0
        %1186 = vmatprep.subr.mxu0 0.0
        %1187 = vmatpush1.msra.mxu0 0.0
        %1188 = vmatprep.mubr.f32.mxu0 %v1122
        %1189 = vmatmul.mubr.f32.gmra.mrb[0].mxu0 %v1119
        %v1190 = vpop.f32.mrb[0].mxu0
        %v1191 = vadd.f32 0.0, %v1190
        %v1192 = vpop.f32.mrb[0].mxu0
        %v1193 = vadd.f32 0.0, %v1192
        %1194 = vdwg.mxu0
        %1195 = vmatprep.subr.mxu0 0.0
        %1196 = vmatpush1.msra.mxu0 %v505
        %1197 = vmatprep.subr.mxu0 0.0
        %1198 = vmatpush1.msra.mxu0 %v508
        %1199 = vmatprep.subr.mxu0 0.0
        %1200 = vmatpush1.msra.mxu0 %v511
        %1201 = vmatprep.subr.mxu0 0.0
        %1202 = vmatpush1.msra.mxu0 %v514
        %1203 = vmatprep.subr.mxu0 0.0
        %1204 = vmatpush1.msra.mxu0 %v517
        %1205 = vmatprep.subr.mxu0 0.0
        %1206 = vmatpush1.msra.mxu0 %v520
        %1207 = vmatprep.subr.mxu0 0.0
        %1208 = vmatpush1.msra.mxu0 %v523
        %1209 = vmatprep.subr.mxu0 0.0
        %1210 = vmatpush1.msra.mxu0 %v526
        %1211 = vmatprep.subr.mxu0 0.0
        %1212 = vmatpush1.msra.mxu0 %v529
        %1213 = vmatprep.subr.mxu0 0.0
        %1214 = vmatpush1.msra.mxu0 %v532
        %1215 = vmatprep.subr.mxu0 0.0
        %1216 = vmatpush1.msra.mxu0 %v535
        %1217 = vmatprep.subr.mxu0 0.0
        %1218 = vmatpush1.msra.mxu0 %v538
        %1219 = vmatprep.subr.mxu0 0.0
        %1220 = vmatpush1.msra.mxu0 %v541
        %1221 = vmatprep.subr.mxu0 0.0
        %1222 = vmatpush1.msra.mxu0 %v544
        %1223 = vmatprep.subr.mxu0 0.0
        %1224 = vmatpush1.msra.mxu0 %v547
        %1225 = vmatprep.subr.mxu0 0.0
        %1226 = vmatpush1.msra.mxu0 %v550
        %1227 = vmatprep.subr.mxu0 0.0
        %1228 = vmatpush1.msra.mxu0 %v553
        %1229 = vmatprep.subr.mxu0 0.0
        %1230 = vmatpush1.msra.mxu0 %v556
        %1231 = vmatprep.subr.mxu0 0.0
        %1232 = vmatpush1.msra.mxu0 %v559
        %1233 = vmatprep.subr.mxu0 0.0
        %1234 = vmatpush1.msra.mxu0 %v562
        %1235 = vmatprep.subr.mxu0 0.0
        %1236 = vmatpush1.msra.mxu0 %v565
        %1237 = vmatprep.subr.mxu0 0.0
        %1238 = vmatpush1.msra.mxu0 %v568
        %1239 = vmatprep.subr.mxu0 0.0
        %1240 = vmatpush1.msra.mxu0 %v571
        %1241 = vmatprep.subr.mxu0 0.0
        %1242 = vmatpush1.msra.mxu0 %v574
        %1243 = vmatprep.subr.mxu0 0.0
        %1244 = vmatpush1.msra.mxu0 %v577
        %1245 = vmatprep.subr.mxu0 0.0
        %1246 = vmatpush1.msra.mxu0 %v580
        %1247 = vmatprep.subr.mxu0 0.0
        %1248 = vmatpush1.msra.mxu0 %v583
        %1249 = vmatprep.subr.mxu0 0.0
        %1250 = vmatpush1.msra.mxu0 0.0
        %1251 = vmatprep.subr.mxu0 0.0
        %1252 = vmatpush1.msra.mxu0 0.0
        %1253 = vmatprep.subr.mxu0 0.0
        %1254 = vmatpush1.msra.mxu0 0.0
        %1255 = vmatprep.subr.mxu0 0.0
        %1256 = vmatpush1.msra.mxu0 0.0
        %1257 = vmatprep.subr.mxu0 0.0
        %1258 = vmatpush1.msra.mxu0 0.0
        %1259 = vmatprep.mubr.f32.mxu0 %v1122
        %1260 = vmatmul.mubr.f32.gmra.mrb[0].mxu0 %v1119
        %v1261 = vpop.f32.mrb[0].mxu0
        %v1262 = vadd.f32 0.0, %v1261
        %v1263 = vpop.f32.mrb[0].mxu0
        %1264 = vdwg.mxu0
        %v1265 = vmul.f32 %v1191, %v733
        %v1266 = vmul.f32 %v1193, %v737
        %v1267 = vmul.f32 %v1262, %v741
        %v1268 = vadd.f32 %v1265, %v752
        %v1269 = vadd.f32 %v1266, %v756
        %v1270 = vadd.f32 %v1267, %v760
        %v1271 = vmax.f32 %v1268, 0.0
        %v1272 = vmax.f32 %v1269, 0.0
        %v1273 = vmax.f32 %v1270, 0.0
        %1276 = vrot.lane.b32.xlu0 %v1272, 96
        %v1277 = vpop.permute.xlu0 %1276
        %1278 = vrot.lane.b32.xlu0 %v1273, 96
        %v1279 = vpop.permute.xlu0 %1278
        %v1280 = vsel %vm776, %v1277, %v1279
        %v1283 = vmax.f32 %v1271, %v1280
        %v1284 = vmax.f32 %v1272, %v1279
        %v1285 = vmax.f32 %v1116, %v1283
        %v1286 = vmax.f32 %v1117, %v1284
        %s1287 = scalar_lea.vmem %s453, 64 [#allocation2]
        %v1288 = vld [vmem:[%s1287] sm:$0xff]
        %v1289 = vld [vmem:[%s1287 + $0x8] sm:$0xff]
        %v1291 = vsel %vm584, %v1289, 0
        %1293 = vmatprep.subr.mxu0 %v504
        %1294 = vmatpush1.msra.mxu0 %v503
        %1295 = vmatprep.subr.mxu0 %v507
        %1296 = vmatpush1.msra.mxu0 %v506
        %1297 = vmatprep.subr.mxu0 %v510
        %1298 = vmatpush1.msra.mxu0 %v509
        %1299 = vmatprep.subr.mxu0 %v513
        %1300 = vmatpush1.msra.mxu0 %v512
        %1301 = vmatprep.subr.mxu0 %v516
        %1302 = vmatpush1.msra.mxu0 %v515
        %1303 = vmatprep.subr.mxu0 %v519
        %1304 = vmatpush1.msra.mxu0 %v518
        %1305 = vmatprep.subr.mxu0 %v522
        %1306 = vmatpush1.msra.mxu0 %v521
        %1307 = vmatprep.subr.mxu0 %v525
        %1308 = vmatpush1.msra.mxu0 %v524
        %1309 = vmatprep.subr.mxu0 %v528
        %1310 = vmatpush1.msra.mxu0 %v527
        %1311 = vmatprep.subr.mxu0 %v531
        %1312 = vmatpush1.msra.mxu0 %v530
        %1313 = vmatprep.subr.mxu0 %v534
        %1314 = vmatpush1.msra.mxu0 %v533
        %1315 = vmatprep.subr.mxu0 %v537
        %1316 = vmatpush1.msra.mxu0 %v536
        %1317 = vmatprep.subr.mxu0 %v540
        %1318 = vmatpush1.msra.mxu0 %v539
        %1319 = vmatprep.subr.mxu0 %v543
        %1320 = vmatpush1.msra.mxu0 %v542
        %1321 = vmatprep.subr.mxu0 %v546
        %1322 = vmatpush1.msra.mxu0 %v545
        %1323 = vmatprep.subr.mxu0 %v549
        %1324 = vmatpush1.msra.mxu0 %v548
        %1325 = vmatprep.subr.mxu0 %v552
        %1326 = vmatpush1.msra.mxu0 %v551
        %1327 = vmatprep.subr.mxu0 %v555
        %1328 = vmatpush1.msra.mxu0 %v554
        %1329 = vmatprep.subr.mxu0 %v558
        %1330 = vmatpush1.msra.mxu0 %v557
        %1331 = vmatprep.subr.mxu0 %v561
        %1332 = vmatpush1.msra.mxu0 %v560
        %1333 = vmatprep.subr.mxu0 %v564
        %1334 = vmatpush1.msra.mxu0 %v563
        %1335 = vmatprep.subr.mxu0 %v567
        %1336 = vmatpush1.msra.mxu0 %v566
        %1337 = vmatprep.subr.mxu0 %v570
        %1338 = vmatpush1.msra.mxu0 %v569
        %1339 = vmatprep.subr.mxu0 %v573
        %1340 = vmatpush1.msra.mxu0 %v572
        %1341 = vmatprep.subr.mxu0 %v576
        %1342 = vmatpush1.msra.mxu0 %v575
        %1343 = vmatprep.subr.mxu0 %v579
        %1344 = vmatpush1.msra.mxu0 %v578
        %1345 = vmatprep.subr.mxu0 %v582
        %1346 = vmatpush1.msra.mxu0 %v581
        %1347 = vmatprep.subr.mxu0 0.0
        %1348 = vmatpush1.msra.mxu0 0.0
        %1349 = vmatprep.subr.mxu0 0.0
        %1350 = vmatpush1.msra.mxu0 0.0
        %1351 = vmatprep.subr.mxu0 0.0
        %1352 = vmatpush1.msra.mxu0 0.0
        %1353 = vmatprep.subr.mxu0 0.0
        %1354 = vmatpush1.msra.mxu0 0.0
        %1355 = vmatprep.subr.mxu0 0.0
        %1356 = vmatpush1.msra.mxu0 0.0
        %1357 = vmatprep.mubr.f32.mxu0 %v1291
        %1358 = vmatmul.mubr.f32.gmra.mrb[0].mxu0 %v1288
        %v1359 = vpop.f32.mrb[0].mxu0
        %v1360 = vadd.f32 0.0, %v1359
        %v1361 = vpop.f32.mrb[0].mxu0
        %v1362 = vadd.f32 0.0, %v1361
        %1363 = vdwg.mxu0
        %1364 = vmatprep.subr.mxu0 0.0
        %1365 = vmatpush1.msra.mxu0 %v505
        %1366 = vmatprep.subr.mxu0 0.0
        %1367 = vmatpush1.msra.mxu0 %v508
        %1368 = vmatprep.subr.mxu0 0.0
        %1369 = vmatpush1.msra.mxu0 %v511
        %1370 = vmatprep.subr.mxu0 0.0
        %1371 = vmatpush1.msra.mxu0 %v514
        %1372 = vmatprep.subr.mxu0 0.0
        %1373 = vmatpush1.msra.mxu0 %v517
        %1374 = vmatprep.subr.mxu0 0.0
        %1375 = vmatpush1.msra.mxu0 %v520
        %1376 = vmatprep.subr.mxu0 0.0
        %1377 = vmatpush1.msra.mxu0 %v523
        %1378 = vmatprep.subr.mxu0 0.0
        %1379 = vmatpush1.msra.mxu0 %v526
        %1380 = vmatprep.subr.mxu0 0.0
        %1381 = vmatpush1.msra.mxu0 %v529
        %1382 = vmatprep.subr.mxu0 0.0
        %1383 = vmatpush1.msra.mxu0 %v532
        %1384 = vmatprep.subr.mxu0 0.0
        %1385 = vmatpush1.msra.mxu0 %v535
        %1386 = vmatprep.subr.mxu0 0.0
        %1387 = vmatpush1.msra.mxu0 %v538
        %1388 = vmatprep.subr.mxu0 0.0
        %1389 = vmatpush1.msra.mxu0 %v541
        %1390 = vmatprep.subr.mxu0 0.0
        %1391 = vmatpush1.msra.mxu0 %v544
        %1392 = vmatprep.subr.mxu0 0.0
        %1393 = vmatpush1.msra.mxu0 %v547
        %1394 = vmatprep.subr.mxu0 0.0
        %1395 = vmatpush1.msra.mxu0 %v550
        %1396 = vmatprep.subr.mxu0 0.0
        %1397 = vmatpush1.msra.mxu0 %v553
        %1398 = vmatprep.subr.mxu0 0.0
        %1399 = vmatpush1.msra.mxu0 %v556
        %1400 = vmatprep.subr.mxu0 0.0
        %1401 = vmatpush1.msra.mxu0 %v559
        %1402 = vmatprep.subr.mxu0 0.0
        %1403 = vmatpush1.msra.mxu0 %v562
        %1404 = vmatprep.subr.mxu0 0.0
        %1405 = vmatpush1.msra.mxu0 %v565
        %1406 = vmatprep.subr.mxu0 0.0
        %1407 = vmatpush1.msra.mxu0 %v568
        %1408 = vmatprep.subr.mxu0 0.0
        %1409 = vmatpush1.msra.mxu0 %v571
        %1410 = vmatprep.subr.mxu0 0.0
        %1411 = vmatpush1.msra.mxu0 %v574
        %1412 = vmatprep.subr.mxu0 0.0
        %1413 = vmatpush1.msra.mxu0 %v577
        %1414 = vmatprep.subr.mxu0 0.0
        %1415 = vmatpush1.msra.mxu0 %v580
        %1416 = vmatprep.subr.mxu0 0.0
        %1417 = vmatpush1.msra.mxu0 %v583
        %1418 = vmatprep.subr.mxu0 0.0
        %1419 = vmatpush1.msra.mxu0 0.0
        %1420 = vmatprep.subr.mxu0 0.0
        %1421 = vmatpush1.msra.mxu0 0.0
        %1422 = vmatprep.subr.mxu0 0.0
        %1423 = vmatpush1.msra.mxu0 0.0
        %1424 = vmatprep.subr.mxu0 0.0
        %1425 = vmatpush1.msra.mxu0 0.0
        %1426 = vmatprep.subr.mxu0 0.0
        %1427 = vmatpush1.msra.mxu0 0.0
        %1428 = vmatprep.mubr.f32.mxu0 %v1291
        %1429 = vmatmul.mubr.f32.gmra.mrb[0].mxu0 %v1288
        %v1430 = vpop.f32.mrb[0].mxu0
        %v1431 = vadd.f32 0.0, %v1430
        %v1432 = vpop.f32.mrb[0].mxu0
        %1433 = vdwg.mxu0
        %v1434 = vmul.f32 %v1360, %v733
        %v1435 = vmul.f32 %v1362, %v737
        %v1436 = vmul.f32 %v1431, %v741
        %v1437 = vadd.f32 %v1434, %v752
        %v1438 = vadd.f32 %v1435, %v756
        %v1439 = vadd.f32 %v1436, %v760
        %v1440 = vmax.f32 %v1437, 0.0
        %v1441 = vmax.f32 %v1438, 0.0
        %v1442 = vmax.f32 %v1439, 0.0
        %1445 = vrot.lane.b32.xlu0 %v1441, 96
        %v1446 = vpop.permute.xlu0 %1445
        %1447 = vrot.lane.b32.xlu0 %v1442, 96
        %v1448 = vpop.permute.xlu0 %1447
        %v1449 = vsel %vm776, %v1446, %v1448
        %v1452 = vmax.f32 %v1440, %v1449
        %v1453 = vmax.f32 %v1441, %v1448
        %s1454 = scalar_lea.vmem %s453, 80 [#allocation2]
        %v1455 = vld [vmem:[%s1454] sm:$0xff]
        %v1456 = vld [vmem:[%s1454 + $0x8] sm:$0xff]
        %v1458 = vsel %vm584, %v1456, 0
        %1460 = vmatprep.subr.mxu0 %v504
        %1461 = vmatpush1.msra.mxu0 %v503
        %1462 = vmatprep.subr.mxu0 %v507
        %1463 = vmatpush1.msra.mxu0 %v506
        %1464 = vmatprep.subr.mxu0 %v510
        %1465 = vmatpush1.msra.mxu0 %v509
        %1466 = vmatprep.subr.mxu0 %v513
        %1467 = vmatpush1.msra.mxu0 %v512
        %1468 = vmatprep.subr.mxu0 %v516
        %1469 = vmatpush1.msra.mxu0 %v515
        %1470 = vmatprep.subr.mxu0 %v519
        %1471 = vmatpush1.msra.mxu0 %v518
        %1472 = vmatprep.subr.mxu0 %v522
        %1473 = vmatpush1.msra.mxu0 %v521
        %1474 = vmatprep.subr.mxu0 %v525
        %1475 = vmatpush1.msra.mxu0 %v524
        %1476 = vmatprep.subr.mxu0 %v528
        %1477 = vmatpush1.msra.mxu0 %v527
        %1478 = vmatprep.subr.mxu0 %v531
        %1479 = vmatpush1.msra.mxu0 %v530
        %1480 = vmatprep.subr.mxu0 %v534
        %1481 = vmatpush1.msra.mxu0 %v533
        %1482 = vmatprep.subr.mxu0 %v537
        %1483 = vmatpush1.msra.mxu0 %v536
        %1484 = vmatprep.subr.mxu0 %v540
        %1485 = vmatpush1.msra.mxu0 %v539
        %1486 = vmatprep.subr.mxu0 %v543
        %1487 = vmatpush1.msra.mxu0 %v542
        %1488 = vmatprep.subr.mxu0 %v546
        %1489 = vmatpush1.msra.mxu0 %v545
        %1490 = vmatprep.subr.mxu0 %v549
        %1491 = vmatpush1.msra.mxu0 %v548
        %1492 = vmatprep.subr.mxu0 %v552
        %1493 = vmatpush1.msra.mxu0 %v551
        %1494 = vmatprep.subr.mxu0 %v555
        %1495 = vmatpush1.msra.mxu0 %v554
        %1496 = vmatprep.subr.mxu0 %v558
        %1497 = vmatpush1.msra.mxu0 %v557
        %1498 = vmatprep.subr.mxu0 %v561
        %1499 = vmatpush1.msra.mxu0 %v560
        %1500 = vmatprep.subr.mxu0 %v564
        %1501 = vmatpush1.msra.mxu0 %v563
        %1502 = vmatprep.subr.mxu0 %v567
        %1503 = vmatpush1.msra.mxu0 %v566
        %1504 = vmatprep.subr.mxu0 %v570
        %1505 = vmatpush1.msra.mxu0 %v569
        %1506 = vmatprep.subr.mxu0 %v573
        %1507 = vmatpush1.msra.mxu0 %v572
        %1508 = vmatprep.subr.mxu0 %v576
        %1509 = vmatpush1.msra.mxu0 %v575
        %1510 = vmatprep.subr.mxu0 %v579
        %1511 = vmatpush1.msra.mxu0 %v578
        %1512 = vmatprep.subr.mxu0 %v582
        %1513 = vmatpush1.msra.mxu0 %v581
        %1514 = vmatprep.subr.mxu0 0.0
        %1515 = vmatpush1.msra.mxu0 0.0
        %1516 = vmatprep.subr.mxu0 0.0
        %1517 = vmatpush1.msra.mxu0 0.0
        %1518 = vmatprep.subr.mxu0 0.0
        %1519 = vmatpush1.msra.mxu0 0.0
        %1520 = vmatprep.subr.mxu0 0.0
        %1521 = vmatpush1.msra.mxu0 0.0
        %1522 = vmatprep.subr.mxu0 0.0
        %1523 = vmatpush1.msra.mxu0 0.0
        %1524 = vmatprep.mubr.f32.mxu0 %v1458
        %1525 = vmatmul.mubr.f32.gmra.mrb[0].mxu0 %v1455
        %v1526 = vpop.f32.mrb[0].mxu0
        %v1527 = vadd.f32 0.0, %v1526
        %v1528 = vpop.f32.mrb[0].mxu0
        %v1529 = vadd.f32 0.0, %v1528
        %1530 = vdwg.mxu0
        %1531 = vmatprep.subr.mxu0 0.0
        %1532 = vmatpush1.msra.mxu0 %v505
        %1533 = vmatprep.subr.mxu0 0.0
        %1534 = vmatpush1.msra.mxu0 %v508
        %1535 = vmatprep.subr.mxu0 0.0
        %1536 = vmatpush1.msra.mxu0 %v511
        %1537 = vmatprep.subr.mxu0 0.0
        %1538 = vmatpush1.msra.mxu0 %v514
        %1539 = vmatprep.subr.mxu0 0.0
        %1540 = vmatpush1.msra.mxu0 %v517
        %1541 = vmatprep.subr.mxu0 0.0
        %1542 = vmatpush1.msra.mxu0 %v520
        %1543 = vmatprep.subr.mxu0 0.0
        %1544 = vmatpush1.msra.mxu0 %v523
        %1545 = vmatprep.subr.mxu0 0.0
        %1546 = vmatpush1.msra.mxu0 %v526
        %1547 = vmatprep.subr.mxu0 0.0
        %1548 = vmatpush1.msra.mxu0 %v529
        %1549 = vmatprep.subr.mxu0 0.0
        %1550 = vmatpush1.msra.mxu0 %v532
        %1551 = vmatprep.subr.mxu0 0.0
        %1552 = vmatpush1.msra.mxu0 %v535
        %1553 = vmatprep.subr.mxu0 0.0
        %1554 = vmatpush1.msra.mxu0 %v538
        %1555 = vmatprep.subr.mxu0 0.0
        %1556 = vmatpush1.msra.mxu0 %v541
        %1557 = vmatprep.subr.mxu0 0.0
        %1558 = vmatpush1.msra.mxu0 %v544
        %1559 = vmatprep.subr.mxu0 0.0
        %1560 = vmatpush1.msra.mxu0 %v547
        %1561 = vmatprep.subr.mxu0 0.0
        %1562 = vmatpush1.msra.mxu0 %v550
        %1563 = vmatprep.subr.mxu0 0.0
        %1564 = vmatpush1.msra.mxu0 %v553
        %1565 = vmatprep.subr.mxu0 0.0
        %1566 = vmatpush1.msra.mxu0 %v556
        %1567 = vmatprep.subr.mxu0 0.0
        %1568 = vmatpush1.msra.mxu0 %v559
        %1569 = vmatprep.subr.mxu0 0.0
        %1570 = vmatpush1.msra.mxu0 %v562
        %1571 = vmatprep.subr.mxu0 0.0
        %1572 = vmatpush1.msra.mxu0 %v565
        %1573 = vmatprep.subr.mxu0 0.0
        %1574 = vmatpush1.msra.mxu0 %v568
        %1575 = vmatprep.subr.mxu0 0.0
        %1576 = vmatpush1.msra.mxu0 %v571
        %1577 = vmatprep.subr.mxu0 0.0
        %1578 = vmatpush1.msra.mxu0 %v574
        %1579 = vmatprep.subr.mxu0 0.0
        %1580 = vmatpush1.msra.mxu0 %v577
        %1581 = vmatprep.subr.mxu0 0.0
        %1582 = vmatpush1.msra.mxu0 %v580
        %1583 = vmatprep.subr.mxu0 0.0
        %1584 = vmatpush1.msra.mxu0 %v583
        %1585 = vmatprep.subr.mxu0 0.0
        %1586 = vmatpush1.msra.mxu0 0.0
        %1587 = vmatprep.subr.mxu0 0.0
        %1588 = vmatpush1.msra.mxu0 0.0
        %1589 = vmatprep.subr.mxu0 0.0
        %1590 = vmatpush1.msra.mxu0 0.0
        %1591 = vmatprep.subr.mxu0 0.0
        %1592 = vmatpush1.msra.mxu0 0.0
        %1593 = vmatprep.subr.mxu0 0.0
        %1594 = vmatpush1.msra.mxu0 0.0
        %1595 = vmatprep.mubr.f32.mxu0 %v1458
        %1596 = vmatmul.mubr.f32.gmra.mrb[0].mxu0 %v1455
        %v1597 = vpop.f32.mrb[0].mxu0
        %v1598 = vadd.f32 0.0, %v1597
        %v1599 = vpop.f32.mrb[0].mxu0
        %1600 = vdwg.mxu0
        %v1601 = vmul.f32 %v1527, %v733
        %v1602 = vmul.f32 %v1529, %v737
        %v1603 = vmul.f32 %v1598, %v741
        %v1604 = vadd.f32 %v1601, %v752
        %v1605 = vadd.f32 %v1602, %v756
        %v1606 = vadd.f32 %v1603, %v760
        %v1607 = vmax.f32 %v1604, 0.0
        %v1608 = vmax.f32 %v1605, 0.0
        %v1609 = vmax.f32 %v1606, 0.0
        %1612 = vrot.lane.b32.xlu0 %v1608, 96
        %v1613 = vpop.permute.xlu0 %1612
        %1614 = vrot.lane.b32.xlu0 %v1609, 96
        %v1615 = vpop.permute.xlu0 %1614
        %v1616 = vsel %vm776, %v1613, %v1615
        %v1619 = vmax.f32 %v1607, %v1616
        %v1620 = vmax.f32 %v1608, %v1615
        %v1621 = vmax.f32 %v1452, %v1619
        %v1622 = vmax.f32 %v1453, %v1620
        %s1623 = scalar_lea.vmem %s453, 96 [#allocation2]
        %v1624 = vld [vmem:[%s1623] sm:$0xff]
        %v1625 = vld [vmem:[%s1623 + $0x8] sm:$0xff]
        %v1627 = vsel %vm584, %v1625, 0
        %1629 = vmatprep.subr.mxu0 %v504
        %1630 = vmatpush1.msra.mxu0 %v503
        %1631 = vmatprep.subr.mxu0 %v507
        %1632 = vmatpush1.msra.mxu0 %v506
        %1633 = vmatprep.subr.mxu0 %v510
        %1634 = vmatpush1.msra.mxu0 %v509
        %1635 = vmatprep.subr.mxu0 %v513
        %1636 = vmatpush1.msra.mxu0 %v512
        %1637 = vmatprep.subr.mxu0 %v516
        %1638 = vmatpush1.msra.mxu0 %v515
        %1639 = vmatprep.subr.mxu0 %v519
        %1640 = vmatpush1.msra.mxu0 %v518
        %1641 = vmatprep.subr.mxu0 %v522
        %1642 = vmatpush1.msra.mxu0 %v521
        %1643 = vmatprep.subr.mxu0 %v525
        %1644 = vmatpush1.msra.mxu0 %v524
        %1645 = vmatprep.subr.mxu0 %v528
        %1646 = vmatpush1.msra.mxu0 %v527
        %1647 = vmatprep.subr.mxu0 %v531
        %1648 = vmatpush1.msra.mxu0 %v530
        %1649 = vmatprep.subr.mxu0 %v534
        %1650 = vmatpush1.msra.mxu0 %v533
        %1651 = vmatprep.subr.mxu0 %v537
        %1652 = vmatpush1.msra.mxu0 %v536
        %1653 = vmatprep.subr.mxu0 %v540
        %1654 = vmatpush1.msra.mxu0 %v539
        %1655 = vmatprep.subr.mxu0 %v543
        %1656 = vmatpush1.msra.mxu0 %v542
        %1657 = vmatprep.subr.mxu0 %v546
        %1658 = vmatpush1.msra.mxu0 %v545
        %1659 = vmatprep.subr.mxu0 %v549
        %1660 = vmatpush1.msra.mxu0 %v548
        %1661 = vmatprep.subr.mxu0 %v552
        %1662 = vmatpush1.msra.mxu0 %v551
        %1663 = vmatprep.subr.mxu0 %v555
        %1664 = vmatpush1.msra.mxu0 %v554
        %1665 = vmatprep.subr.mxu0 %v558
        %1666 = vmatpush1.msra.mxu0 %v557
        %1667 = vmatprep.subr.mxu0 %v561
        %1668 = vmatpush1.msra.mxu0 %v560
        %1669 = vmatprep.subr.mxu0 %v564
        %1670 = vmatpush1.msra.mxu0 %v563
        %1671 = vmatprep.subr.mxu0 %v567
        %1672 = vmatpush1.msra.mxu0 %v566
        %1673 = vmatprep.subr.mxu0 %v570
        %1674 = vmatpush1.msra.mxu0 %v569
        %1675 = vmatprep.subr.mxu0 %v573
        %1676 = vmatpush1.msra.mxu0 %v572
        %1677 = vmatprep.subr.mxu0 %v576
        %1678 = vmatpush1.msra.mxu0 %v575
        %1679 = vmatprep.subr.mxu0 %v579
        %1680 = vmatpush1.msra.mxu0 %v578
        %1681 = vmatprep.subr.mxu0 %v582
        %1682 = vmatpush1.msra.mxu0 %v581
        %1683 = vmatprep.subr.mxu0 0.0
        %1684 = vmatpush1.msra.mxu0 0.0
        %1685 = vmatprep.subr.mxu0 0.0
        %1686 = vmatpush1.msra.mxu0 0.0
        %1687 = vmatprep.subr.mxu0 0.0
        %1688 = vmatpush1.msra.mxu0 0.0
        %1689 = vmatprep.subr.mxu0 0.0
        %1690 = vmatpush1.msra.mxu0 0.0
        %1691 = vmatprep.subr.mxu0 0.0
        %1692 = vmatpush1.msra.mxu0 0.0
        %1693 = vmatprep.mubr.f32.mxu0 %v1627
        %1694 = vmatmul.mubr.f32.gmra.mrb[0].mxu0 %v1624
        %v1695 = vpop.f32.mrb[0].mxu0
        %v1696 = vadd.f32 0.0, %v1695
        %v1697 = vpop.f32.mrb[0].mxu0
        %v1698 = vadd.f32 0.0, %v1697
        %1699 = vdwg.mxu0
        %1700 = vmatprep.subr.mxu0 0.0
        %1701 = vmatpush1.msra.mxu0 %v505
        %1702 = vmatprep.subr.mxu0 0.0
        %1703 = vmatpush1.msra.mxu0 %v508
        %1704 = vmatprep.subr.mxu0 0.0
        %1705 = vmatpush1.msra.mxu0 %v511
        %1706 = vmatprep.subr.mxu0 0.0
        %1707 = vmatpush1.msra.mxu0 %v514
        %1708 = vmatprep.subr.mxu0 0.0
        %1709 = vmatpush1.msra.mxu0 %v517
        %1710 = vmatprep.subr.mxu0 0.0
        %1711 = vmatpush1.msra.mxu0 %v520
        %1712 = vmatprep.subr.mxu0 0.0
        %1713 = vmatpush1.msra.mxu0 %v523
        %1714 = vmatprep.subr.mxu0 0.0
        %1715 = vmatpush1.msra.mxu0 %v526
        %1716 = vmatprep.subr.mxu0 0.0
        %1717 = vmatpush1.msra.mxu0 %v529
        %1718 = vmatprep.subr.mxu0 0.0
        %1719 = vmatpush1.msra.mxu0 %v532
        %1720 = vmatprep.subr.mxu0 0.0
        %1721 = vmatpush1.msra.mxu0 %v535
        %1722 = vmatprep.subr.mxu0 0.0
        %1723 = vmatpush1.msra.mxu0 %v538
        %1724 = vmatprep.subr.mxu0 0.0
        %1725 = vmatpush1.msra.mxu0 %v541
        %1726 = vmatprep.subr.mxu0 0.0
        %1727 = vmatpush1.msra.mxu0 %v544
        %1728 = vmatprep.subr.mxu0 0.0
        %1729 = vmatpush1.msra.mxu0 %v547
        %1730 = vmatprep.subr.mxu0 0.0
        %1731 = vmatpush1.msra.mxu0 %v550
        %1732 = vmatprep.subr.mxu0 0.0
        %1733 = vmatpush1.msra.mxu0 %v553
        %1734 = vmatprep.subr.mxu0 0.0
        %1735 = vmatpush1.msra.mxu0 %v556
        %1736 = vmatprep.subr.mxu0 0.0
        %1737 = vmatpush1.msra.mxu0 %v559
        %1738 = vmatprep.subr.mxu0 0.0
        %1739 = vmatpush1.msra.mxu0 %v562
        %1740 = vmatprep.subr.mxu0 0.0
        %1741 = vmatpush1.msra.mxu0 %v565
        %1742 = vmatprep.subr.mxu0 0.0
        %1743 = vmatpush1.msra.mxu0 %v568
        %1744 = vmatprep.subr.mxu0 0.0
        %1745 = vmatpush1.msra.mxu0 %v571
        %1746 = vmatprep.subr.mxu0 0.0
        %1747 = vmatpush1.msra.mxu0 %v574
        %1748 = vmatprep.subr.mxu0 0.0
        %1749 = vmatpush1.msra.mxu0 %v577
        %1750 = vmatprep.subr.mxu0 0.0
        %1751 = vmatpush1.msra.mxu0 %v580
        %1752 = vmatprep.subr.mxu0 0.0
        %1753 = vmatpush1.msra.mxu0 %v583
        %1754 = vmatprep.subr.mxu0 0.0
        %1755 = vmatpush1.msra.mxu0 0.0
        %1756 = vmatprep.subr.mxu0 0.0
        %1757 = vmatpush1.msra.mxu0 0.0
        %1758 = vmatprep.subr.mxu0 0.0
        %1759 = vmatpush1.msra.mxu0 0.0
        %1760 = vmatprep.subr.mxu0 0.0
        %1761 = vmatpush1.msra.mxu0 0.0
        %1762 = vmatprep.subr.mxu0 0.0
        %1763 = vmatpush1.msra.mxu0 0.0
        %1764 = vmatprep.mubr.f32.mxu0 %v1627
        %1765 = vmatmul.mubr.f32.gmra.mrb[0].mxu0 %v1624
        %v1766 = vpop.f32.mrb[0].mxu0
        %v1767 = vadd.f32 0.0, %v1766
        %v1768 = vpop.f32.mrb[0].mxu0
        %1769 = vdwg.mxu0
        %v1770 = vmul.f32 %v1696, %v733
        %v1771 = vmul.f32 %v1698, %v737
        %v1772 = vmul.f32 %v1767, %v741
        %v1773 = vadd.f32 %v1770, %v752
        %v1774 = vadd.f32 %v1771, %v756
        %v1775 = vadd.f32 %v1772, %v760
        %v1776 = vmax.f32 %v1773, 0.0
        %v1777 = vmax.f32 %v1774, 0.0
        %v1778 = vmax.f32 %v1775, 0.0
        %1781 = vrot.lane.b32.xlu0 %v1777, 96
        %v1782 = vpop.permute.xlu0 %1781
        %1783 = vrot.lane.b32.xlu0 %v1778, 96
        %v1784 = vpop.permute.xlu0 %1783
        %v1785 = vsel %vm776, %v1782, %v1784
        %v1788 = vmax.f32 %v1776, %v1785
        %v1789 = vmax.f32 %v1777, %v1784
        %s1790 = scalar_lea.vmem %s453, 112 [#allocation2]
        %v1791 = vld [vmem:[%s1790] sm:$0xff]
        %v1792 = vld [vmem:[%s1790 + $0x8] sm:$0xff]
        %v1794 = vsel %vm584, %v1792, 0
        %1796 = vmatprep.subr.mxu0 %v504
        %1797 = vmatpush1.msra.mxu0 %v503
        %1798 = vmatprep.subr.mxu0 %v507
        %1799 = vmatpush1.msra.mxu0 %v506
        %1800 = vmatprep.subr.mxu0 %v510
        %1801 = vmatpush1.msra.mxu0 %v509
        %1802 = vmatprep.subr.mxu0 %v513
        %1803 = vmatpush1.msra.mxu0 %v512
        %1804 = vmatprep.subr.mxu0 %v516
        %1805 = vmatpush1.msra.mxu0 %v515
        %1806 = vmatprep.subr.mxu0 %v519
        %1807 = vmatpush1.msra.mxu0 %v518
        %1808 = vmatprep.subr.mxu0 %v522
        %1809 = vmatpush1.msra.mxu0 %v521
        %1810 = vmatprep.subr.mxu0 %v525
        %1811 = vmatpush1.msra.mxu0 %v524
        %1812 = vmatprep.subr.mxu0 %v528
        %1813 = vmatpush1.msra.mxu0 %v527
        %1814 = vmatprep.subr.mxu0 %v531
        %1815 = vmatpush1.msra.mxu0 %v530
        %1816 = vmatprep.subr.mxu0 %v534
        %1817 = vmatpush1.msra.mxu0 %v533
        %1818 = vmatprep.subr.mxu0 %v537
        %1819 = vmatpush1.msra.mxu0 %v536
        %1820 = vmatprep.subr.mxu0 %v540
        %1821 = vmatpush1.msra.mxu0 %v539
        %1822 = vmatprep.subr.mxu0 %v543
        %1823 = vmatpush1.msra.mxu0 %v542
        %1824 = vmatprep.subr.mxu0 %v546
        %1825 = vmatpush1.msra.mxu0 %v545
        %1826 = vmatprep.subr.mxu0 %v549
        %1827 = vmatpush1.msra.mxu0 %v548
        %1828 = vmatprep.subr.mxu0 %v552
        %1829 = vmatpush1.msra.mxu0 %v551
        %1830 = vmatprep.subr.mxu0 %v555
        %1831 = vmatpush1.msra.mxu0 %v554
        %1832 = vmatprep.subr.mxu0 %v558
        %1833 = vmatpush1.msra.mxu0 %v557
        %1834 = vmatprep.subr.mxu0 %v561
        %1835 = vmatpush1.msra.mxu0 %v560
        %1836 = vmatprep.subr.mxu0 %v564
        %1837 = vmatpush1.msra.mxu0 %v563
        %1838 = vmatprep.subr.mxu0 %v567
        %1839 = vmatpush1.msra.mxu0 %v566
        %1840 = vmatprep.subr.mxu0 %v570
        %1841 = vmatpush1.msra.mxu0 %v569
        %1842 = vmatprep.subr.mxu0 %v573
        %1843 = vmatpush1.msra.mxu0 %v572
        %1844 = vmatprep.subr.mxu0 %v576
        %1845 = vmatpush1.msra.mxu0 %v575
        %1846 = vmatprep.subr.mxu0 %v579
        %1847 = vmatpush1.msra.mxu0 %v578
        %1848 = vmatprep.subr.mxu0 %v582
        %1849 = vmatpush1.msra.mxu0 %v581
        %1850 = vmatprep.subr.mxu0 0.0
        %1851 = vmatpush1.msra.mxu0 0.0
        %1852 = vmatprep.subr.mxu0 0.0
        %1853 = vmatpush1.msra.mxu0 0.0
        %1854 = vmatprep.subr.mxu0 0.0
        %1855 = vmatpush1.msra.mxu0 0.0
        %1856 = vmatprep.subr.mxu0 0.0
        %1857 = vmatpush1.msra.mxu0 0.0
        %1858 = vmatprep.subr.mxu0 0.0
        %1859 = vmatpush1.msra.mxu0 0.0
        %1860 = vmatprep.mubr.f32.mxu0 %v1794
        %1861 = vmatmul.mubr.f32.gmra.mrb[0].mxu0 %v1791
        %v1862 = vpop.f32.mrb[0].mxu0
        %v1863 = vadd.f32 0.0, %v1862
        %v1864 = vpop.f32.mrb[0].mxu0
        %v1865 = vadd.f32 0.0, %v1864
        %1866 = vdwg.mxu0
        %1867 = vmatprep.subr.mxu0 0.0
        %1868 = vmatpush1.msra.mxu0 %v505
        %1869 = vmatprep.subr.mxu0 0.0
        %1870 = vmatpush1.msra.mxu0 %v508
        %1871 = vmatprep.subr.mxu0 0.0
        %1872 = vmatpush1.msra.mxu0 %v511
        %1873 = vmatprep.subr.mxu0 0.0
        %1874 = vmatpush1.msra.mxu0 %v514
        %1875 = vmatprep.subr.mxu0 0.0
        %1876 = vmatpush1.msra.mxu0 %v517
        %1877 = vmatprep.subr.mxu0 0.0
        %1878 = vmatpush1.msra.mxu0 %v520
        %1879 = vmatprep.subr.mxu0 0.0
        %1880 = vmatpush1.msra.mxu0 %v523
        %1881 = vmatprep.subr.mxu0 0.0
        %1882 = vmatpush1.msra.mxu0 %v526
        %1883 = vmatprep.subr.mxu0 0.0
        %1884 = vmatpush1.msra.mxu0 %v529
        %1885 = vmatprep.subr.mxu0 0.0
        %1886 = vmatpush1.msra.mxu0 %v532
        %1887 = vmatprep.subr.mxu0 0.0
        %1888 = vmatpush1.msra.mxu0 %v535
        %1889 = vmatprep.subr.mxu0 0.0
        %1890 = vmatpush1.msra.mxu0 %v538
        %1891 = vmatprep.subr.mxu0 0.0
        %1892 = vmatpush1.msra.mxu0 %v541
        %1893 = vmatprep.subr.mxu0 0.0
        %1894 = vmatpush1.msra.mxu0 %v544
        %1895 = vmatprep.subr.mxu0 0.0
        %1896 = vmatpush1.msra.mxu0 %v547
        %1897 = vmatprep.subr.mxu0 0.0
        %1898 = vmatpush1.msra.mxu0 %v550
        %1899 = vmatprep.subr.mxu0 0.0
        %1900 = vmatpush1.msra.mxu0 %v553
        %1901 = vmatprep.subr.mxu0 0.0
        %1902 = vmatpush1.msra.mxu0 %v556
        %1903 = vmatprep.subr.mxu0 0.0
        %1904 = vmatpush1.msra.mxu0 %v559
        %1905 = vmatprep.subr.mxu0 0.0
        %1906 = vmatpush1.msra.mxu0 %v562
        %1907 = vmatprep.subr.mxu0 0.0
        %1908 = vmatpush1.msra.mxu0 %v565
        %1909 = vmatprep.subr.mxu0 0.0
        %1910 = vmatpush1.msra.mxu0 %v568
        %1911 = vmatprep.subr.mxu0 0.0
        %1912 = vmatpush1.msra.mxu0 %v571
        %1913 = vmatprep.subr.mxu0 0.0
        %1914 = vmatpush1.msra.mxu0 %v574
        %1915 = vmatprep.subr.mxu0 0.0
        %1916 = vmatpush1.msra.mxu0 %v577
        %1917 = vmatprep.subr.mxu0 0.0
        %1918 = vmatpush1.msra.mxu0 %v580
        %1919 = vmatprep.subr.mxu0 0.0
        %1920 = vmatpush1.msra.mxu0 %v583
        %1921 = vmatprep.subr.mxu0 0.0
        %1922 = vmatpush1.msra.mxu0 0.0
        %1923 = vmatprep.subr.mxu0 0.0
        %1924 = vmatpush1.msra.mxu0 0.0
        %1925 = vmatprep.subr.mxu0 0.0
        %1926 = vmatpush1.msra.mxu0 0.0
        %1927 = vmatprep.subr.mxu0 0.0
        %1928 = vmatpush1.msra.mxu0 0.0
        %1929 = vmatprep.subr.mxu0 0.0
        %1930 = vmatpush1.msra.mxu0 0.0
        %1931 = vmatprep.mubr.f32.mxu0 %v1794
        %1932 = vmatmul.mubr.f32.gmra.mrb[0].mxu0 %v1791
        %v1933 = vpop.f32.mrb[0].mxu0
        %v1934 = vadd.f32 0.0, %v1933
        %v1935 = vpop.f32.mrb[0].mxu0
        %1936 = vdwg.mxu0
        %v1937 = vmul.f32 %v1863, %v733
        %v1938 = vmul.f32 %v1865, %v737
        %v1939 = vmul.f32 %v1934, %v741
        %v1940 = vadd.f32 %v1937, %v752
        %v1941 = vadd.f32 %v1938, %v756
        %v1942 = vadd.f32 %v1939, %v760
        %v1943 = vmax.f32 %v1940, 0.0
        %v1944 = vmax.f32 %v1941, 0.0
        %v1945 = vmax.f32 %v1942, 0.0
        %1948 = vrot.lane.b32.xlu0 %v1944, 96
        %v1949 = vpop.permute.xlu0 %1948
        %1950 = vrot.lane.b32.xlu0 %v1945, 96
        %v1951 = vpop.permute.xlu0 %1950
        %v1952 = vsel %vm776, %v1949, %v1951
        %v1955 = vmax.f32 %v1943, %v1952
        %v1956 = vmax.f32 %v1944, %v1951
        %v1957 = vmax.f32 %v1788, %v1955
        %v1958 = vmax.f32 %v1789, %v1956
        %s1959 = scalar_lea.vmem %s453, 128 [#allocation2]
        %v1960 = vld [vmem:[%s1959] sm:$0xff]
        %v1961 = vld [vmem:[%s1959 + $0x8] sm:$0xff]
        %v1963 = vsel %vm584, %v1961, 0
        %1965 = vmatprep.subr.mxu0 %v504
        %1966 = vmatpush1.msra.mxu0 %v503
        %1967 = vmatprep.subr.mxu0 %v507
        %1968 = vmatpush1.msra.mxu0 %v506
        %1969 = vmatprep.subr.mxu0 %v510
        %1970 = vmatpush1.msra.mxu0 %v509
        %1971 = vmatprep.subr.mxu0 %v513
        %1972 = vmatpush1.msra.mxu0 %v512
        %1973 = vmatprep.subr.mxu0 %v516
        %1974 = vmatpush1.msra.mxu0 %v515
        %1975 = vmatprep.subr.mxu0 %v519
        %1976 = vmatpush1.msra.mxu0 %v518
        %1977 = vmatprep.subr.mxu0 %v522
        %1978 = vmatpush1.msra.mxu0 %v521
        %1979 = vmatprep.subr.mxu0 %v525
        %1980 = vmatpush1.msra.mxu0 %v524
        %1981 = vmatprep.subr.mxu0 %v528
        %1982 = vmatpush1.msra.mxu0 %v527
        %1983 = vmatprep.subr.mxu0 %v531
        %1984 = vmatpush1.msra.mxu0 %v530
        %1985 = vmatprep.subr.mxu0 %v534
        %1986 = vmatpush1.msra.mxu0 %v533
        %1987 = vmatprep.subr.mxu0 %v537
        %1988 = vmatpush1.msra.mxu0 %v536
        %1989 = vmatprep.subr.mxu0 %v540
        %1990 = vmatpush1.msra.mxu0 %v539
        %1991 = vmatprep.subr.mxu0 %v543
        %1992 = vmatpush1.msra.mxu0 %v542
        %1993 = vmatprep.subr.mxu0 %v546
        %1994 = vmatpush1.msra.mxu0 %v545
        %1995 = vmatprep.subr.mxu0 %v549
        %1996 = vmatpush1.msra.mxu0 %v548
        %1997 = vmatprep.subr.mxu0 %v552
        %1998 = vmatpush1.msra.mxu0 %v551
        %1999 = vmatprep.subr.mxu0 %v555
        %2000 = vmatpush1.msra.mxu0 %v554
        %2001 = vmatprep.subr.mxu0 %v558
        %2002 = vmatpush1.msra.mxu0 %v557
        %2003 = vmatprep.subr.mxu0 %v561
        %2004 = vmatpush1.msra.mxu0 %v560
        %2005 = vmatprep.subr.mxu0 %v564
        %2006 = vmatpush1.msra.mxu0 %v563
        %2007 = vmatprep.subr.mxu0 %v567
        %2008 = vmatpush1.msra.mxu0 %v566
        %2009 = vmatprep.subr.mxu0 %v570
        %2010 = vmatpush1.msra.mxu0 %v569
        %2011 = vmatprep.subr.mxu0 %v573
        %2012 = vmatpush1.msra.mxu0 %v572
        %2013 = vmatprep.subr.mxu0 %v576
        %2014 = vmatpush1.msra.mxu0 %v575
        %2015 = vmatprep.subr.mxu0 %v579
        %2016 = vmatpush1.msra.mxu0 %v578
        %2017 = vmatprep.subr.mxu0 %v582
        %2018 = vmatpush1.msra.mxu0 %v581
        %2019 = vmatprep.subr.mxu0 0.0
        %2020 = vmatpush1.msra.mxu0 0.0
        %2021 = vmatprep.subr.mxu0 0.0
        %2022 = vmatpush1.msra.mxu0 0.0
        %2023 = vmatprep.subr.mxu0 0.0
        %2024 = vmatpush1.msra.mxu0 0.0
        %2025 = vmatprep.subr.mxu0 0.0
        %2026 = vmatpush1.msra.mxu0 0.0
        %2027 = vmatprep.subr.mxu0 0.0
        %2028 = vmatpush1.msra.mxu0 0.0
        %2029 = vmatprep.mubr.f32.mxu0 %v1963
        %2030 = vmatmul.mubr.f32.gmra.mrb[0].mxu0 %v1960
        %v2031 = vpop.f32.mrb[0].mxu0
        %v2032 = vadd.f32 0.0, %v2031
        %v2033 = vpop.f32.mrb[0].mxu0
        %v2034 = vadd.f32 0.0, %v2033
        %2035 = vdwg.mxu0
        %2036 = vmatprep.subr.mxu0 0.0
        %2037 = vmatpush1.msra.mxu0 %v505
        %2038 = vmatprep.subr.mxu0 0.0
        %2039 = vmatpush1.msra.mxu0 %v508
        %2040 = vmatprep.subr.mxu0 0.0
        %2041 = vmatpush1.msra.mxu0 %v511
        %2042 = vmatprep.subr.mxu0 0.0
        %2043 = vmatpush1.msra.mxu0 %v514
        %2044 = vmatprep.subr.mxu0 0.0
        %2045 = vmatpush1.msra.mxu0 %v517
        %2046 = vmatprep.subr.mxu0 0.0
        %2047 = vmatpush1.msra.mxu0 %v520
        %2048 = vmatprep.subr.mxu0 0.0
        %2049 = vmatpush1.msra.mxu0 %v523
        %2050 = vmatprep.subr.mxu0 0.0
        %2051 = vmatpush1.msra.mxu0 %v526
        %2052 = vmatprep.subr.mxu0 0.0
        %2053 = vmatpush1.msra.mxu0 %v529
        %2054 = vmatprep.subr.mxu0 0.0
        %2055 = vmatpush1.msra.mxu0 %v532
        %2056 = vmatprep.subr.mxu0 0.0
        %2057 = vmatpush1.msra.mxu0 %v535
        %2058 = vmatprep.subr.mxu0 0.0
        %2059 = vmatpush1.msra.mxu0 %v538
        %2060 = vmatprep.subr.mxu0 0.0
        %2061 = vmatpush1.msra.mxu0 %v541
        %2062 = vmatprep.subr.mxu0 0.0
        %2063 = vmatpush1.msra.mxu0 %v544
        %2064 = vmatprep.subr.mxu0 0.0
        %2065 = vmatpush1.msra.mxu0 %v547
        %2066 = vmatprep.subr.mxu0 0.0
        %2067 = vmatpush1.msra.mxu0 %v550
        %2068 = vmatprep.subr.mxu0 0.0
        %2069 = vmatpush1.msra.mxu0 %v553
        %2070 = vmatprep.subr.mxu0 0.0
        %2071 = vmatpush1.msra.mxu0 %v556
        %2072 = vmatprep.subr.mxu0 0.0
        %2073 = vmatpush1.msra.mxu0 %v559
        %2074 = vmatprep.subr.mxu0 0.0
        %2075 = vmatpush1.msra.mxu0 %v562
        %2076 = vmatprep.subr.mxu0 0.0
        %2077 = vmatpush1.msra.mxu0 %v565
        %2078 = vmatprep.subr.mxu0 0.0
        %2079 = vmatpush1.msra.mxu0 %v568
        %2080 = vmatprep.subr.mxu0 0.0
        %2081 = vmatpush1.msra.mxu0 %v571
        %2082 = vmatprep.subr.mxu0 0.0
        %2083 = vmatpush1.msra.mxu0 %v574
        %2084 = vmatprep.subr.mxu0 0.0
        %2085 = vmatpush1.msra.mxu0 %v577
        %2086 = vmatprep.subr.mxu0 0.0
        %2087 = vmatpush1.msra.mxu0 %v580
        %2088 = vmatprep.subr.mxu0 0.0
        %2089 = vmatpush1.msra.mxu0 %v583
        %2090 = vmatprep.subr.mxu0 0.0
        %2091 = vmatpush1.msra.mxu0 0.0
        %2092 = vmatprep.subr.mxu0 0.0
        %2093 = vmatpush1.msra.mxu0 0.0
        %2094 = vmatprep.subr.mxu0 0.0
        %2095 = vmatpush1.msra.mxu0 0.0
        %2096 = vmatprep.subr.mxu0 0.0
        %2097 = vmatpush1.msra.mxu0 0.0
        %2098 = vmatprep.subr.mxu0 0.0
        %2099 = vmatpush1.msra.mxu0 0.0
        %2100 = vmatprep.mubr.f32.mxu0 %v1963
        %2101 = vmatmul.mubr.f32.gmra.mrb[0].mxu0 %v1960
        %v2102 = vpop.f32.mrb[0].mxu0
        %v2103 = vadd.f32 0.0, %v2102
        %v2104 = vpop.f32.mrb[0].mxu0
        %2105 = vdwg.mxu0
        %v2106 = vmul.f32 %v2032, %v733
        %v2107 = vmul.f32 %v2034, %v737
        %v2108 = vmul.f32 %v2103, %v741
        %v2109 = vadd.f32 %v2106, %v752
        %v2110 = vadd.f32 %v2107, %v756
        %v2111 = vadd.f32 %v2108, %v760
        %v2112 = vmax.f32 %v2109, 0.0
        %v2113 = vmax.f32 %v2110, 0.0
        %v2114 = vmax.f32 %v2111, 0.0
        %2117 = vrot.lane.b32.xlu0 %v2113, 96
        %v2118 = vpop.permute.xlu0 %2117
        %2119 = vrot.lane.b32.xlu0 %v2114, 96
        %v2120 = vpop.permute.xlu0 %2119
        %v2121 = vsel %vm776, %v2118, %v2120
        %v2124 = vmax.f32 %v2112, %v2121
        %v2125 = vmax.f32 %v2113, %v2120
        %s2126 = scalar_lea.vmem %s453, 144 [#allocation2]
        %v2127 = vld [vmem:[%s2126] sm:$0xff]
        %v2128 = vld [vmem:[%s2126 + $0x8] sm:$0xff]
        %v2130 = vsel %vm584, %v2128, 0
        %2132 = vmatprep.subr.mxu0 %v504
        %2133 = vmatpush1.msra.mxu0 %v503
        %2134 = vmatprep.subr.mxu0 %v507
        %2135 = vmatpush1.msra.mxu0 %v506
        %2136 = vmatprep.subr.mxu0 %v510
        %2137 = vmatpush1.msra.mxu0 %v509
        %2138 = vmatprep.subr.mxu0 %v513
        %2139 = vmatpush1.msra.mxu0 %v512
        %2140 = vmatprep.subr.mxu0 %v516
        %2141 = vmatpush1.msra.mxu0 %v515
        %2142 = vmatprep.subr.mxu0 %v519
        %2143 = vmatpush1.msra.mxu0 %v518
        %2144 = vmatprep.subr.mxu0 %v522
        %2145 = vmatpush1.msra.mxu0 %v521
        %2146 = vmatprep.subr.mxu0 %v525
        %2147 = vmatpush1.msra.mxu0 %v524
        %2148 = vmatprep.subr.mxu0 %v528
        %2149 = vmatpush1.msra.mxu0 %v527
        %2150 = vmatprep.subr.mxu0 %v531
        %2151 = vmatpush1.msra.mxu0 %v530
        %2152 = vmatprep.subr.mxu0 %v534
        %2153 = vmatpush1.msra.mxu0 %v533
        %2154 = vmatprep.subr.mxu0 %v537
        %2155 = vmatpush1.msra.mxu0 %v536
        %2156 = vmatprep.subr.mxu0 %v540
        %2157 = vmatpush1.msra.mxu0 %v539
        %2158 = vmatprep.subr.mxu0 %v543
        %2159 = vmatpush1.msra.mxu0 %v542
        %2160 = vmatprep.subr.mxu0 %v546
        %2161 = vmatpush1.msra.mxu0 %v545
        %2162 = vmatprep.subr.mxu0 %v549
        %2163 = vmatpush1.msra.mxu0 %v548
        %2164 = vmatprep.subr.mxu0 %v552
        %2165 = vmatpush1.msra.mxu0 %v551
        %2166 = vmatprep.subr.mxu0 %v555
        %2167 = vmatpush1.msra.mxu0 %v554
        %2168 = vmatprep.subr.mxu0 %v558
        %2169 = vmatpush1.msra.mxu0 %v557
        %2170 = vmatprep.subr.mxu0 %v561
        %2171 = vmatpush1.msra.mxu0 %v560
        %2172 = vmatprep.subr.mxu0 %v564
        %2173 = vmatpush1.msra.mxu0 %v563
        %2174 = vmatprep.subr.mxu0 %v567
        %2175 = vmatpush1.msra.mxu0 %v566
        %2176 = vmatprep.subr.mxu0 %v570
        %2177 = vmatpush1.msra.mxu0 %v569
        %2178 = vmatprep.subr.mxu0 %v573
        %2179 = vmatpush1.msra.mxu0 %v572
        %2180 = vmatprep.subr.mxu0 %v576
        %2181 = vmatpush1.msra.mxu0 %v575
        %2182 = vmatprep.subr.mxu0 %v579
        %2183 = vmatpush1.msra.mxu0 %v578
        %2184 = vmatprep.subr.mxu0 %v582
        %2185 = vmatpush1.msra.mxu0 %v581
        %2186 = vmatprep.subr.mxu0 0.0
        %2187 = vmatpush1.msra.mxu0 0.0
        %2188 = vmatprep.subr.mxu0 0.0
        %2189 = vmatpush1.msra.mxu0 0.0
        %2190 = vmatprep.subr.mxu0 0.0
        %2191 = vmatpush1.msra.mxu0 0.0
        %2192 = vmatprep.subr.mxu0 0.0
        %2193 = vmatpush1.msra.mxu0 0.0
        %2194 = vmatprep.subr.mxu0 0.0
        %2195 = vmatpush1.msra.mxu0 0.0
        %2196 = vmatprep.mubr.f32.mxu0 %v2130
        %2197 = vmatmul.mubr.f32.gmra.mrb[0].mxu0 %v2127
        %v2198 = vpop.f32.mrb[0].mxu0
        %v2199 = vadd.f32 0.0, %v2198
        %v2200 = vpop.f32.mrb[0].mxu0
        %v2201 = vadd.f32 0.0, %v2200
        %2202 = vdwg.mxu0
        %2203 = vmatprep.subr.mxu0 0.0
        %2204 = vmatpush1.msra.mxu0 %v505
        %2205 = vmatprep.subr.mxu0 0.0
        %2206 = vmatpush1.msra.mxu0 %v508
        %2207 = vmatprep.subr.mxu0 0.0
        %2208 = vmatpush1.msra.mxu0 %v511
        %2209 = vmatprep.subr.mxu0 0.0
        %2210 = vmatpush1.msra.mxu0 %v514
        %2211 = vmatprep.subr.mxu0 0.0
        %2212 = vmatpush1.msra.mxu0 %v517
        %2213 = vmatprep.subr.mxu0 0.0
        %2214 = vmatpush1.msra.mxu0 %v520
        %2215 = vmatprep.subr.mxu0 0.0
        %2216 = vmatpush1.msra.mxu0 %v523
        %2217 = vmatprep.subr.mxu0 0.0
        %2218 = vmatpush1.msra.mxu0 %v526
        %2219 = vmatprep.subr.mxu0 0.0
        %2220 = vmatpush1.msra.mxu0 %v529
        %2221 = vmatprep.subr.mxu0 0.0
        %2222 = vmatpush1.msra.mxu0 %v532
        %2223 = vmatprep.subr.mxu0 0.0
        %2224 = vmatpush1.msra.mxu0 %v535
        %2225 = vmatprep.subr.mxu0 0.0
        %2226 = vmatpush1.msra.mxu0 %v538
        %2227 = vmatprep.subr.mxu0 0.0
        %2228 = vmatpush1.msra.mxu0 %v541
        %2229 = vmatprep.subr.mxu0 0.0
        %2230 = vmatpush1.msra.mxu0 %v544
        %2231 = vmatprep.subr.mxu0 0.0
        %2232 = vmatpush1.msra.mxu0 %v547
        %2233 = vmatprep.subr.mxu0 0.0
        %2234 = vmatpush1.msra.mxu0 %v550
        %2235 = vmatprep.subr.mxu0 0.0
        %2236 = vmatpush1.msra.mxu0 %v553
        %2237 = vmatprep.subr.mxu0 0.0
        %2238 = vmatpush1.msra.mxu0 %v556
        %2239 = vmatprep.subr.mxu0 0.0
        %2240 = vmatpush1.msra.mxu0 %v559
        %2241 = vmatprep.subr.mxu0 0.0
        %2242 = vmatpush1.msra.mxu0 %v562
        %2243 = vmatprep.subr.mxu0 0.0
        %2244 = vmatpush1.msra.mxu0 %v565
        %2245 = vmatprep.subr.mxu0 0.0
        %2246 = vmatpush1.msra.mxu0 %v568
        %2247 = vmatprep.subr.mxu0 0.0
        %2248 = vmatpush1.msra.mxu0 %v571
        %2249 = vmatprep.subr.mxu0 0.0
        %2250 = vmatpush1.msra.mxu0 %v574
        %2251 = vmatprep.subr.mxu0 0.0
        %2252 = vmatpush1.msra.mxu0 %v577
        %2253 = vmatprep.subr.mxu0 0.0
        %2254 = vmatpush1.msra.mxu0 %v580
        %2255 = vmatprep.subr.mxu0 0.0
        %2256 = vmatpush1.msra.mxu0 %v583
        %2257 = vmatprep.subr.mxu0 0.0
        %2258 = vmatpush1.msra.mxu0 0.0
        %2259 = vmatprep.subr.mxu0 0.0
        %2260 = vmatpush1.msra.mxu0 0.0
        %2261 = vmatprep.subr.mxu0 0.0
        %2262 = vmatpush1.msra.mxu0 0.0
        %2263 = vmatprep.subr.mxu0 0.0
        %2264 = vmatpush1.msra.mxu0 0.0
        %2265 = vmatprep.subr.mxu0 0.0
        %2266 = vmatpush1.msra.mxu0 0.0
        %2267 = vmatprep.mubr.f32.mxu0 %v2130
        %2268 = vmatmul.mubr.f32.gmra.mrb[0].mxu0 %v2127
        %v2269 = vpop.f32.mrb[0].mxu0
        %v2270 = vadd.f32 0.0, %v2269
        %v2271 = vpop.f32.mrb[0].mxu0
        %2272 = vdwg.mxu0
        %v2273 = vmul.f32 %v2199, %v733
        %v2274 = vmul.f32 %v2201, %v737
        %v2275 = vmul.f32 %v2270, %v741
        %v2276 = vadd.f32 %v2273, %v752
        %v2277 = vadd.f32 %v2274, %v756
        %v2278 = vadd.f32 %v2275, %v760
        %v2279 = vmax.f32 %v2276, 0.0
        %v2280 = vmax.f32 %v2277, 0.0
        %v2281 = vmax.f32 %v2278, 0.0
        %2284 = vrot.lane.b32.xlu0 %v2280, 96
        %v2285 = vpop.permute.xlu0 %2284
        %2286 = vrot.lane.b32.xlu0 %v2281, 96
        %v2287 = vpop.permute.xlu0 %2286
        %v2288 = vsel %vm776, %v2285, %v2287
        %v2291 = vmax.f32 %v2279, %v2288
        %v2292 = vmax.f32 %v2280, %v2287
        %v2293 = vmax.f32 %v2124, %v2291
        %v2294 = vmax.f32 %v2125, %v2292
        %s2295 = scalar_lea.vmem %s4, 480
        %v2296 = vld [vmem:[%s2295] sm:$0xff]
        %v2297 = vld [vmem:[%s2295 + $0x8] sm:$0xff]
        %v2298 = vld [vmem:[%s2295 + $0x10] sm:$0xff]
        %v2299 = vld [vmem:[%s2295 + $0x18] sm:$0xff]
        %v2300 = vld [vmem:[%s2295 + $0x20] sm:$0xff]
        %v2301 = vld [vmem:[%s2295 + $0x28] sm:$0xff]
        %v2302 = vld [vmem:[%s2295 + $0x30] sm:$0xff]
        %v2303 = vld [vmem:[%s2295 + $0x38] sm:$0xff]
        %v2304 = vld [vmem:[%s2295 + $0x40] sm:$0xff]
        %v2305 = vld [vmem:[%s2295 + $0x48] sm:$0xff]
        %v2306 = vld [vmem:[%s2295 + $0x50] sm:$0xff]
        %v2307 = vld [vmem:[%s2295 + $0x58] sm:$0xff]
        %v2308 = vld [vmem:[%s2295 + $0x60] sm:$0xff]
        %v2309 = vld [vmem:[%s2295 + $0x68] sm:$0xff]
        %v2310 = vld [vmem:[%s2295 + $0x70] sm:$0xff]
        %v2311 = vld [vmem:[%s2295 + $0x78] sm:$0xff]
        %v2312 = vld [vmem:[%s2295 + $0x80] sm:$0xff]
        %v2313 = vld [vmem:[%s2295 + $0x88] sm:$0xff]
        %v2314 = vld [vmem:[%s2295 + $0x90] sm:$0xff]
        %v2315 = vld [vmem:[%s2295 + $0x98] sm:$0xff]
        %v2316 = vld [vmem:[%s2295 + $0xa0] sm:$0xff]
        %v2317 = vld [vmem:[%s2295 + $0xa8] sm:$0xff]
        %v2318 = vld [vmem:[%s2295 + $0xb0] sm:$0xff]
        %v2319 = vld [vmem:[%s2295 + $0xb8] sm:$0xff]
        %v2320 = vld [vmem:[%s2295 + $0xc0] sm:$0xff]
        %v2321 = vld [vmem:[%s2295 + $0xc8] sm:$0xff]
        %v2322 = vld [vmem:[%s2295 + $0xd0] sm:$0xff]
        %v2323 = vld [vmem:[%s2295 + $0xd8] sm:$0xff]
        %v2324 = vld [vmem:[%s2295 + $0xe0] sm:$0xff]
        %v2325 = vld [vmem:[%s2295 + $0xe8] sm:$0xff]
        %v2326 = vld [vmem:[%s2295 + $0xf0] sm:$0xff]
        %v2327 = vld [vmem:[%s2295 + $0xf8] sm:$0xff]
        %v2328 = vld [vmem:[%s2295 + $0x100] sm:$0xff]
        %v2329 = vld [vmem:[%s2295 + $0x108] sm:$0xff]
        %v2330 = vld [vmem:[%s2295 + $0x110] sm:$0xff]
        %v2331 = vld [vmem:[%s2295 + $0x118] sm:$0xff]
        %v2332 = vld [vmem:[%s2295 + $0x120] sm:$0xff]
        %v2333 = vld [vmem:[%s2295 + $0x128] sm:$0xff]
        %v2334 = vld [vmem:[%s2295 + $0x130] sm:$0xff]
        %v2335 = vld [vmem:[%s2295 + $0x138] sm:$0xff]
        %v2336 = vld [vmem:[%s2295 + $0x140] sm:$0xff]
        %v2337 = vld [vmem:[%s2295 + $0x148] sm:$0xff]
        %v2338 = vld [vmem:[%s2295 + $0x150] sm:$0xff]
        %v2339 = vld [vmem:[%s2295 + $0x158] sm:$0xff]
        %v2340 = vld [vmem:[%s2295 + $0x160] sm:$0xff]
        %v2341 = vld [vmem:[%s2295 + $0x168] sm:$0xff]
        %v2342 = vld [vmem:[%s2295 + $0x170] sm:$0xff]
        %v2343 = vld [vmem:[%s2295 + $0x178] sm:$0xff]
        %v2344 = vld [vmem:[%s2295 + $0x180] sm:$0xff]
        %v2345 = vld [vmem:[%s2295 + $0x188] sm:$0xff]
        %v2346 = vld [vmem:[%s2295 + $0x190] sm:$0xff]
        %v2347 = vld [vmem:[%s2295 + $0x198] sm:$0xff]
        %v2348 = vld [vmem:[%s2295 + $0x1a0] sm:$0xff]
        %v2349 = vld [vmem:[%s2295 + $0x1a8] sm:$0xff]
        %v2350 = vld [vmem:[%s2295 + $0x1b0] sm:$0xff]
        %v2351 = vld [vmem:[%s2295 + $0x1b8] sm:$0xff]
        %v2352 = vld [vmem:[%s2295 + $0x1c0] sm:$0xff]
        %v2353 = vld [vmem:[%s2295 + $0x1c8] sm:$0xff]
        %v2354 = vld [vmem:[%s2295 + $0x1d0] sm:$0xff]
        %v2355 = vld [vmem:[%s2295 + $0x1d8] sm:$0xff]
        %s2356 = scalar_lea.vmem %s4, 960
        %v2357 = vld [vmem:[%s2356] sm:$0xff]
        %v2358 = vld [vmem:[%s2356 + $0x8] sm:$0xff]
        %v2359 = vld [vmem:[%s2356 + $0x10] sm:$0xff]
        %v2360 = vld [vmem:[%s2356 + $0x18] sm:$0xff]
        %v2361 = vld [vmem:[%s2356 + $0x20] sm:$0xff]
        %v2362 = vld [vmem:[%s2356 + $0x28] sm:$0xff]
        %v2363 = vld [vmem:[%s2356 + $0x30] sm:$0xff]
        %v2364 = vld [vmem:[%s2356 + $0x38] sm:$0xff]
        %v2365 = vld [vmem:[%s2356 + $0x40] sm:$0xff]
        %v2366 = vld [vmem:[%s2356 + $0x48] sm:$0xff]
        %v2367 = vld [vmem:[%s2356 + $0x50] sm:$0xff]
        %v2368 = vld [vmem:[%s2356 + $0x58] sm:$0xff]
        %v2369 = vld [vmem:[%s2356 + $0x60] sm:$0xff]
        %v2370 = vld [vmem:[%s2356 + $0x68] sm:$0xff]
        %v2371 = vld [vmem:[%s2356 + $0x70] sm:$0xff]
        %v2372 = vld [vmem:[%s2356 + $0x78] sm:$0xff]
        %v2373 = vld [vmem:[%s2356 + $0x80] sm:$0xff]
        %v2374 = vld [vmem:[%s2356 + $0x88] sm:$0xff]
        %v2375 = vld [vmem:[%s2356 + $0x90] sm:$0xff]
        %v2376 = vld [vmem:[%s2356 + $0x98] sm:$0xff]
        %v2377 = vld [vmem:[%s2356 + $0xa0] sm:$0xff]
        %v2378 = vld [vmem:[%s2356 + $0xa8] sm:$0xff]
        %v2379 = vld [vmem:[%s2356 + $0xb0] sm:$0xff]
        %v2380 = vld [vmem:[%s2356 + $0xb8] sm:$0xff]
        %v2381 = vld [vmem:[%s2356 + $0xc0] sm:$0xff]
        %v2382 = vld [vmem:[%s2356 + $0xc8] sm:$0xff]
        %v2383 = vld [vmem:[%s2356 + $0xd0] sm:$0xff]
        %v2384 = vld [vmem:[%s2356 + $0xd8] sm:$0xff]
        %v2385 = vld [vmem:[%s2356 + $0xe0] sm:$0xff]
        %v2386 = vld [vmem:[%s2356 + $0xe8] sm:$0xff]
        %v2387 = vld [vmem:[%s2356 + $0xf0] sm:$0xff]
        %v2388 = vld [vmem:[%s2356 + $0xf8] sm:$0xff]
        %v2389 = vld [vmem:[%s2356 + $0x100] sm:$0xff]
        %v2390 = vld [vmem:[%s2356 + $0x108] sm:$0xff]
        %v2391 = vld [vmem:[%s2356 + $0x110] sm:$0xff]
        %v2392 = vld [vmem:[%s2356 + $0x118] sm:$0xff]
        %v2393 = vld [vmem:[%s2356 + $0x120] sm:$0xff]
        %v2394 = vld [vmem:[%s2356 + $0x128] sm:$0xff]
        %v2395 = vld [vmem:[%s2356 + $0x130] sm:$0xff]
        %v2396 = vld [vmem:[%s2356 + $0x138] sm:$0xff]
        %v2397 = vld [vmem:[%s2356 + $0x140] sm:$0xff]
        %v2398 = vld [vmem:[%s2356 + $0x148] sm:$0xff]
        %v2399 = vld [vmem:[%s2356 + $0x150] sm:$0xff]
        %v2400 = vld [vmem:[%s2356 + $0x158] sm:$0xff]
        %v2401 = vld [vmem:[%s2356 + $0x160] sm:$0xff]
        %v2402 = vld [vmem:[%s2356 + $0x168] sm:$0xff]
        %v2403 = vld [vmem:[%s2356 + $0x170] sm:$0xff]
        %v2404 = vld [vmem:[%s2356 + $0x178] sm:$0xff]
        %v2405 = vld [vmem:[%s2356 + $0x180] sm:$0xff]
        %v2406 = vld [vmem:[%s2356 + $0x188] sm:$0xff]
        %v2407 = vld [vmem:[%s2356 + $0x190] sm:$0xff]
        %v2408 = vld [vmem:[%s2356 + $0x198] sm:$0xff]
        %v2409 = vld [vmem:[%s2356 + $0x1a0] sm:$0xff]
        %v2410 = vld [vmem:[%s2356 + $0x1a8] sm:$0xff]
        %v2411 = vld [vmem:[%s2356 + $0x1b0] sm:$0xff]
        %v2412 = vld [vmem:[%s2356 + $0x1b8] sm:$0xff]
        %v2413 = vld [vmem:[%s2356 + $0x1c0] sm:$0xff]
        %v2414 = vld [vmem:[%s2356 + $0x1c8] sm:$0xff]
        %v2415 = vld [vmem:[%s2356 + $0x1d0] sm:$0xff]
        %v2416 = vld [vmem:[%s2356 + $0x1d8] sm:$0xff]
        %vm2417 = vcmask 261120
        %v2419 = vsel %vm2417, %v1286, 0
        %2421 = vmatprep.subr.mxu0 %v2358
        %2422 = vmatpush1.msra.mxu0 %v2357
        %2423 = vmatprep.subr.mxu0 %v2361
        %2424 = vmatpush1.msra.mxu0 %v2360
        %2425 = vmatprep.subr.mxu0 %v2364
        %2426 = vmatpush1.msra.mxu0 %v2363
        %2427 = vmatprep.subr.mxu0 %v2367
        %2428 = vmatpush1.msra.mxu0 %v2366
        %2429 = vmatprep.subr.mxu0 %v2370
        %2430 = vmatpush1.msra.mxu0 %v2369
        %2431 = vmatprep.subr.mxu0 %v2373
        %2432 = vmatpush1.msra.mxu0 %v2372
        %2433 = vmatprep.subr.mxu0 %v2376
        %2434 = vmatpush1.msra.mxu0 %v2375
        %2435 = vmatprep.subr.mxu0 %v2379
        %2436 = vmatpush1.msra.mxu0 %v2378
        %2437 = vmatprep.subr.mxu0 %v2382
        %2438 = vmatpush1.msra.mxu0 %v2381
        %2439 = vmatprep.subr.mxu0 %v2385
        %2440 = vmatpush1.msra.mxu0 %v2384
        %2441 = vmatprep.subr.mxu0 %v2388
        %2442 = vmatpush1.msra.mxu0 %v2387
        %2443 = vmatprep.subr.mxu0 %v2391
        %2444 = vmatpush1.msra.mxu0 %v2390
        %2445 = vmatprep.subr.mxu0 %v2394
        %2446 = vmatpush1.msra.mxu0 %v2393
        %2447 = vmatprep.subr.mxu0 %v2397
        %2448 = vmatpush1.msra.mxu0 %v2396
        %2449 = vmatprep.subr.mxu0 %v2400
        %2450 = vmatpush1.msra.mxu0 %v2399
        %2451 = vmatprep.subr.mxu0 %v2403
        %2452 = vmatpush1.msra.mxu0 %v2402
        %2453 = vmatprep.subr.mxu0 %v2406
        %2454 = vmatpush1.msra.mxu0 %v2405
        %2455 = vmatprep.subr.mxu0 %v2409
        %2456 = vmatpush1.msra.mxu0 %v2408
        %2457 = vmatprep.subr.mxu0 %v2412
        %2458 = vmatpush1.msra.mxu0 %v2411
        %2459 = vmatprep.subr.mxu0 %v2415
        %2460 = vmatpush1.msra.mxu0 %v2414
        %2461 = vmatprep.subr.mxu0 0.0
        %2462 = vmatpush1.msra.mxu0 0.0
        %2463 = vmatprep.subr.mxu0 0.0
        %2464 = vmatpush1.msra.mxu0 0.0
        %2465 = vmatprep.subr.mxu0 0.0
        %2466 = vmatpush1.msra.mxu0 0.0
        %2467 = vmatprep.subr.mxu0 0.0
        %2468 = vmatpush1.msra.mxu0 0.0
        %2469 = vmatprep.subr.mxu0 0.0
        %2470 = vmatpush1.msra.mxu0 0.0
        %2471 = vmatprep.subr.mxu0 0.0
        %2472 = vmatpush1.msra.mxu0 0.0
        %2473 = vmatprep.subr.mxu0 0.0
        %2474 = vmatpush1.msra.mxu0 0.0
        %2475 = vmatprep.subr.mxu0 0.0
        %2476 = vmatpush1.msra.mxu0 0.0
        %2477 = vmatprep.subr.mxu0 0.0
        %2478 = vmatpush1.msra.mxu0 0.0
        %2479 = vmatprep.subr.mxu0 0.0
        %2480 = vmatpush1.msra.mxu0 0.0
        %2481 = vmatprep.subr.mxu0 0.0
        %2482 = vmatpush1.msra.mxu0 0.0
        %2483 = vmatprep.subr.mxu0 0.0
        %2484 = vmatpush1.msra.mxu0 0.0
        %2485 = vmatprep.mubr.f32.mxu0 %v2419
        %2486 = vmatmul.mubr.f32.gmra.mrb[0].mxu0 %v1285
        %v2487 = vpop.f32.mrb[0].mxu0
        %v2488 = vadd.f32 0.0, %v2487
        %v2489 = vpop.f32.mrb[0].mxu0
        %v2490 = vadd.f32 0.0, %v2489
        %2491 = vdwg.mxu0
        %2492 = vmatprep.subr.mxu0 0.0
        %2493 = vmatpush1.msra.mxu0 %v2359
        %2494 = vmatprep.subr.mxu0 0.0
        %2495 = vmatpush1.msra.mxu0 %v2362
        %2496 = vmatprep.subr.mxu0 0.0
        %2497 = vmatpush1.msra.mxu0 %v2365
        %2498 = vmatprep.subr.mxu0 0.0
        %2499 = vmatpush1.msra.mxu0 %v2368
        %2500 = vmatprep.subr.mxu0 0.0
        %2501 = vmatpush1.msra.mxu0 %v2371
        %2502 = vmatprep.subr.mxu0 0.0
        %2503 = vmatpush1.msra.mxu0 %v2374
        %2504 = vmatprep.subr.mxu0 0.0
        %2505 = vmatpush1.msra.mxu0 %v2377
        %2506 = vmatprep.subr.mxu0 0.0
        %2507 = vmatpush1.msra.mxu0 %v2380
        %2508 = vmatprep.subr.mxu0 0.0
        %2509 = vmatpush1.msra.mxu0 %v2383
        %2510 = vmatprep.subr.mxu0 0.0
        %2511 = vmatpush1.msra.mxu0 %v2386
        %2512 = vmatprep.subr.mxu0 0.0
        %2513 = vmatpush1.msra.mxu0 %v2389
        %2514 = vmatprep.subr.mxu0 0.0
        %2515 = vmatpush1.msra.mxu0 %v2392
        %2516 = vmatprep.subr.mxu0 0.0
        %2517 = vmatpush1.msra.mxu0 %v2395
        %2518 = vmatprep.subr.mxu0 0.0
        %2519 = vmatpush1.msra.mxu0 %v2398
        %2520 = vmatprep.subr.mxu0 0.0
        %2521 = vmatpush1.msra.mxu0 %v2401
        %2522 = vmatprep.subr.mxu0 0.0
        %2523 = vmatpush1.msra.mxu0 %v2404
        %2524 = vmatprep.subr.mxu0 0.0
        %2525 = vmatpush1.msra.mxu0 %v2407
        %2526 = vmatprep.subr.mxu0 0.0
        %2527 = vmatpush1.msra.mxu0 %v2410
        %2528 = vmatprep.subr.mxu0 0.0
        %2529 = vmatpush1.msra.mxu0 %v2413
        %2530 = vmatprep.subr.mxu0 0.0
        %2531 = vmatpush1.msra.mxu0 %v2416
        %2532 = vmatprep.subr.mxu0 0.0
        %2533 = vmatpush1.msra.mxu0 0.0
        %2534 = vmatprep.subr.mxu0 0.0
        %2535 = vmatpush1.msra.mxu0 0.0
        %2536 = vmatprep.subr.mxu0 0.0
        %2537 = vmatpush1.msra.mxu0 0.0
        %2538 = vmatprep.subr.mxu0 0.0
        %2539 = vmatpush1.msra.mxu0 0.0
        %2540 = vmatprep.subr.mxu0 0.0
        %2541 = vmatpush1.msra.mxu0 0.0
        %2542 = vmatprep.subr.mxu0 0.0
        %2543 = vmatpush1.msra.mxu0 0.0
        %2544 = vmatprep.subr.mxu0 0.0
        %2545 = vmatpush1.msra.mxu0 0.0
        %2546 = vmatprep.subr.mxu0 0.0
        %2547 = vmatpush1.msra.mxu0 0.0
        %2548 = vmatprep.subr.mxu0 0.0
        %2549 = vmatpush1.msra.mxu0 0.0
        %2550 = vmatprep.subr.mxu0 0.0
        %2551 = vmatpush1.msra.mxu0 0.0
        %2552 = vmatprep.subr.mxu0 0.0
        %2553 = vmatpush1.msra.mxu0 0.0
        %2554 = vmatprep.subr.mxu0 0.0
        %2555 = vmatpush1.msra.mxu0 0.0
        %2556 = vmatprep.mubr.f32.mxu0 %v2419
        %2557 = vmatmul.mubr.f32.gmra.mrb[0].mxu0 %v1285
        %v2558 = vpop.f32.mrb[0].mxu0
        %v2559 = vadd.f32 0.0, %v2558
        %v2560 = vpop.f32.mrb[0].mxu0
        %2561 = vdwg.mxu0
        %v2563 = vsel %vm2417, %v950, 0
        %2565 = vmatprep.subr.mxu0 %v2297
        %2566 = vmatpush1.msra.mxu0 %v2296
        %2567 = vmatprep.subr.mxu0 %v2300
        %2568 = vmatpush1.msra.mxu0 %v2299
        %2569 = vmatprep.subr.mxu0 %v2303
        %2570 = vmatpush1.msra.mxu0 %v2302
        %2571 = vmatprep.subr.mxu0 %v2306
        %2572 = vmatpush1.msra.mxu0 %v2305
        %2573 = vmatprep.subr.mxu0 %v2309
        %2574 = vmatpush1.msra.mxu0 %v2308
        %2575 = vmatprep.subr.mxu0 %v2312
        %2576 = vmatpush1.msra.mxu0 %v2311
        %2577 = vmatprep.subr.mxu0 %v2315
        %2578 = vmatpush1.msra.mxu0 %v2314
        %2579 = vmatprep.subr.mxu0 %v2318
        %2580 = vmatpush1.msra.mxu0 %v2317
        %2581 = vmatprep.subr.mxu0 %v2321
        %2582 = vmatpush1.msra.mxu0 %v2320
        %2583 = vmatprep.subr.mxu0 %v2324
        %2584 = vmatpush1.msra.mxu0 %v2323
        %2585 = vmatprep.subr.mxu0 %v2327
        %2586 = vmatpush1.msra.mxu0 %v2326
        %2587 = vmatprep.subr.mxu0 %v2330
        %2588 = vmatpush1.msra.mxu0 %v2329
        %2589 = vmatprep.subr.mxu0 %v2333
        %2590 = vmatpush1.msra.mxu0 %v2332
        %2591 = vmatprep.subr.mxu0 %v2336
        %2592 = vmatpush1.msra.mxu0 %v2335
        %2593 = vmatprep.subr.mxu0 %v2339
        %2594 = vmatpush1.msra.mxu0 %v2338
        %2595 = vmatprep.subr.mxu0 %v2342
        %2596 = vmatpush1.msra.mxu0 %v2341
        %2597 = vmatprep.subr.mxu0 %v2345
        %2598 = vmatpush1.msra.mxu0 %v2344
        %2599 = vmatprep.subr.mxu0 %v2348
        %2600 = vmatpush1.msra.mxu0 %v2347
        %2601 = vmatprep.subr.mxu0 %v2351
        %2602 = vmatpush1.msra.mxu0 %v2350
        %2603 = vmatprep.subr.mxu0 %v2354
        %2604 = vmatpush1.msra.mxu0 %v2353
        %2605 = vmatprep.subr.mxu0 0.0
        %2606 = vmatpush1.msra.mxu0 0.0
        %2607 = vmatprep.subr.mxu0 0.0
        %2608 = vmatpush1.msra.mxu0 0.0
        %2609 = vmatprep.subr.mxu0 0.0
        %2610 = vmatpush1.msra.mxu0 0.0
        %2611 = vmatprep.subr.mxu0 0.0
        %2612 = vmatpush1.msra.mxu0 0.0
        %2613 = vmatprep.subr.mxu0 0.0
        %2614 = vmatpush1.msra.mxu0 0.0
        %2615 = vmatprep.subr.mxu0 0.0
        %2616 = vmatpush1.msra.mxu0 0.0
        %2617 = vmatprep.subr.mxu0 0.0
        %2618 = vmatpush1.msra.mxu0 0.0
        %2619 = vmatprep.subr.mxu0 0.0
        %2620 = vmatpush1.msra.mxu0 0.0
        %2621 = vmatprep.subr.mxu0 0.0
        %2622 = vmatpush1.msra.mxu0 0.0
        %2623 = vmatprep.subr.mxu0 0.0
        %2624 = vmatpush1.msra.mxu0 0.0
        %2625 = vmatprep.subr.mxu0 0.0
        %2626 = vmatpush1.msra.mxu0 0.0
        %2627 = vmatprep.subr.mxu0 0.0
        %2628 = vmatpush1.msra.mxu0 0.0
        %2629 = vmatprep.mubr.f32.mxu0 %v2563
        %2630 = vmatmul.mubr.f32.gmra.mrb[0].mxu0 %v949
        %v2631 = vpop.f32.mrb[0].mxu0
        %v2632 = vadd.f32 %v2488, %v2631
        %v2633 = vpop.f32.mrb[0].mxu0
        %v2634 = vadd.f32 %v2490, %v2633
        %2635 = vdwg.mxu0
        %2636 = vmatprep.subr.mxu0 0.0
        %2637 = vmatpush1.msra.mxu0 %v2298
        %2638 = vmatprep.subr.mxu0 0.0
        %2639 = vmatpush1.msra.mxu0 %v2301
        %2640 = vmatprep.subr.mxu0 0.0
        %2641 = vmatpush1.msra.mxu0 %v2304
        %2642 = vmatprep.subr.mxu0 0.0
        %2643 = vmatpush1.msra.mxu0 %v2307
        %2644 = vmatprep.subr.mxu0 0.0
        %2645 = vmatpush1.msra.mxu0 %v2310
        %2646 = vmatprep.subr.mxu0 0.0
        %2647 = vmatpush1.msra.mxu0 %v2313
        %2648 = vmatprep.subr.mxu0 0.0
        %2649 = vmatpush1.msra.mxu0 %v2316
        %2650 = vmatprep.subr.mxu0 0.0
        %2651 = vmatpush1.msra.mxu0 %v2319
        %2652 = vmatprep.subr.mxu0 0.0
        %2653 = vmatpush1.msra.mxu0 %v2322
        %2654 = vmatprep.subr.mxu0 0.0
        %2655 = vmatpush1.msra.mxu0 %v2325
        %2656 = vmatprep.subr.mxu0 0.0
        %2657 = vmatpush1.msra.mxu0 %v2328
        %2658 = vmatprep.subr.mxu0 0.0
        %2659 = vmatpush1.msra.mxu0 %v2331
        %2660 = vmatprep.subr.mxu0 0.0
        %2661 = vmatpush1.msra.mxu0 %v2334
        %2662 = vmatprep.subr.mxu0 0.0
        %2663 = vmatpush1.msra.mxu0 %v2337
        %2664 = vmatprep.subr.mxu0 0.0
        %2665 = vmatpush1.msra.mxu0 %v2340
        %2666 = vmatprep.subr.mxu0 0.0
        %2667 = vmatpush1.msra.mxu0 %v2343
        %2668 = vmatprep.subr.mxu0 0.0
        %2669 = vmatpush1.msra.mxu0 %v2346
        %2670 = vmatprep.subr.mxu0 0.0
        %2671 = vmatpush1.msra.mxu0 %v2349
        %2672 = vmatprep.subr.mxu0 0.0
        %2673 = vmatpush1.msra.mxu0 %v2352
        %2674 = vmatprep.subr.mxu0 0.0
        %2675 = vmatpush1.msra.mxu0 %v2355
        %2676 = vmatprep.subr.mxu0 0.0
        %2677 = vmatpush1.msra.mxu0 0.0
        %2678 = vmatprep.subr.mxu0 0.0
        %2679 = vmatpush1.msra.mxu0 0.0
        %2680 = vmatprep.subr.mxu0 0.0
        %2681 = vmatpush1.msra.mxu0 0.0
        %2682 = vmatprep.subr.mxu0 0.0
        %2683 = vmatpush1.msra.mxu0 0.0
        %2684 = vmatprep.subr.mxu0 0.0
        %2685 = vmatpush1.msra.mxu0 0.0
        %2686 = vmatprep.subr.mxu0 0.0
        %2687 = vmatpush1.msra.mxu0 0.0
        %2688 = vmatprep.subr.mxu0 0.0
        %2689 = vmatpush1.msra.mxu0 0.0
        %2690 = vmatprep.subr.mxu0 0.0
        %2691 = vmatpush1.msra.mxu0 0.0
        %2692 = vmatprep.subr.mxu0 0.0
        %2693 = vmatpush1.msra.mxu0 0.0
        %2694 = vmatprep.subr.mxu0 0.0
        %2695 = vmatpush1.msra.mxu0 0.0
        %2696 = vmatprep.subr.mxu0 0.0
        %2697 = vmatpush1.msra.mxu0 0.0
        %2698 = vmatprep.subr.mxu0 0.0
        %2699 = vmatpush1.msra.mxu0 0.0
        %2700 = vmatprep.mubr.f32.mxu0 %v2563
        %2701 = vmatmul.mubr.f32.gmra.mrb[0].mxu0 %v949
        %v2702 = vpop.f32.mrb[0].mxu0
        %v2703 = vadd.f32 %v2559, %v2702
        %v2704 = vpop.f32.mrb[0].mxu0
        %2705 = vdwg.mxu0
        %v2707 = vlaneseq
        %v2708 = vshrl.u32 %v2707, 7
        %v2709 = vsub.s32 0, %v2708
        %v2710 = vrot.slane %v499, %v2709
        %v2711 = vlaneseq
        %v2712 = vshrl.u32 %v2711, 7
        %v2713 = vsub.s32 1, %v2712
        %v2714 = vrot.slane %v499, %v2713
        %v2715 = vlaneseq
        %v2716 = vshrl.u32 %v2715, 7
        %v2717 = vsub.s32 2, %v2716
        %v2718 = vrot.slane %v499, %v2717
        %v2722 = vmul.f32 %v2632, %v2710
        %v2723 = vmul.f32 %v2634, %v2714
        %v2724 = vmul.f32 %v2703, %v2718
        %v2726 = vlaneseq
        %v2727 = vshrl.u32 %v2726, 7
        %v2728 = vsub.s32 0, %v2727
        %v2729 = vrot.slane %v500, %v2728
        %v2730 = vlaneseq
        %v2731 = vshrl.u32 %v2730, 7
        %v2732 = vsub.s32 1, %v2731
        %v2733 = vrot.slane %v500, %v2732
        %v2734 = vlaneseq
        %v2735 = vshrl.u32 %v2734, 7
        %v2736 = vsub.s32 2, %v2735
        %v2737 = vrot.slane %v500, %v2736
        %v2741 = vadd.f32 %v2722, %v2729
        %v2742 = vadd.f32 %v2723, %v2733
        %v2743 = vadd.f32 %v2724, %v2737
        %v2744 = vmax.f32 %v2741, 0.0
        %v2745 = vmax.f32 %v2742, 0.0
        %v2746 = vmax.f32 %v2743, 0.0
        %v2747 = vld [vmem:[%s4] sm:$0xff]
        %v2748 = vld [vmem:[%s4 + $0x8] sm:$0xff]
        %v2749 = vld [vmem:[%s4 + $0x10] sm:$0xff]
        %v2750 = vld [vmem:[%s4 + $0x18] sm:$0xff]
        %v2751 = vld [vmem:[%s4 + $0x20] sm:$0xff]
        %v2752 = vld [vmem:[%s4 + $0x28] sm:$0xff]
        %v2753 = vld [vmem:[%s4 + $0x30] sm:$0xff]
        %v2754 = vld [vmem:[%s4 + $0x38] sm:$0xff]
        %v2755 = vld [vmem:[%s4 + $0x40] sm:$0xff]
        %v2756 = vld [vmem:[%s4 + $0x48] sm:$0xff]
        %v2757 = vld [vmem:[%s4 + $0x50] sm:$0xff]
        %v2758 = vld [vmem:[%s4 + $0x58] sm:$0xff]
        %v2759 = vld [vmem:[%s4 + $0x60] sm:$0xff]
        %v2760 = vld [vmem:[%s4 + $0x68] sm:$0xff]
        %v2761 = vld [vmem:[%s4 + $0x70] sm:$0xff]
        %v2762 = vld [vmem:[%s4 + $0x78] sm:$0xff]
        %v2763 = vld [vmem:[%s4 + $0x80] sm:$0xff]
        %v2764 = vld [vmem:[%s4 + $0x88] sm:$0xff]
        %v2765 = vld [vmem:[%s4 + $0x90] sm:$0xff]
        %v2766 = vld [vmem:[%s4 + $0x98] sm:$0xff]
        %v2767 = vld [vmem:[%s4 + $0xa0] sm:$0xff]
        %v2768 = vld [vmem:[%s4 + $0xa8] sm:$0xff]
        %v2769 = vld [vmem:[%s4 + $0xb0] sm:$0xff]
        %v2770 = vld [vmem:[%s4 + $0xb8] sm:$0xff]
        %v2771 = vld [vmem:[%s4 + $0xc0] sm:$0xff]
        %v2772 = vld [vmem:[%s4 + $0xc8] sm:$0xff]
        %v2773 = vld [vmem:[%s4 + $0xd0] sm:$0xff]
        %v2774 = vld [vmem:[%s4 + $0xd8] sm:$0xff]
        %v2775 = vld [vmem:[%s4 + $0xe0] sm:$0xff]
        %v2776 = vld [vmem:[%s4 + $0xe8] sm:$0xff]
        %v2777 = vld [vmem:[%s4 + $0xf0] sm:$0xff]
        %v2778 = vld [vmem:[%s4 + $0xf8] sm:$0xff]
        %v2779 = vld [vmem:[%s4 + $0x100] sm:$0xff]
        %v2780 = vld [vmem:[%s4 + $0x108] sm:$0xff]
        %v2781 = vld [vmem:[%s4 + $0x110] sm:$0xff]
        %v2782 = vld [vmem:[%s4 + $0x118] sm:$0xff]
        %v2783 = vld [vmem:[%s4 + $0x120] sm:$0xff]
        %v2784 = vld [vmem:[%s4 + $0x128] sm:$0xff]
        %v2785 = vld [vmem:[%s4 + $0x130] sm:$0xff]
        %v2786 = vld [vmem:[%s4 + $0x138] sm:$0xff]
        %v2787 = vld [vmem:[%s4 + $0x140] sm:$0xff]
        %v2788 = vld [vmem:[%s4 + $0x148] sm:$0xff]
        %v2789 = vld [vmem:[%s4 + $0x150] sm:$0xff]
        %v2790 = vld [vmem:[%s4 + $0x158] sm:$0xff]
        %v2791 = vld [vmem:[%s4 + $0x160] sm:$0xff]
        %v2792 = vld [vmem:[%s4 + $0x168] sm:$0xff]
        %v2793 = vld [vmem:[%s4 + $0x170] sm:$0xff]
        %v2794 = vld [vmem:[%s4 + $0x178] sm:$0xff]
        %v2795 = vld [vmem:[%s4 + $0x180] sm:$0xff]
        %v2796 = vld [vmem:[%s4 + $0x188] sm:$0xff]
        %v2797 = vld [vmem:[%s4 + $0x190] sm:$0xff]
        %v2798 = vld [vmem:[%s4 + $0x198] sm:$0xff]
        %v2799 = vld [vmem:[%s4 + $0x1a0] sm:$0xff]
        %v2800 = vld [vmem:[%s4 + $0x1a8] sm:$0xff]
        %v2801 = vld [vmem:[%s4 + $0x1b0] sm:$0xff]
        %v2802 = vld [vmem:[%s4 + $0x1b8] sm:$0xff]
        %v2803 = vld [vmem:[%s4 + $0x1c0] sm:$0xff]
        %v2804 = vld [vmem:[%s4 + $0x1c8] sm:$0xff]
        %v2805 = vld [vmem:[%s4 + $0x1d0] sm:$0xff]
        %v2806 = vld [vmem:[%s4 + $0x1d8] sm:$0xff]
        %2807 = vmatprep.subr.mxu0 %v2297
        %2808 = vmatpush1.msra.mxu0 %v2296
        %2809 = vmatprep.subr.mxu0 %v2300
        %2810 = vmatpush1.msra.mxu0 %v2299
        %2811 = vmatprep.subr.mxu0 %v2303
        %2812 = vmatpush1.msra.mxu0 %v2302
        %2813 = vmatprep.subr.mxu0 %v2306
        %2814 = vmatpush1.msra.mxu0 %v2305
        %2815 = vmatprep.subr.mxu0 %v2309
        %2816 = vmatpush1.msra.mxu0 %v2308
        %2817 = vmatprep.subr.mxu0 %v2312
        %2818 = vmatpush1.msra.mxu0 %v2311
        %2819 = vmatprep.subr.mxu0 %v2315
        %2820 = vmatpush1.msra.mxu0 %v2314
        %2821 = vmatprep.subr.mxu0 %v2318
        %2822 = vmatpush1.msra.mxu0 %v2317
        %2823 = vmatprep.subr.mxu0 %v2321
        %2824 = vmatpush1.msra.mxu0 %v2320
        %2825 = vmatprep.subr.mxu0 %v2324
        %2826 = vmatpush1.msra.mxu0 %v2323
        %2827 = vmatprep.subr.mxu0 %v2327
        %2828 = vmatpush1.msra.mxu0 %v2326
        %2829 = vmatprep.subr.mxu0 %v2330
        %2830 = vmatpush1.msra.mxu0 %v2329
        %2831 = vmatprep.subr.mxu0 %v2333
        %2832 = vmatpush1.msra.mxu0 %v2332
        %2833 = vmatprep.subr.mxu0 %v2336
        %2834 = vmatpush1.msra.mxu0 %v2335
        %2835 = vmatprep.subr.mxu0 %v2339
        %2836 = vmatpush1.msra.mxu0 %v2338
        %2837 = vmatprep.subr.mxu0 %v2342
        %2838 = vmatpush1.msra.mxu0 %v2341
        %2839 = vmatprep.subr.mxu0 %v2345
        %2840 = vmatpush1.msra.mxu0 %v2344
        %2841 = vmatprep.subr.mxu0 %v2348
        %2842 = vmatpush1.msra.mxu0 %v2347
        %2843 = vmatprep.subr.mxu0 %v2351
        %2844 = vmatpush1.msra.mxu0 %v2350
        %2845 = vmatprep.subr.mxu0 %v2354
        %2846 = vmatpush1.msra.mxu0 %v2353
        %2847 = vmatprep.subr.mxu0 0.0
        %2848 = vmatpush1.msra.mxu0 0.0
        %2849 = vmatprep.subr.mxu0 0.0
        %2850 = vmatpush1.msra.mxu0 0.0
        %2851 = vmatprep.subr.mxu0 0.0
        %2852 = vmatpush1.msra.mxu0 0.0
        %2853 = vmatprep.subr.mxu0 0.0
        %2854 = vmatpush1.msra.mxu0 0.0
        %2855 = vmatprep.subr.mxu0 0.0
        %2856 = vmatpush1.msra.mxu0 0.0
        %2857 = vmatprep.subr.mxu0 0.0
        %2858 = vmatpush1.msra.mxu0 0.0
        %2859 = vmatprep.subr.mxu0 0.0
        %2860 = vmatpush1.msra.mxu0 0.0
        %2861 = vmatprep.subr.mxu0 0.0
        %2862 = vmatpush1.msra.mxu0 0.0
        %2863 = vmatprep.subr.mxu0 0.0
        %2864 = vmatpush1.msra.mxu0 0.0
        %2865 = vmatprep.subr.mxu0 0.0
        %2866 = vmatpush1.msra.mxu0 0.0
        %2867 = vmatprep.subr.mxu0 0.0
        %2868 = vmatpush1.msra.mxu0 0.0
        %2869 = vmatprep.subr.mxu0 0.0
        %2870 = vmatpush1.msra.mxu0 0.0
        %2871 = vmatprep.mubr.f32.mxu0 %v2419
        %2872 = vmatmul.mubr.f32.gmra.mrb[0].mxu0 %v1285
        %v2873 = vpop.f32.mrb[0].mxu0
        %v2874 = vadd.f32 0.0, %v2873
        %v2875 = vpop.f32.mrb[0].mxu0
        %v2876 = vadd.f32 0.0, %v2875
        %2877 = vdwg.mxu0
        %2878 = vmatprep.subr.mxu0 0.0
        %2879 = vmatpush1.msra.mxu0 %v2298
        %2880 = vmatprep.subr.mxu0 0.0
        %2881 = vmatpush1.msra.mxu0 %v2301
        %2882 = vmatprep.subr.mxu0 0.0
        %2883 = vmatpush1.msra.mxu0 %v2304
        %2884 = vmatprep.subr.mxu0 0.0
        %2885 = vmatpush1.msra.mxu0 %v2307
        %2886 = vmatprep.subr.mxu0 0.0
        %2887 = vmatpush1.msra.mxu0 %v2310
        %2888 = vmatprep.subr.mxu0 0.0
        %2889 = vmatpush1.msra.mxu0 %v2313
        %2890 = vmatprep.subr.mxu0 0.0
        %2891 = vmatpush1.msra.mxu0 %v2316
        %2892 = vmatprep.subr.mxu0 0.0
        %2893 = vmatpush1.msra.mxu0 %v2319
        %2894 = vmatprep.subr.mxu0 0.0
        %2895 = vmatpush1.msra.mxu0 %v2322
        %2896 = vmatprep.subr.mxu0 0.0
        %2897 = vmatpush1.msra.mxu0 %v2325
        %2898 = vmatprep.subr.mxu0 0.0
        %2899 = vmatpush1.msra.mxu0 %v2328
        %2900 = vmatprep.subr.mxu0 0.0
        %2901 = vmatpush1.msra.mxu0 %v2331
        %2902 = vmatprep.subr.mxu0 0.0
        %2903 = vmatpush1.msra.mxu0 %v2334
        %2904 = vmatprep.subr.mxu0 0.0
        %2905 = vmatpush1.msra.mxu0 %v2337
        %2906 = vmatprep.subr.mxu0 0.0
        %2907 = vmatpush1.msra.mxu0 %v2340
        %2908 = vmatprep.subr.mxu0 0.0
        %2909 = vmatpush1.msra.mxu0 %v2343
        %2910 = vmatprep.subr.mxu0 0.0
        %2911 = vmatpush1.msra.mxu0 %v2346
        %2912 = vmatprep.subr.mxu0 0.0
        %2913 = vmatpush1.msra.mxu0 %v2349
        %2914 = vmatprep.subr.mxu0 0.0
        %2915 = vmatpush1.msra.mxu0 %v2352
        %2916 = vmatprep.subr.mxu0 0.0
        %2917 = vmatpush1.msra.mxu0 %v2355
        %2918 = vmatprep.subr.mxu0 0.0
        %2919 = vmatpush1.msra.mxu0 0.0
        %2920 = vmatprep.subr.mxu0 0.0
        %2921 = vmatpush1.msra.mxu0 0.0
        %2922 = vmatprep.subr.mxu0 0.0
        %2923 = vmatpush1.msra.mxu0 0.0
        %2924 = vmatprep.subr.mxu0 0.0
        %2925 = vmatpush1.msra.mxu0 0.0
        %2926 = vmatprep.subr.mxu0 0.0
        %2927 = vmatpush1.msra.mxu0 0.0
        %2928 = vmatprep.subr.mxu0 0.0
        %2929 = vmatpush1.msra.mxu0 0.0
        %2930 = vmatprep.subr.mxu0 0.0
        %2931 = vmatpush1.msra.mxu0 0.0
        %2932 = vmatprep.subr.mxu0 0.0
        %2933 = vmatpush1.msra.mxu0 0.0
        %2934 = vmatprep.subr.mxu0 0.0
        %2935 = vmatpush1.msra.mxu0 0.0
        %2936 = vmatprep.subr.mxu0 0.0
        %2937 = vmatpush1.msra.mxu0 0.0
        %2938 = vmatprep.subr.mxu0 0.0
        %2939 = vmatpush1.msra.mxu0 0.0
        %2940 = vmatprep.subr.mxu0 0.0
        %2941 = vmatpush1.msra.mxu0 0.0
        %2942 = vmatprep.mubr.f32.mxu0 %v2419
        %2943 = vmatmul.mubr.f32.gmra.mrb[0].mxu0 %v1285
        %v2944 = vpop.f32.mrb[0].mxu0
        %v2945 = vadd.f32 0.0, %v2944
        %v2946 = vpop.f32.mrb[0].mxu0
        %2947 = vdwg.mxu0
        %2948 = vmatprep.subr.mxu0 %v2748
        %2949 = vmatpush1.msra.mxu0 %v2747
        %2950 = vmatprep.subr.mxu0 %v2751
        %2951 = vmatpush1.msra.mxu0 %v2750
        %2952 = vmatprep.subr.mxu0 %v2754
        %2953 = vmatpush1.msra.mxu0 %v2753
        %2954 = vmatprep.subr.mxu0 %v2757
        %2955 = vmatpush1.msra.mxu0 %v2756
        %2956 = vmatprep.subr.mxu0 %v2760
        %2957 = vmatpush1.msra.mxu0 %v2759
        %2958 = vmatprep.subr.mxu0 %v2763
        %2959 = vmatpush1.msra.mxu0 %v2762
        %2960 = vmatprep.subr.mxu0 %v2766
        %2961 = vmatpush1.msra.mxu0 %v2765
        %2962 = vmatprep.subr.mxu0 %v2769
        %2963 = vmatpush1.msra.mxu0 %v2768
        %2964 = vmatprep.subr.mxu0 %v2772
        %2965 = vmatpush1.msra.mxu0 %v2771
        %2966 = vmatprep.subr.mxu0 %v2775
        %2967 = vmatpush1.msra.mxu0 %v2774
        %2968 = vmatprep.subr.mxu0 %v2778
        %2969 = vmatpush1.msra.mxu0 %v2777
        %2970 = vmatprep.subr.mxu0 %v2781
        %2971 = vmatpush1.msra.mxu0 %v2780
        %2972 = vmatprep.subr.mxu0 %v2784
        %2973 = vmatpush1.msra.mxu0 %v2783
        %2974 = vmatprep.subr.mxu0 %v2787
        %2975 = vmatpush1.msra.mxu0 %v2786
        %2976 = vmatprep.subr.mxu0 %v2790
        %2977 = vmatpush1.msra.mxu0 %v2789
        %2978 = vmatprep.subr.mxu0 %v2793
        %2979 = vmatpush1.msra.mxu0 %v2792
        %2980 = vmatprep.subr.mxu0 %v2796
        %2981 = vmatpush1.msra.mxu0 %v2795
        %2982 = vmatprep.subr.mxu0 %v2799
        %2983 = vmatpush1.msra.mxu0 %v2798
        %2984 = vmatprep.subr.mxu0 %v2802
        %2985 = vmatpush1.msra.mxu0 %v2801
        %2986 = vmatprep.subr.mxu0 %v2805
        %2987 = vmatpush1.msra.mxu0 %v2804
        %2988 = vmatprep.subr.mxu0 0.0
        %2989 = vmatpush1.msra.mxu0 0.0
        %2990 = vmatprep.subr.mxu0 0.0
        %2991 = vmatpush1.msra.mxu0 0.0
        %2992 = vmatprep.subr.mxu0 0.0
        %2993 = vmatpush1.msra.mxu0 0.0
        %2994 = vmatprep.subr.mxu0 0.0
        %2995 = vmatpush1.msra.mxu0 0.0
        %2996 = vmatprep.subr.mxu0 0.0
        %2997 = vmatpush1.msra.mxu0 0.0
        %2998 = vmatprep.subr.mxu0 0.0
        %2999 = vmatpush1.msra.mxu0 0.0
        %3000 = vmatprep.subr.mxu0 0.0
        %3001 = vmatpush1.msra.mxu0 0.0
        %3002 = vmatprep.subr.mxu0 0.0
        %3003 = vmatpush1.msra.mxu0 0.0
        %3004 = vmatprep.subr.mxu0 0.0
        %3005 = vmatpush1.msra.mxu0 0.0
        %3006 = vmatprep.subr.mxu0 0.0
        %3007 = vmatpush1.msra.mxu0 0.0
        %3008 = vmatprep.subr.mxu0 0.0
        %3009 = vmatpush1.msra.mxu0 0.0
        %3010 = vmatprep.subr.mxu0 0.0
        %3011 = vmatpush1.msra.mxu0 0.0
        %3012 = vmatprep.mubr.f32.mxu0 %v2563
        %3013 = vmatmul.mubr.f32.gmra.mrb[0].mxu0 %v949
        %v3014 = vpop.f32.mrb[0].mxu0
        %v3015 = vadd.f32 %v2874, %v3014
        %v3016 = vpop.f32.mrb[0].mxu0
        %v3017 = vadd.f32 %v2876, %v3016
        %3018 = vdwg.mxu0
        %3019 = vmatprep.subr.mxu0 0.0
        %3020 = vmatpush1.msra.mxu0 %v2749
        %3021 = vmatprep.subr.mxu0 0.0
        %3022 = vmatpush1.msra.mxu0 %v2752
        %3023 = vmatprep.subr.mxu0 0.0
        %3024 = vmatpush1.msra.mxu0 %v2755
        %3025 = vmatprep.subr.mxu0 0.0
        %3026 = vmatpush1.msra.mxu0 %v2758
        %3027 = vmatprep.subr.mxu0 0.0
        %3028 = vmatpush1.msra.mxu0 %v2761
        %3029 = vmatprep.subr.mxu0 0.0
        %3030 = vmatpush1.msra.mxu0 %v2764
        %3031 = vmatprep.subr.mxu0 0.0
        %3032 = vmatpush1.msra.mxu0 %v2767
        %3033 = vmatprep.subr.mxu0 0.0
        %3034 = vmatpush1.msra.mxu0 %v2770
        %3035 = vmatprep.subr.mxu0 0.0
        %3036 = vmatpush1.msra.mxu0 %v2773
        %3037 = vmatprep.subr.mxu0 0.0
        %3038 = vmatpush1.msra.mxu0 %v2776
        %3039 = vmatprep.subr.mxu0 0.0
        %3040 = vmatpush1.msra.mxu0 %v2779
        %3041 = vmatprep.subr.mxu0 0.0
        %3042 = vmatpush1.msra.mxu0 %v2782
        %3043 = vmatprep.subr.mxu0 0.0
        %3044 = vmatpush1.msra.mxu0 %v2785
        %3045 = vmatprep.subr.mxu0 0.0
        %3046 = vmatpush1.msra.mxu0 %v2788
        %3047 = vmatprep.subr.mxu0 0.0
        %3048 = vmatpush1.msra.mxu0 %v2791
        %3049 = vmatprep.subr.mxu0 0.0
        %3050 = vmatpush1.msra.mxu0 %v2794
        %3051 = vmatprep.subr.mxu0 0.0
        %3052 = vmatpush1.msra.mxu0 %v2797
        %3053 = vmatprep.subr.mxu0 0.0
        %3054 = vmatpush1.msra.mxu0 %v2800
        %3055 = vmatprep.subr.mxu0 0.0
        %3056 = vmatpush1.msra.mxu0 %v2803
        %3057 = vmatprep.subr.mxu0 0.0
        %3058 = vmatpush1.msra.mxu0 %v2806
        %3059 = vmatprep.subr.mxu0 0.0
        %3060 = vmatpush1.msra.mxu0 0.0
        %3061 = vmatprep.subr.mxu0 0.0
        %3062 = vmatpush1.msra.mxu0 0.0
        %3063 = vmatprep.subr.mxu0 0.0
        %3064 = vmatpush1.msra.mxu0 0.0
        %3065 = vmatprep.subr.mxu0 0.0
        %3066 = vmatpush1.msra.mxu0 0.0
        %3067 = vmatprep.subr.mxu0 0.0
        %3068 = vmatpush1.msra.mxu0 0.0
        %3069 = vmatprep.subr.mxu0 0.0
        %3070 = vmatpush1.msra.mxu0 0.0
        %3071 = vmatprep.subr.mxu0 0.0
        %3072 = vmatpush1.msra.mxu0 0.0
        %3073 = vmatprep.subr.mxu0 0.0
        %3074 = vmatpush1.msra.mxu0 0.0
        %3075 = vmatprep.subr.mxu0 0.0
        %3076 = vmatpush1.msra.mxu0 0.0
        %3077 = vmatprep.subr.mxu0 0.0
        %3078 = vmatpush1.msra.mxu0 0.0
        %3079 = vmatprep.subr.mxu0 0.0
        %3080 = vmatpush1.msra.mxu0 0.0
        %3081 = vmatprep.subr.mxu0 0.0
        %3082 = vmatpush1.msra.mxu0 0.0
        %3083 = vmatprep.mubr.f32.mxu0 %v2563
        %3084 = vmatmul.mubr.f32.gmra.mrb[0].mxu0 %v949
        %v3085 = vpop.f32.mrb[0].mxu0
        %v3086 = vadd.f32 %v2945, %v3085
        %v3087 = vpop.f32.mrb[0].mxu0
        %3088 = vdwg.mxu0
        %v3090 = vsel %vm2417, %v1622, 0
        %3092 = vmatprep.subr.mxu0 %v2358
        %3093 = vmatpush1.msra.mxu0 %v2357
        %3094 = vmatprep.subr.mxu0 %v2361
        %3095 = vmatpush1.msra.mxu0 %v2360
        %3096 = vmatprep.subr.mxu0 %v2364
        %3097 = vmatpush1.msra.mxu0 %v2363
        %3098 = vmatprep.subr.mxu0 %v2367
        %3099 = vmatpush1.msra.mxu0 %v2366
        %3100 = vmatprep.subr.mxu0 %v2370
        %3101 = vmatpush1.msra.mxu0 %v2369
        %3102 = vmatprep.subr.mxu0 %v2373
        %3103 = vmatpush1.msra.mxu0 %v2372
        %3104 = vmatprep.subr.mxu0 %v2376
        %3105 = vmatpush1.msra.mxu0 %v2375
        %3106 = vmatprep.subr.mxu0 %v2379
        %3107 = vmatpush1.msra.mxu0 %v2378
        %3108 = vmatprep.subr.mxu0 %v2382
        %3109 = vmatpush1.msra.mxu0 %v2381
        %3110 = vmatprep.subr.mxu0 %v2385
        %3111 = vmatpush1.msra.mxu0 %v2384
        %3112 = vmatprep.subr.mxu0 %v2388
        %3113 = vmatpush1.msra.mxu0 %v2387
        %3114 = vmatprep.subr.mxu0 %v2391
        %3115 = vmatpush1.msra.mxu0 %v2390
        %3116 = vmatprep.subr.mxu0 %v2394
        %3117 = vmatpush1.msra.mxu0 %v2393
        %3118 = vmatprep.subr.mxu0 %v2397
        %3119 = vmatpush1.msra.mxu0 %v2396
        %3120 = vmatprep.subr.mxu0 %v2400
        %3121 = vmatpush1.msra.mxu0 %v2399
        %3122 = vmatprep.subr.mxu0 %v2403
        %3123 = vmatpush1.msra.mxu0 %v2402
        %3124 = vmatprep.subr.mxu0 %v2406
        %3125 = vmatpush1.msra.mxu0 %v2405
        %3126 = vmatprep.subr.mxu0 %v2409
        %3127 = vmatpush1.msra.mxu0 %v2408
        %3128 = vmatprep.subr.mxu0 %v2412
        %3129 = vmatpush1.msra.mxu0 %v2411
        %3130 = vmatprep.subr.mxu0 %v2415
        %3131 = vmatpush1.msra.mxu0 %v2414
        %3132 = vmatprep.subr.mxu0 0.0
        %3133 = vmatpush1.msra.mxu0 0.0
        %3134 = vmatprep.subr.mxu0 0.0
        %3135 = vmatpush1.msra.mxu0 0.0
        %3136 = vmatprep.subr.mxu0 0.0
        %3137 = vmatpush1.msra.mxu0 0.0
        %3138 = vmatprep.subr.mxu0 0.0
        %3139 = vmatpush1.msra.mxu0 0.0
        %3140 = vmatprep.subr.mxu0 0.0
        %3141 = vmatpush1.msra.mxu0 0.0
        %3142 = vmatprep.subr.mxu0 0.0
        %3143 = vmatpush1.msra.mxu0 0.0
        %3144 = vmatprep.subr.mxu0 0.0
        %3145 = vmatpush1.msra.mxu0 0.0
        %3146 = vmatprep.subr.mxu0 0.0
        %3147 = vmatpush1.msra.mxu0 0.0
        %3148 = vmatprep.subr.mxu0 0.0
        %3149 = vmatpush1.msra.mxu0 0.0
        %3150 = vmatprep.subr.mxu0 0.0
        %3151 = vmatpush1.msra.mxu0 0.0
        %3152 = vmatprep.subr.mxu0 0.0
        %3153 = vmatpush1.msra.mxu0 0.0
        %3154 = vmatprep.subr.mxu0 0.0
        %3155 = vmatpush1.msra.mxu0 0.0
        %3156 = vmatprep.mubr.f32.mxu0 %v3090
        %3157 = vmatmul.mubr.f32.gmra.mrb[0].mxu0 %v1621
        %v3158 = vpop.f32.mrb[0].mxu0
        %v3159 = vadd.f32 0.0, %v3158
        %v3160 = vpop.f32.mrb[0].mxu0
        %v3161 = vadd.f32 0.0, %v3160
        %3162 = vdwg.mxu0
        %3163 = vmatprep.subr.mxu0 0.0
        %3164 = vmatpush1.msra.mxu0 %v2359
        %3165 = vmatprep.subr.mxu0 0.0
        %3166 = vmatpush1.msra.mxu0 %v2362
        %3167 = vmatprep.subr.mxu0 0.0
        %3168 = vmatpush1.msra.mxu0 %v2365
        %3169 = vmatprep.subr.mxu0 0.0
        %3170 = vmatpush1.msra.mxu0 %v2368
        %3171 = vmatprep.subr.mxu0 0.0
        %3172 = vmatpush1.msra.mxu0 %v2371
        %3173 = vmatprep.subr.mxu0 0.0
        %3174 = vmatpush1.msra.mxu0 %v2374
        %3175 = vmatprep.subr.mxu0 0.0
        %3176 = vmatpush1.msra.mxu0 %v2377
        %3177 = vmatprep.subr.mxu0 0.0
        %3178 = vmatpush1.msra.mxu0 %v2380
        %3179 = vmatprep.subr.mxu0 0.0
        %3180 = vmatpush1.msra.mxu0 %v2383
        %3181 = vmatprep.subr.mxu0 0.0
        %3182 = vmatpush1.msra.mxu0 %v2386
        %3183 = vmatprep.subr.mxu0 0.0
        %3184 = vmatpush1.msra.mxu0 %v2389
        %3185 = vmatprep.subr.mxu0 0.0
        %3186 = vmatpush1.msra.mxu0 %v2392
        %3187 = vmatprep.subr.mxu0 0.0
        %3188 = vmatpush1.msra.mxu0 %v2395
        %3189 = vmatprep.subr.mxu0 0.0
        %3190 = vmatpush1.msra.mxu0 %v2398
        %3191 = vmatprep.subr.mxu0 0.0
        %3192 = vmatpush1.msra.mxu0 %v2401
        %3193 = vmatprep.subr.mxu0 0.0
        %3194 = vmatpush1.msra.mxu0 %v2404
        %3195 = vmatprep.subr.mxu0 0.0
        %3196 = vmatpush1.msra.mxu0 %v2407
        %3197 = vmatprep.subr.mxu0 0.0
        %3198 = vmatpush1.msra.mxu0 %v2410
        %3199 = vmatprep.subr.mxu0 0.0
        %3200 = vmatpush1.msra.mxu0 %v2413
        %3201 = vmatprep.subr.mxu0 0.0
        %3202 = vmatpush1.msra.mxu0 %v2416
        %3203 = vmatprep.subr.mxu0 0.0
        %3204 = vmatpush1.msra.mxu0 0.0
        %3205 = vmatprep.subr.mxu0 0.0
        %3206 = vmatpush1.msra.mxu0 0.0
        %3207 = vmatprep.subr.mxu0 0.0
        %3208 = vmatpush1.msra.mxu0 0.0
        %3209 = vmatprep.subr.mxu0 0.0
        %3210 = vmatpush1.msra.mxu0 0.0
        %3211 = vmatprep.subr.mxu0 0.0
        %3212 = vmatpush1.msra.mxu0 0.0
        %3213 = vmatprep.subr.mxu0 0.0
        %3214 = vmatpush1.msra.mxu0 0.0
        %3215 = vmatprep.subr.mxu0 0.0
        %3216 = vmatpush1.msra.mxu0 0.0
        %3217 = vmatprep.subr.mxu0 0.0
        %3218 = vmatpush1.msra.mxu0 0.0
        %3219 = vmatprep.subr.mxu0 0.0
        %3220 = vmatpush1.msra.mxu0 0.0
        %3221 = vmatprep.subr.mxu0 0.0
        %3222 = vmatpush1.msra.mxu0 0.0
        %3223 = vmatprep.subr.mxu0 0.0
        %3224 = vmatpush1.msra.mxu0 0.0
        %3225 = vmatprep.subr.mxu0 0.0
        %3226 = vmatpush1.msra.mxu0 0.0
        %3227 = vmatprep.mubr.f32.mxu0 %v3090
        %3228 = vmatmul.mubr.f32.gmra.mrb[0].mxu0 %v1621
        %v3229 = vpop.f32.mrb[0].mxu0
        %v3230 = vadd.f32 0.0, %v3229
        %v3231 = vpop.f32.mrb[0].mxu0
        %3232 = vdwg.mxu0
        %v3233 = vadd.f32 %v3015, %v3159
        %v3234 = vadd.f32 %v3017, %v3161
        %v3235 = vadd.f32 %v3086, %v3230
        %v3236 = vmul.f32 %v3233, %v2710
        %v3237 = vmul.f32 %v3234, %v2714
        %v3238 = vmul.f32 %v3235, %v2718
        %v3239 = vadd.f32 %v3236, %v2729
        %v3240 = vadd.f32 %v3237, %v2733
        %v3241 = vadd.f32 %v3238, %v2737
        %v3242 = vmax.f32 %v3239, 0.0
        %v3243 = vmax.f32 %v3240, 0.0
        %v3244 = vmax.f32 %v3241, 0.0
        %3245 = vmatprep.subr.mxu0 %v2297
        %3246 = vmatpush1.msra.mxu0 %v2296
        %3247 = vmatprep.subr.mxu0 %v2300
        %3248 = vmatpush1.msra.mxu0 %v2299
        %3249 = vmatprep.subr.mxu0 %v2303
        %3250 = vmatpush1.msra.mxu0 %v2302
        %3251 = vmatprep.subr.mxu0 %v2306
        %3252 = vmatpush1.msra.mxu0 %v2305
        %3253 = vmatprep.subr.mxu0 %v2309
        %3254 = vmatpush1.msra.mxu0 %v2308
        %3255 = vmatprep.subr.mxu0 %v2312
        %3256 = vmatpush1.msra.mxu0 %v2311
        %3257 = vmatprep.subr.mxu0 %v2315
        %3258 = vmatpush1.msra.mxu0 %v2314
        %3259 = vmatprep.subr.mxu0 %v2318
        %3260 = vmatpush1.msra.mxu0 %v2317
        %3261 = vmatprep.subr.mxu0 %v2321
        %3262 = vmatpush1.msra.mxu0 %v2320
        %3263 = vmatprep.subr.mxu0 %v2324
        %3264 = vmatpush1.msra.mxu0 %v2323
        %3265 = vmatprep.subr.mxu0 %v2327
        %3266 = vmatpush1.msra.mxu0 %v2326
        %3267 = vmatprep.subr.mxu0 %v2330
        %3268 = vmatpush1.msra.mxu0 %v2329
        %3269 = vmatprep.subr.mxu0 %v2333
        %3270 = vmatpush1.msra.mxu0 %v2332
        %3271 = vmatprep.subr.mxu0 %v2336
        %3272 = vmatpush1.msra.mxu0 %v2335
        %3273 = vmatprep.subr.mxu0 %v2339
        %3274 = vmatpush1.msra.mxu0 %v2338
        %3275 = vmatprep.subr.mxu0 %v2342
        %3276 = vmatpush1.msra.mxu0 %v2341
        %3277 = vmatprep.subr.mxu0 %v2345
        %3278 = vmatpush1.msra.mxu0 %v2344
        %3279 = vmatprep.subr.mxu0 %v2348
        %3280 = vmatpush1.msra.mxu0 %v2347
        %3281 = vmatprep.subr.mxu0 %v2351
        %3282 = vmatpush1.msra.mxu0 %v2350
        %3283 = vmatprep.subr.mxu0 %v2354
        %3284 = vmatpush1.msra.mxu0 %v2353
        %3285 = vmatprep.subr.mxu0 0.0
        %3286 = vmatpush1.msra.mxu0 0.0
        %3287 = vmatprep.subr.mxu0 0.0
        %3288 = vmatpush1.msra.mxu0 0.0
        %3289 = vmatprep.subr.mxu0 0.0
        %3290 = vmatpush1.msra.mxu0 0.0
        %3291 = vmatprep.subr.mxu0 0.0
        %3292 = vmatpush1.msra.mxu0 0.0
        %3293 = vmatprep.subr.mxu0 0.0
        %3294 = vmatpush1.msra.mxu0 0.0
        %3295 = vmatprep.subr.mxu0 0.0
        %3296 = vmatpush1.msra.mxu0 0.0
        %3297 = vmatprep.subr.mxu0 0.0
        %3298 = vmatpush1.msra.mxu0 0.0
        %3299 = vmatprep.subr.mxu0 0.0
        %3300 = vmatpush1.msra.mxu0 0.0
        %3301 = vmatprep.subr.mxu0 0.0
        %3302 = vmatpush1.msra.mxu0 0.0
        %3303 = vmatprep.subr.mxu0 0.0
        %3304 = vmatpush1.msra.mxu0 0.0
        %3305 = vmatprep.subr.mxu0 0.0
        %3306 = vmatpush1.msra.mxu0 0.0
        %3307 = vmatprep.subr.mxu0 0.0
        %3308 = vmatpush1.msra.mxu0 0.0
        %3309 = vmatprep.mubr.f32.mxu0 %v3090
        %3310 = vmatmul.mubr.f32.gmra.mrb[0].mxu0 %v1621
        %v3311 = vpop.f32.mrb[0].mxu0
        %v3312 = vadd.f32 0.0, %v3311
        %v3313 = vpop.f32.mrb[0].mxu0
        %v3314 = vadd.f32 0.0, %v3313
        %3315 = vdwg.mxu0
        %3316 = vmatprep.subr.mxu0 0.0
        %3317 = vmatpush1.msra.mxu0 %v2298
        %3318 = vmatprep.subr.mxu0 0.0
        %3319 = vmatpush1.msra.mxu0 %v2301
        %3320 = vmatprep.subr.mxu0 0.0
        %3321 = vmatpush1.msra.mxu0 %v2304
        %3322 = vmatprep.subr.mxu0 0.0
        %3323 = vmatpush1.msra.mxu0 %v2307
        %3324 = vmatprep.subr.mxu0 0.0
        %3325 = vmatpush1.msra.mxu0 %v2310
        %3326 = vmatprep.subr.mxu0 0.0
        %3327 = vmatpush1.msra.mxu0 %v2313
        %3328 = vmatprep.subr.mxu0 0.0
        %3329 = vmatpush1.msra.mxu0 %v2316
        %3330 = vmatprep.subr.mxu0 0.0
        %3331 = vmatpush1.msra.mxu0 %v2319
        %3332 = vmatprep.subr.mxu0 0.0
        %3333 = vmatpush1.msra.mxu0 %v2322
        %3334 = vmatprep.subr.mxu0 0.0
        %3335 = vmatpush1.msra.mxu0 %v2325
        %3336 = vmatprep.subr.mxu0 0.0
        %3337 = vmatpush1.msra.mxu0 %v2328
        %3338 = vmatprep.subr.mxu0 0.0
        %3339 = vmatpush1.msra.mxu0 %v2331
        %3340 = vmatprep.subr.mxu0 0.0
        %3341 = vmatpush1.msra.mxu0 %v2334
        %3342 = vmatprep.subr.mxu0 0.0
        %3343 = vmatpush1.msra.mxu0 %v2337
        %3344 = vmatprep.subr.mxu0 0.0
        %3345 = vmatpush1.msra.mxu0 %v2340
        %3346 = vmatprep.subr.mxu0 0.0
        %3347 = vmatpush1.msra.mxu0 %v2343
        %3348 = vmatprep.subr.mxu0 0.0
        %3349 = vmatpush1.msra.mxu0 %v2346
        %3350 = vmatprep.subr.mxu0 0.0
        %3351 = vmatpush1.msra.mxu0 %v2349
        %3352 = vmatprep.subr.mxu0 0.0
        %3353 = vmatpush1.msra.mxu0 %v2352
        %3354 = vmatprep.subr.mxu0 0.0
        %3355 = vmatpush1.msra.mxu0 %v2355
        %3356 = vmatprep.subr.mxu0 0.0
        %3357 = vmatpush1.msra.mxu0 0.0
        %3358 = vmatprep.subr.mxu0 0.0
        %3359 = vmatpush1.msra.mxu0 0.0
        %3360 = vmatprep.subr.mxu0 0.0
        %3361 = vmatpush1.msra.mxu0 0.0
        %3362 = vmatprep.subr.mxu0 0.0
        %3363 = vmatpush1.msra.mxu0 0.0
        %3364 = vmatprep.subr.mxu0 0.0
        %3365 = vmatpush1.msra.mxu0 0.0
        %3366 = vmatprep.subr.mxu0 0.0
        %3367 = vmatpush1.msra.mxu0 0.0
        %3368 = vmatprep.subr.mxu0 0.0
        %3369 = vmatpush1.msra.mxu0 0.0
        %3370 = vmatprep.subr.mxu0 0.0
        %3371 = vmatpush1.msra.mxu0 0.0
        %3372 = vmatprep.subr.mxu0 0.0
        %3373 = vmatpush1.msra.mxu0 0.0
        %3374 = vmatprep.subr.mxu0 0.0
        %3375 = vmatpush1.msra.mxu0 0.0
        %3376 = vmatprep.subr.mxu0 0.0
        %3377 = vmatpush1.msra.mxu0 0.0
        %3378 = vmatprep.subr.mxu0 0.0
        %3379 = vmatpush1.msra.mxu0 0.0
        %3380 = vmatprep.mubr.f32.mxu0 %v3090
        %3381 = vmatmul.mubr.f32.gmra.mrb[0].mxu0 %v1621
        %v3382 = vpop.f32.mrb[0].mxu0
        %v3383 = vadd.f32 0.0, %v3382
        %v3384 = vpop.f32.mrb[0].mxu0
        %3385 = vdwg.mxu0
        %3386 = vmatprep.subr.mxu0 %v2748
        %3387 = vmatpush1.msra.mxu0 %v2747
        %3388 = vmatprep.subr.mxu0 %v2751
        %3389 = vmatpush1.msra.mxu0 %v2750
        %3390 = vmatprep.subr.mxu0 %v2754
        %3391 = vmatpush1.msra.mxu0 %v2753
        %3392 = vmatprep.subr.mxu0 %v2757
        %3393 = vmatpush1.msra.mxu0 %v2756
        %3394 = vmatprep.subr.mxu0 %v2760
        %3395 = vmatpush1.msra.mxu0 %v2759
        %3396 = vmatprep.subr.mxu0 %v2763
        %3397 = vmatpush1.msra.mxu0 %v2762
        %3398 = vmatprep.subr.mxu0 %v2766
        %3399 = vmatpush1.msra.mxu0 %v2765
        %3400 = vmatprep.subr.mxu0 %v2769
        %3401 = vmatpush1.msra.mxu0 %v2768
        %3402 = vmatprep.subr.mxu0 %v2772
        %3403 = vmatpush1.msra.mxu0 %v2771
        %3404 = vmatprep.subr.mxu0 %v2775
        %3405 = vmatpush1.msra.mxu0 %v2774
        %3406 = vmatprep.subr.mxu0 %v2778
        %3407 = vmatpush1.msra.mxu0 %v2777
        %3408 = vmatprep.subr.mxu0 %v2781
        %3409 = vmatpush1.msra.mxu0 %v2780
        %3410 = vmatprep.subr.mxu0 %v2784
        %3411 = vmatpush1.msra.mxu0 %v2783
        %3412 = vmatprep.subr.mxu0 %v2787
        %3413 = vmatpush1.msra.mxu0 %v2786
        %3414 = vmatprep.subr.mxu0 %v2790
        %3415 = vmatpush1.msra.mxu0 %v2789
        %3416 = vmatprep.subr.mxu0 %v2793
        %3417 = vmatpush1.msra.mxu0 %v2792
        %3418 = vmatprep.subr.mxu0 %v2796
        %3419 = vmatpush1.msra.mxu0 %v2795
        %3420 = vmatprep.subr.mxu0 %v2799
        %3421 = vmatpush1.msra.mxu0 %v2798
        %3422 = vmatprep.subr.mxu0 %v2802
        %3423 = vmatpush1.msra.mxu0 %v2801
        %3424 = vmatprep.subr.mxu0 %v2805
        %3425 = vmatpush1.msra.mxu0 %v2804
        %3426 = vmatprep.subr.mxu0 0.0
        %3427 = vmatpush1.msra.mxu0 0.0
        %3428 = vmatprep.subr.mxu0 0.0
        %3429 = vmatpush1.msra.mxu0 0.0
        %3430 = vmatprep.subr.mxu0 0.0
        %3431 = vmatpush1.msra.mxu0 0.0
        %3432 = vmatprep.subr.mxu0 0.0
        %3433 = vmatpush1.msra.mxu0 0.0
        %3434 = vmatprep.subr.mxu0 0.0
        %3435 = vmatpush1.msra.mxu0 0.0
        %3436 = vmatprep.subr.mxu0 0.0
        %3437 = vmatpush1.msra.mxu0 0.0
        %3438 = vmatprep.subr.mxu0 0.0
        %3439 = vmatpush1.msra.mxu0 0.0
        %3440 = vmatprep.subr.mxu0 0.0
        %3441 = vmatpush1.msra.mxu0 0.0
        %3442 = vmatprep.subr.mxu0 0.0
        %3443 = vmatpush1.msra.mxu0 0.0
        %3444 = vmatprep.subr.mxu0 0.0
        %3445 = vmatpush1.msra.mxu0 0.0
        %3446 = vmatprep.subr.mxu0 0.0
        %3447 = vmatpush1.msra.mxu0 0.0
        %3448 = vmatprep.subr.mxu0 0.0
        %3449 = vmatpush1.msra.mxu0 0.0
        %3450 = vmatprep.mubr.f32.mxu0 %v2419
        %3451 = vmatmul.mubr.f32.gmra.mrb[0].mxu0 %v1285
        %v3452 = vpop.f32.mrb[0].mxu0
        %v3453 = vadd.f32 %v3312, %v3452
        %v3454 = vpop.f32.mrb[0].mxu0
        %v3455 = vadd.f32 %v3314, %v3454
        %3456 = vdwg.mxu0
        %3457 = vmatprep.subr.mxu0 0.0
        %3458 = vmatpush1.msra.mxu0 %v2749
        %3459 = vmatprep.subr.mxu0 0.0
        %3460 = vmatpush1.msra.mxu0 %v2752
        %3461 = vmatprep.subr.mxu0 0.0
        %3462 = vmatpush1.msra.mxu0 %v2755
        %3463 = vmatprep.subr.mxu0 0.0
        %3464 = vmatpush1.msra.mxu0 %v2758
        %3465 = vmatprep.subr.mxu0 0.0
        %3466 = vmatpush1.msra.mxu0 %v2761
        %3467 = vmatprep.subr.mxu0 0.0
        %3468 = vmatpush1.msra.mxu0 %v2764
        %3469 = vmatprep.subr.mxu0 0.0
        %3470 = vmatpush1.msra.mxu0 %v2767
        %3471 = vmatprep.subr.mxu0 0.0
        %3472 = vmatpush1.msra.mxu0 %v2770
        %3473 = vmatprep.subr.mxu0 0.0
        %3474 = vmatpush1.msra.mxu0 %v2773
        %3475 = vmatprep.subr.mxu0 0.0
        %3476 = vmatpush1.msra.mxu0 %v2776
        %3477 = vmatprep.subr.mxu0 0.0
        %3478 = vmatpush1.msra.mxu0 %v2779
        %3479 = vmatprep.subr.mxu0 0.0
        %3480 = vmatpush1.msra.mxu0 %v2782
        %3481 = vmatprep.subr.mxu0 0.0
        %3482 = vmatpush1.msra.mxu0 %v2785
        %3483 = vmatprep.subr.mxu0 0.0
        %3484 = vmatpush1.msra.mxu0 %v2788
        %3485 = vmatprep.subr.mxu0 0.0
        %3486 = vmatpush1.msra.mxu0 %v2791
        %3487 = vmatprep.subr.mxu0 0.0
        %3488 = vmatpush1.msra.mxu0 %v2794
        %3489 = vmatprep.subr.mxu0 0.0
        %3490 = vmatpush1.msra.mxu0 %v2797
        %3491 = vmatprep.subr.mxu0 0.0
        %3492 = vmatpush1.msra.mxu0 %v2800
        %3493 = vmatprep.subr.mxu0 0.0
        %3494 = vmatpush1.msra.mxu0 %v2803
        %3495 = vmatprep.subr.mxu0 0.0
        %3496 = vmatpush1.msra.mxu0 %v2806
        %3497 = vmatprep.subr.mxu0 0.0
        %3498 = vmatpush1.msra.mxu0 0.0
        %3499 = vmatprep.subr.mxu0 0.0
        %3500 = vmatpush1.msra.mxu0 0.0
        %3501 = vmatprep.subr.mxu0 0.0
        %3502 = vmatpush1.msra.mxu0 0.0
        %3503 = vmatprep.subr.mxu0 0.0
        %3504 = vmatpush1.msra.mxu0 0.0
        %3505 = vmatprep.subr.mxu0 0.0
        %3506 = vmatpush1.msra.mxu0 0.0
        %3507 = vmatprep.subr.mxu0 0.0
        %3508 = vmatpush1.msra.mxu0 0.0
        %3509 = vmatprep.subr.mxu0 0.0
        %3510 = vmatpush1.msra.mxu0 0.0
        %3511 = vmatprep.subr.mxu0 0.0
        %3512 = vmatpush1.msra.mxu0 0.0
        %3513 = vmatprep.subr.mxu0 0.0
        %3514 = vmatpush1.msra.mxu0 0.0
        %3515 = vmatprep.subr.mxu0 0.0
        %3516 = vmatpush1.msra.mxu0 0.0
        %3517 = vmatprep.subr.mxu0 0.0
        %3518 = vmatpush1.msra.mxu0 0.0
        %3519 = vmatprep.subr.mxu0 0.0
        %3520 = vmatpush1.msra.mxu0 0.0
        %3521 = vmatprep.mubr.f32.mxu0 %v2419
        %3522 = vmatmul.mubr.f32.gmra.mrb[0].mxu0 %v1285
        %v3523 = vpop.f32.mrb[0].mxu0
        %v3524 = vadd.f32 %v3383, %v3523
        %v3525 = vpop.f32.mrb[0].mxu0
        %3526 = vdwg.mxu0
        %v3528 = vsel %vm2417, %v1958, 0
        %3530 = vmatprep.subr.mxu0 %v2358
        %3531 = vmatpush1.msra.mxu0 %v2357
        %3532 = vmatprep.subr.mxu0 %v2361
        %3533 = vmatpush1.msra.mxu0 %v2360
        %3534 = vmatprep.subr.mxu0 %v2364
        %3535 = vmatpush1.msra.mxu0 %v2363
        %3536 = vmatprep.subr.mxu0 %v2367
        %3537 = vmatpush1.msra.mxu0 %v2366
        %3538 = vmatprep.subr.mxu0 %v2370
        %3539 = vmatpush1.msra.mxu0 %v2369
        %3540 = vmatprep.subr.mxu0 %v2373
        %3541 = vmatpush1.msra.mxu0 %v2372
        %3542 = vmatprep.subr.mxu0 %v2376
        %3543 = vmatpush1.msra.mxu0 %v2375
        %3544 = vmatprep.subr.mxu0 %v2379
        %3545 = vmatpush1.msra.mxu0 %v2378
        %3546 = vmatprep.subr.mxu0 %v2382
        %3547 = vmatpush1.msra.mxu0 %v2381
        %3548 = vmatprep.subr.mxu0 %v2385
        %3549 = vmatpush1.msra.mxu0 %v2384
        %3550 = vmatprep.subr.mxu0 %v2388
        %3551 = vmatpush1.msra.mxu0 %v2387
        %3552 = vmatprep.subr.mxu0 %v2391
        %3553 = vmatpush1.msra.mxu0 %v2390
        %3554 = vmatprep.subr.mxu0 %v2394
        %3555 = vmatpush1.msra.mxu0 %v2393
        %3556 = vmatprep.subr.mxu0 %v2397
        %3557 = vmatpush1.msra.mxu0 %v2396
        %3558 = vmatprep.subr.mxu0 %v2400
        %3559 = vmatpush1.msra.mxu0 %v2399
        %3560 = vmatprep.subr.mxu0 %v2403
        %3561 = vmatpush1.msra.mxu0 %v2402
        %3562 = vmatprep.subr.mxu0 %v2406
        %3563 = vmatpush1.msra.mxu0 %v2405
        %3564 = vmatprep.subr.mxu0 %v2409
        %3565 = vmatpush1.msra.mxu0 %v2408
        %3566 = vmatprep.subr.mxu0 %v2412
        %3567 = vmatpush1.msra.mxu0 %v2411
        %3568 = vmatprep.subr.mxu0 %v2415
        %3569 = vmatpush1.msra.mxu0 %v2414
        %3570 = vmatprep.subr.mxu0 0.0
        %3571 = vmatpush1.msra.mxu0 0.0
        %3572 = vmatprep.subr.mxu0 0.0
        %3573 = vmatpush1.msra.mxu0 0.0
        %3574 = vmatprep.subr.mxu0 0.0
        %3575 = vmatpush1.msra.mxu0 0.0
        %3576 = vmatprep.subr.mxu0 0.0
        %3577 = vmatpush1.msra.mxu0 0.0
        %3578 = vmatprep.subr.mxu0 0.0
        %3579 = vmatpush1.msra.mxu0 0.0
        %3580 = vmatprep.subr.mxu0 0.0
        %3581 = vmatpush1.msra.mxu0 0.0
        %3582 = vmatprep.subr.mxu0 0.0
        %3583 = vmatpush1.msra.mxu0 0.0
        %3584 = vmatprep.subr.mxu0 0.0
        %3585 = vmatpush1.msra.mxu0 0.0
        %3586 = vmatprep.subr.mxu0 0.0
        %3587 = vmatpush1.msra.mxu0 0.0
        %3588 = vmatprep.subr.mxu0 0.0
        %3589 = vmatpush1.msra.mxu0 0.0
        %3590 = vmatprep.subr.mxu0 0.0
        %3591 = vmatpush1.msra.mxu0 0.0
        %3592 = vmatprep.subr.mxu0 0.0
        %3593 = vmatpush1.msra.mxu0 0.0
        %3594 = vmatprep.mubr.f32.mxu0 %v3528
        %3595 = vmatmul.mubr.f32.gmra.mrb[0].mxu0 %v1957
        %v3596 = vpop.f32.mrb[0].mxu0
        %v3597 = vadd.f32 0.0, %v3596
        %v3598 = vpop.f32.mrb[0].mxu0
        %v3599 = vadd.f32 0.0, %v3598
        %3600 = vdwg.mxu0
        %3601 = vmatprep.subr.mxu0 0.0
        %3602 = vmatpush1.msra.mxu0 %v2359
        %3603 = vmatprep.subr.mxu0 0.0
        %3604 = vmatpush1.msra.mxu0 %v2362
        %3605 = vmatprep.subr.mxu0 0.0
        %3606 = vmatpush1.msra.mxu0 %v2365
        %3607 = vmatprep.subr.mxu0 0.0
        %3608 = vmatpush1.msra.mxu0 %v2368
        %3609 = vmatprep.subr.mxu0 0.0
        %3610 = vmatpush1.msra.mxu0 %v2371
        %3611 = vmatprep.subr.mxu0 0.0
        %3612 = vmatpush1.msra.mxu0 %v2374
        %3613 = vmatprep.subr.mxu0 0.0
        %3614 = vmatpush1.msra.mxu0 %v2377
        %3615 = vmatprep.subr.mxu0 0.0
        %3616 = vmatpush1.msra.mxu0 %v2380
        %3617 = vmatprep.subr.mxu0 0.0
        %3618 = vmatpush1.msra.mxu0 %v2383
        %3619 = vmatprep.subr.mxu0 0.0
        %3620 = vmatpush1.msra.mxu0 %v2386
        %3621 = vmatprep.subr.mxu0 0.0
        %3622 = vmatpush1.msra.mxu0 %v2389
        %3623 = vmatprep.subr.mxu0 0.0
        %3624 = vmatpush1.msra.mxu0 %v2392
        %3625 = vmatprep.subr.mxu0 0.0
        %3626 = vmatpush1.msra.mxu0 %v2395
        %3627 = vmatprep.subr.mxu0 0.0
        %3628 = vmatpush1.msra.mxu0 %v2398
        %3629 = vmatprep.subr.mxu0 0.0
        %3630 = vmatpush1.msra.mxu0 %v2401
        %3631 = vmatprep.subr.mxu0 0.0
        %3632 = vmatpush1.msra.mxu0 %v2404
        %3633 = vmatprep.subr.mxu0 0.0
        %3634 = vmatpush1.msra.mxu0 %v2407
        %3635 = vmatprep.subr.mxu0 0.0
        %3636 = vmatpush1.msra.mxu0 %v2410
        %3637 = vmatprep.subr.mxu0 0.0
        %3638 = vmatpush1.msra.mxu0 %v2413
        %3639 = vmatprep.subr.mxu0 0.0
        %3640 = vmatpush1.msra.mxu0 %v2416
        %3641 = vmatprep.subr.mxu0 0.0
        %3642 = vmatpush1.msra.mxu0 0.0
        %3643 = vmatprep.subr.mxu0 0.0
        %3644 = vmatpush1.msra.mxu0 0.0
        %3645 = vmatprep.subr.mxu0 0.0
        %3646 = vmatpush1.msra.mxu0 0.0
        %3647 = vmatprep.subr.mxu0 0.0
        %3648 = vmatpush1.msra.mxu0 0.0
        %3649 = vmatprep.subr.mxu0 0.0
        %3650 = vmatpush1.msra.mxu0 0.0
        %3651 = vmatprep.subr.mxu0 0.0
        %3652 = vmatpush1.msra.mxu0 0.0
        %3653 = vmatprep.subr.mxu0 0.0
        %3654 = vmatpush1.msra.mxu0 0.0
        %3655 = vmatprep.subr.mxu0 0.0
        %3656 = vmatpush1.msra.mxu0 0.0
        %3657 = vmatprep.subr.mxu0 0.0
        %3658 = vmatpush1.msra.mxu0 0.0
        %3659 = vmatprep.subr.mxu0 0.0
        %3660 = vmatpush1.msra.mxu0 0.0
        %3661 = vmatprep.subr.mxu0 0.0
        %3662 = vmatpush1.msra.mxu0 0.0
        %3663 = vmatprep.subr.mxu0 0.0
        %3664 = vmatpush1.msra.mxu0 0.0
        %3665 = vmatprep.mubr.f32.mxu0 %v3528
        %3666 = vmatmul.mubr.f32.gmra.mrb[0].mxu0 %v1957
        %v3667 = vpop.f32.mrb[0].mxu0
        %v3668 = vadd.f32 0.0, %v3667
        %v3669 = vpop.f32.mrb[0].mxu0
        %3670 = vdwg.mxu0
        %v3671 = vadd.f32 %v3453, %v3597
        %v3672 = vadd.f32 %v3455, %v3599
        %v3673 = vadd.f32 %v3524, %v3668
        %v3674 = vmul.f32 %v3671, %v2710
        %v3675 = vmul.f32 %v3672, %v2714
        %v3676 = vmul.f32 %v3673, %v2718
        %v3677 = vadd.f32 %v3674, %v2729
        %v3678 = vadd.f32 %v3675, %v2733
        %v3679 = vadd.f32 %v3676, %v2737
        %v3680 = vmax.f32 %v3677, 0.0
        %v3681 = vmax.f32 %v3678, 0.0
        %v3682 = vmax.f32 %v3679, 0.0
        %3683 = vmatprep.subr.mxu0 %v2297
        %3684 = vmatpush1.msra.mxu0 %v2296
        %3685 = vmatprep.subr.mxu0 %v2300
        %3686 = vmatpush1.msra.mxu0 %v2299
        %3687 = vmatprep.subr.mxu0 %v2303
        %3688 = vmatpush1.msra.mxu0 %v2302
        %3689 = vmatprep.subr.mxu0 %v2306
        %3690 = vmatpush1.msra.mxu0 %v2305
        %3691 = vmatprep.subr.mxu0 %v2309
        %3692 = vmatpush1.msra.mxu0 %v2308
        %3693 = vmatprep.subr.mxu0 %v2312
        %3694 = vmatpush1.msra.mxu0 %v2311
        %3695 = vmatprep.subr.mxu0 %v2315
        %3696 = vmatpush1.msra.mxu0 %v2314
        %3697 = vmatprep.subr.mxu0 %v2318
        %3698 = vmatpush1.msra.mxu0 %v2317
        %3699 = vmatprep.subr.mxu0 %v2321
        %3700 = vmatpush1.msra.mxu0 %v2320
        %3701 = vmatprep.subr.mxu0 %v2324
        %3702 = vmatpush1.msra.mxu0 %v2323
        %3703 = vmatprep.subr.mxu0 %v2327
        %3704 = vmatpush1.msra.mxu0 %v2326
        %3705 = vmatprep.subr.mxu0 %v2330
        %3706 = vmatpush1.msra.mxu0 %v2329
        %3707 = vmatprep.subr.mxu0 %v2333
        %3708 = vmatpush1.msra.mxu0 %v2332
        %3709 = vmatprep.subr.mxu0 %v2336
        %3710 = vmatpush1.msra.mxu0 %v2335
        %3711 = vmatprep.subr.mxu0 %v2339
        %3712 = vmatpush1.msra.mxu0 %v2338
        %3713 = vmatprep.subr.mxu0 %v2342
        %3714 = vmatpush1.msra.mxu0 %v2341
        %3715 = vmatprep.subr.mxu0 %v2345
        %3716 = vmatpush1.msra.mxu0 %v2344
        %3717 = vmatprep.subr.mxu0 %v2348
        %3718 = vmatpush1.msra.mxu0 %v2347
        %3719 = vmatprep.subr.mxu0 %v2351
        %3720 = vmatpush1.msra.mxu0 %v2350
        %3721 = vmatprep.subr.mxu0 %v2354
        %3722 = vmatpush1.msra.mxu0 %v2353
        %3723 = vmatprep.subr.mxu0 0.0
        %3724 = vmatpush1.msra.mxu0 0.0
        %3725 = vmatprep.subr.mxu0 0.0
        %3726 = vmatpush1.msra.mxu0 0.0
        %3727 = vmatprep.subr.mxu0 0.0
        %3728 = vmatpush1.msra.mxu0 0.0
        %3729 = vmatprep.subr.mxu0 0.0
        %3730 = vmatpush1.msra.mxu0 0.0
        %3731 = vmatprep.subr.mxu0 0.0
        %3732 = vmatpush1.msra.mxu0 0.0
        %3733 = vmatprep.subr.mxu0 0.0
        %3734 = vmatpush1.msra.mxu0 0.0
        %3735 = vmatprep.subr.mxu0 0.0
        %3736 = vmatpush1.msra.mxu0 0.0
        %3737 = vmatprep.subr.mxu0 0.0
        %3738 = vmatpush1.msra.mxu0 0.0
        %3739 = vmatprep.subr.mxu0 0.0
        %3740 = vmatpush1.msra.mxu0 0.0
        %3741 = vmatprep.subr.mxu0 0.0
        %3742 = vmatpush1.msra.mxu0 0.0
        %3743 = vmatprep.subr.mxu0 0.0
        %3744 = vmatpush1.msra.mxu0 0.0
        %3745 = vmatprep.subr.mxu0 0.0
        %3746 = vmatpush1.msra.mxu0 0.0
        %3747 = vmatprep.mubr.f32.mxu0 %v3528
        %3748 = vmatmul.mubr.f32.gmra.mrb[0].mxu0 %v1957
        %v3749 = vpop.f32.mrb[0].mxu0
        %v3750 = vadd.f32 0.0, %v3749
        %v3751 = vpop.f32.mrb[0].mxu0
        %v3752 = vadd.f32 0.0, %v3751
        %3753 = vdwg.mxu0
        %3754 = vmatprep.subr.mxu0 0.0
        %3755 = vmatpush1.msra.mxu0 %v2298
        %3756 = vmatprep.subr.mxu0 0.0
        %3757 = vmatpush1.msra.mxu0 %v2301
        %3758 = vmatprep.subr.mxu0 0.0
        %3759 = vmatpush1.msra.mxu0 %v2304
        %3760 = vmatprep.subr.mxu0 0.0
        %3761 = vmatpush1.msra.mxu0 %v2307
        %3762 = vmatprep.subr.mxu0 0.0
        %3763 = vmatpush1.msra.mxu0 %v2310
        %3764 = vmatprep.subr.mxu0 0.0
        %3765 = vmatpush1.msra.mxu0 %v2313
        %3766 = vmatprep.subr.mxu0 0.0
        %3767 = vmatpush1.msra.mxu0 %v2316
        %3768 = vmatprep.subr.mxu0 0.0
        %3769 = vmatpush1.msra.mxu0 %v2319
        %3770 = vmatprep.subr.mxu0 0.0
        %3771 = vmatpush1.msra.mxu0 %v2322
        %3772 = vmatprep.subr.mxu0 0.0
        %3773 = vmatpush1.msra.mxu0 %v2325
        %3774 = vmatprep.subr.mxu0 0.0
        %3775 = vmatpush1.msra.mxu0 %v2328
        %3776 = vmatprep.subr.mxu0 0.0
        %3777 = vmatpush1.msra.mxu0 %v2331
        %3778 = vmatprep.subr.mxu0 0.0
        %3779 = vmatpush1.msra.mxu0 %v2334
        %3780 = vmatprep.subr.mxu0 0.0
        %3781 = vmatpush1.msra.mxu0 %v2337
        %3782 = vmatprep.subr.mxu0 0.0
        %3783 = vmatpush1.msra.mxu0 %v2340
        %3784 = vmatprep.subr.mxu0 0.0
        %3785 = vmatpush1.msra.mxu0 %v2343
        %3786 = vmatprep.subr.mxu0 0.0
        %3787 = vmatpush1.msra.mxu0 %v2346
        %3788 = vmatprep.subr.mxu0 0.0
        %3789 = vmatpush1.msra.mxu0 %v2349
        %3790 = vmatprep.subr.mxu0 0.0
        %3791 = vmatpush1.msra.mxu0 %v2352
        %3792 = vmatprep.subr.mxu0 0.0
        %3793 = vmatpush1.msra.mxu0 %v2355
        %3794 = vmatprep.subr.mxu0 0.0
        %3795 = vmatpush1.msra.mxu0 0.0
        %3796 = vmatprep.subr.mxu0 0.0
        %3797 = vmatpush1.msra.mxu0 0.0
        %3798 = vmatprep.subr.mxu0 0.0
        %3799 = vmatpush1.msra.mxu0 0.0
        %3800 = vmatprep.subr.mxu0 0.0
        %3801 = vmatpush1.msra.mxu0 0.0
        %3802 = vmatprep.subr.mxu0 0.0
        %3803 = vmatpush1.msra.mxu0 0.0
        %3804 = vmatprep.subr.mxu0 0.0
        %3805 = vmatpush1.msra.mxu0 0.0
        %3806 = vmatprep.subr.mxu0 0.0
        %3807 = vmatpush1.msra.mxu0 0.0
        %3808 = vmatprep.subr.mxu0 0.0
        %3809 = vmatpush1.msra.mxu0 0.0
        %3810 = vmatprep.subr.mxu0 0.0
        %3811 = vmatpush1.msra.mxu0 0.0
        %3812 = vmatprep.subr.mxu0 0.0
        %3813 = vmatpush1.msra.mxu0 0.0
        %3814 = vmatprep.subr.mxu0 0.0
        %3815 = vmatpush1.msra.mxu0 0.0
        %3816 = vmatprep.subr.mxu0 0.0
        %3817 = vmatpush1.msra.mxu0 0.0
        %3818 = vmatprep.mubr.f32.mxu0 %v3528
        %3819 = vmatmul.mubr.f32.gmra.mrb[0].mxu0 %v1957
        %v3820 = vpop.f32.mrb[0].mxu0
        %v3821 = vadd.f32 0.0, %v3820
        %v3822 = vpop.f32.mrb[0].mxu0
        %3823 = vdwg.mxu0
        %3824 = vmatprep.subr.mxu0 %v2748
        %3825 = vmatpush1.msra.mxu0 %v2747
        %3826 = vmatprep.subr.mxu0 %v2751
        %3827 = vmatpush1.msra.mxu0 %v2750
        %3828 = vmatprep.subr.mxu0 %v2754
        %3829 = vmatpush1.msra.mxu0 %v2753
        %3830 = vmatprep.subr.mxu0 %v2757
        %3831 = vmatpush1.msra.mxu0 %v2756
        %3832 = vmatprep.subr.mxu0 %v2760
        %3833 = vmatpush1.msra.mxu0 %v2759
        %3834 = vmatprep.subr.mxu0 %v2763
        %3835 = vmatpush1.msra.mxu0 %v2762
        %3836 = vmatprep.subr.mxu0 %v2766
        %3837 = vmatpush1.msra.mxu0 %v2765
        %3838 = vmatprep.subr.mxu0 %v2769
        %3839 = vmatpush1.msra.mxu0 %v2768
        %3840 = vmatprep.subr.mxu0 %v2772
        %3841 = vmatpush1.msra.mxu0 %v2771
        %3842 = vmatprep.subr.mxu0 %v2775
        %3843 = vmatpush1.msra.mxu0 %v2774
        %3844 = vmatprep.subr.mxu0 %v2778
        %3845 = vmatpush1.msra.mxu0 %v2777
        %3846 = vmatprep.subr.mxu0 %v2781
        %3847 = vmatpush1.msra.mxu0 %v2780
        %3848 = vmatprep.subr.mxu0 %v2784
        %3849 = vmatpush1.msra.mxu0 %v2783
        %3850 = vmatprep.subr.mxu0 %v2787
        %3851 = vmatpush1.msra.mxu0 %v2786
        %3852 = vmatprep.subr.mxu0 %v2790
        %3853 = vmatpush1.msra.mxu0 %v2789
        %3854 = vmatprep.subr.mxu0 %v2793
        %3855 = vmatpush1.msra.mxu0 %v2792
        %3856 = vmatprep.subr.mxu0 %v2796
        %3857 = vmatpush1.msra.mxu0 %v2795
        %3858 = vmatprep.subr.mxu0 %v2799
        %3859 = vmatpush1.msra.mxu0 %v2798
        %3860 = vmatprep.subr.mxu0 %v2802
        %3861 = vmatpush1.msra.mxu0 %v2801
        %3862 = vmatprep.subr.mxu0 %v2805
        %3863 = vmatpush1.msra.mxu0 %v2804
        %3864 = vmatprep.subr.mxu0 0.0
        %3865 = vmatpush1.msra.mxu0 0.0
        %3866 = vmatprep.subr.mxu0 0.0
        %3867 = vmatpush1.msra.mxu0 0.0
        %3868 = vmatprep.subr.mxu0 0.0
        %3869 = vmatpush1.msra.mxu0 0.0
        %3870 = vmatprep.subr.mxu0 0.0
        %3871 = vmatpush1.msra.mxu0 0.0
        %3872 = vmatprep.subr.mxu0 0.0
        %3873 = vmatpush1.msra.mxu0 0.0
        %3874 = vmatprep.subr.mxu0 0.0
        %3875 = vmatpush1.msra.mxu0 0.0
        %3876 = vmatprep.subr.mxu0 0.0
        %3877 = vmatpush1.msra.mxu0 0.0
        %3878 = vmatprep.subr.mxu0 0.0
        %3879 = vmatpush1.msra.mxu0 0.0
        %3880 = vmatprep.subr.mxu0 0.0
        %3881 = vmatpush1.msra.mxu0 0.0
        %3882 = vmatprep.subr.mxu0 0.0
        %3883 = vmatpush1.msra.mxu0 0.0
        %3884 = vmatprep.subr.mxu0 0.0
        %3885 = vmatpush1.msra.mxu0 0.0
        %3886 = vmatprep.subr.mxu0 0.0
        %3887 = vmatpush1.msra.mxu0 0.0
        %3888 = vmatprep.mubr.f32.mxu0 %v3090
        %3889 = vmatmul.mubr.f32.gmra.mrb[0].mxu0 %v1621
        %v3890 = vpop.f32.mrb[0].mxu0
        %v3891 = vadd.f32 %v3750, %v3890
        %v3892 = vpop.f32.mrb[0].mxu0
        %v3893 = vadd.f32 %v3752, %v3892
        %3894 = vdwg.mxu0
        %3895 = vmatprep.subr.mxu0 0.0
        %3896 = vmatpush1.msra.mxu0 %v2749
        %3897 = vmatprep.subr.mxu0 0.0
        %3898 = vmatpush1.msra.mxu0 %v2752
        %3899 = vmatprep.subr.mxu0 0.0
        %3900 = vmatpush1.msra.mxu0 %v2755
        %3901 = vmatprep.subr.mxu0 0.0
        %3902 = vmatpush1.msra.mxu0 %v2758
        %3903 = vmatprep.subr.mxu0 0.0
        %3904 = vmatpush1.msra.mxu0 %v2761
        %3905 = vmatprep.subr.mxu0 0.0
        %3906 = vmatpush1.msra.mxu0 %v2764
        %3907 = vmatprep.subr.mxu0 0.0
        %3908 = vmatpush1.msra.mxu0 %v2767
        %3909 = vmatprep.subr.mxu0 0.0
        %3910 = vmatpush1.msra.mxu0 %v2770
        %3911 = vmatprep.subr.mxu0 0.0
        %3912 = vmatpush1.msra.mxu0 %v2773
        %3913 = vmatprep.subr.mxu0 0.0
        %3914 = vmatpush1.msra.mxu0 %v2776
        %3915 = vmatprep.subr.mxu0 0.0
        %3916 = vmatpush1.msra.mxu0 %v2779
        %3917 = vmatprep.subr.mxu0 0.0
        %3918 = vmatpush1.msra.mxu0 %v2782
        %3919 = vmatprep.subr.mxu0 0.0
        %3920 = vmatpush1.msra.mxu0 %v2785
        %3921 = vmatprep.subr.mxu0 0.0
        %3922 = vmatpush1.msra.mxu0 %v2788
        %3923 = vmatprep.subr.mxu0 0.0
        %3924 = vmatpush1.msra.mxu0 %v2791
        %3925 = vmatprep.subr.mxu0 0.0
        %3926 = vmatpush1.msra.mxu0 %v2794
        %3927 = vmatprep.subr.mxu0 0.0
        %3928 = vmatpush1.msra.mxu0 %v2797
        %3929 = vmatprep.subr.mxu0 0.0
        %3930 = vmatpush1.msra.mxu0 %v2800
        %3931 = vmatprep.subr.mxu0 0.0
        %3932 = vmatpush1.msra.mxu0 %v2803
        %3933 = vmatprep.subr.mxu0 0.0
        %3934 = vmatpush1.msra.mxu0 %v2806
        %3935 = vmatprep.subr.mxu0 0.0
        %3936 = vmatpush1.msra.mxu0 0.0
        %3937 = vmatprep.subr.mxu0 0.0
        %3938 = vmatpush1.msra.mxu0 0.0
        %3939 = vmatprep.subr.mxu0 0.0
        %3940 = vmatpush1.msra.mxu0 0.0
        %3941 = vmatprep.subr.mxu0 0.0
        %3942 = vmatpush1.msra.mxu0 0.0
        %3943 = vmatprep.subr.mxu0 0.0
        %3944 = vmatpush1.msra.mxu0 0.0
        %3945 = vmatprep.subr.mxu0 0.0
        %3946 = vmatpush1.msra.mxu0 0.0
        %3947 = vmatprep.subr.mxu0 0.0
        %3948 = vmatpush1.msra.mxu0 0.0
        %3949 = vmatprep.subr.mxu0 0.0
        %3950 = vmatpush1.msra.mxu0 0.0
        %3951 = vmatprep.subr.mxu0 0.0
        %3952 = vmatpush1.msra.mxu0 0.0
        %3953 = vmatprep.subr.mxu0 0.0
        %3954 = vmatpush1.msra.mxu0 0.0
        %3955 = vmatprep.subr.mxu0 0.0
        %3956 = vmatpush1.msra.mxu0 0.0
        %3957 = vmatprep.subr.mxu0 0.0
        %3958 = vmatpush1.msra.mxu0 0.0
        %3959 = vmatprep.mubr.f32.mxu0 %v3090
        %3960 = vmatmul.mubr.f32.gmra.mrb[0].mxu0 %v1621
        %v3961 = vpop.f32.mrb[0].mxu0
        %v3962 = vadd.f32 %v3821, %v3961
        %v3963 = vpop.f32.mrb[0].mxu0
        %3964 = vdwg.mxu0
        %v3966 = vsel %vm2417, %v2294, 0
        %3968 = vmatprep.subr.mxu0 %v2358
        %3969 = vmatpush1.msra.mxu0 %v2357
        %3970 = vmatprep.subr.mxu0 %v2361
        %3971 = vmatpush1.msra.mxu0 %v2360
        %3972 = vmatprep.subr.mxu0 %v2364
        %3973 = vmatpush1.msra.mxu0 %v2363
        %3974 = vmatprep.subr.mxu0 %v2367
        %3975 = vmatpush1.msra.mxu0 %v2366
        %3976 = vmatprep.subr.mxu0 %v2370
        %3977 = vmatpush1.msra.mxu0 %v2369
        %3978 = vmatprep.subr.mxu0 %v2373
        %3979 = vmatpush1.msra.mxu0 %v2372
        %3980 = vmatprep.subr.mxu0 %v2376
        %3981 = vmatpush1.msra.mxu0 %v2375
        %3982 = vmatprep.subr.mxu0 %v2379
        %3983 = vmatpush1.msra.mxu0 %v2378
        %3984 = vmatprep.subr.mxu0 %v2382
        %3985 = vmatpush1.msra.mxu0 %v2381
        %3986 = vmatprep.subr.mxu0 %v2385
        %3987 = vmatpush1.msra.mxu0 %v2384
        %3988 = vmatprep.subr.mxu0 %v2388
        %3989 = vmatpush1.msra.mxu0 %v2387
        %3990 = vmatprep.subr.mxu0 %v2391
        %3991 = vmatpush1.msra.mxu0 %v2390
        %3992 = vmatprep.subr.mxu0 %v2394
        %3993 = vmatpush1.msra.mxu0 %v2393
        %3994 = vmatprep.subr.mxu0 %v2397
        %3995 = vmatpush1.msra.mxu0 %v2396
        %3996 = vmatprep.subr.mxu0 %v2400
        %3997 = vmatpush1.msra.mxu0 %v2399
        %3998 = vmatprep.subr.mxu0 %v2403
        %3999 = vmatpush1.msra.mxu0 %v2402
        %4000 = vmatprep.subr.mxu0 %v2406
        %4001 = vmatpush1.msra.mxu0 %v2405
        %4002 = vmatprep.subr.mxu0 %v2409
        %4003 = vmatpush1.msra.mxu0 %v2408
        %4004 = vmatprep.subr.mxu0 %v2412
        %4005 = vmatpush1.msra.mxu0 %v2411
        %4006 = vmatprep.subr.mxu0 %v2415
        %4007 = vmatpush1.msra.mxu0 %v2414
        %4008 = vmatprep.subr.mxu0 0.0
        %4009 = vmatpush1.msra.mxu0 0.0
        %4010 = vmatprep.subr.mxu0 0.0
        %4011 = vmatpush1.msra.mxu0 0.0
        %4012 = vmatprep.subr.mxu0 0.0
        %4013 = vmatpush1.msra.mxu0 0.0
        %4014 = vmatprep.subr.mxu0 0.0
        %4015 = vmatpush1.msra.mxu0 0.0
        %4016 = vmatprep.subr.mxu0 0.0
        %4017 = vmatpush1.msra.mxu0 0.0
        %4018 = vmatprep.subr.mxu0 0.0
        %4019 = vmatpush1.msra.mxu0 0.0
        %4020 = vmatprep.subr.mxu0 0.0
        %4021 = vmatpush1.msra.mxu0 0.0
        %4022 = vmatprep.subr.mxu0 0.0
        %4023 = vmatpush1.msra.mxu0 0.0
        %4024 = vmatprep.subr.mxu0 0.0
        %4025 = vmatpush1.msra.mxu0 0.0
        %4026 = vmatprep.subr.mxu0 0.0
        %4027 = vmatpush1.msra.mxu0 0.0
        %4028 = vmatprep.subr.mxu0 0.0
        %4029 = vmatpush1.msra.mxu0 0.0
        %4030 = vmatprep.subr.mxu0 0.0
        %4031 = vmatpush1.msra.mxu0 0.0
        %4032 = vmatprep.mubr.f32.mxu0 %v3966
        %4033 = vmatmul.mubr.f32.gmra.mrb[0].mxu0 %v2293
        %v4034 = vpop.f32.mrb[0].mxu0
        %v4035 = vadd.f32 0.0, %v4034
        %v4036 = vpop.f32.mrb[0].mxu0
        %v4037 = vadd.f32 0.0, %v4036
        %4038 = vdwg.mxu0
        %4039 = vmatprep.subr.mxu0 0.0
        %4040 = vmatpush1.msra.mxu0 %v2359
        %4041 = vmatprep.subr.mxu0 0.0
        %4042 = vmatpush1.msra.mxu0 %v2362
        %4043 = vmatprep.subr.mxu0 0.0
        %4044 = vmatpush1.msra.mxu0 %v2365
        %4045 = vmatprep.subr.mxu0 0.0
        %4046 = vmatpush1.msra.mxu0 %v2368
        %4047 = vmatprep.subr.mxu0 0.0
        %4048 = vmatpush1.msra.mxu0 %v2371
        %4049 = vmatprep.subr.mxu0 0.0
        %4050 = vmatpush1.msra.mxu0 %v2374
        %4051 = vmatprep.subr.mxu0 0.0
        %4052 = vmatpush1.msra.mxu0 %v2377
        %4053 = vmatprep.subr.mxu0 0.0
        %4054 = vmatpush1.msra.mxu0 %v2380
        %4055 = vmatprep.subr.mxu0 0.0
        %4056 = vmatpush1.msra.mxu0 %v2383
        %4057 = vmatprep.subr.mxu0 0.0
        %4058 = vmatpush1.msra.mxu0 %v2386
        %4059 = vmatprep.subr.mxu0 0.0
        %4060 = vmatpush1.msra.mxu0 %v2389
        %4061 = vmatprep.subr.mxu0 0.0
        %4062 = vmatpush1.msra.mxu0 %v2392
        %4063 = vmatprep.subr.mxu0 0.0
        %4064 = vmatpush1.msra.mxu0 %v2395
        %4065 = vmatprep.subr.mxu0 0.0
        %4066 = vmatpush1.msra.mxu0 %v2398
        %4067 = vmatprep.subr.mxu0 0.0
        %4068 = vmatpush1.msra.mxu0 %v2401
        %4069 = vmatprep.subr.mxu0 0.0
        %4070 = vmatpush1.msra.mxu0 %v2404
        %4071 = vmatprep.subr.mxu0 0.0
        %4072 = vmatpush1.msra.mxu0 %v2407
        %4073 = vmatprep.subr.mxu0 0.0
        %4074 = vmatpush1.msra.mxu0 %v2410
        %4075 = vmatprep.subr.mxu0 0.0
        %4076 = vmatpush1.msra.mxu0 %v2413
        %4077 = vmatprep.subr.mxu0 0.0
        %4078 = vmatpush1.msra.mxu0 %v2416
        %4079 = vmatprep.subr.mxu0 0.0
        %4080 = vmatpush1.msra.mxu0 0.0
        %4081 = vmatprep.subr.mxu0 0.0
        %4082 = vmatpush1.msra.mxu0 0.0
        %4083 = vmatprep.subr.mxu0 0.0
        %4084 = vmatpush1.msra.mxu0 0.0
        %4085 = vmatprep.subr.mxu0 0.0
        %4086 = vmatpush1.msra.mxu0 0.0
        %4087 = vmatprep.subr.mxu0 0.0
        %4088 = vmatpush1.msra.mxu0 0.0
        %4089 = vmatprep.subr.mxu0 0.0
        %4090 = vmatpush1.msra.mxu0 0.0
        %4091 = vmatprep.subr.mxu0 0.0
        %4092 = vmatpush1.msra.mxu0 0.0
        %4093 = vmatprep.subr.mxu0 0.0
        %4094 = vmatpush1.msra.mxu0 0.0
        %4095 = vmatprep.subr.mxu0 0.0
        %4096 = vmatpush1.msra.mxu0 0.0
        %4097 = vmatprep.subr.mxu0 0.0
        %4098 = vmatpush1.msra.mxu0 0.0
        %4099 = vmatprep.subr.mxu0 0.0
        %4100 = vmatpush1.msra.mxu0 0.0
        %4101 = vmatprep.subr.mxu0 0.0
        %4102 = vmatpush1.msra.mxu0 0.0
        %4103 = vmatprep.mubr.f32.mxu0 %v3966
        %4104 = vmatmul.mubr.f32.gmra.mrb[0].mxu0 %v2293
        %v4105 = vpop.f32.mrb[0].mxu0
        %v4106 = vadd.f32 0.0, %v4105
        %v4107 = vpop.f32.mrb[0].mxu0
        %4108 = vdwg.mxu0
        %v4109 = vadd.f32 %v3891, %v4035
        %v4110 = vadd.f32 %v3893, %v4037
        %v4111 = vadd.f32 %v3962, %v4106
        %v4112 = vmul.f32 %v4109, %v2710
        %v4113 = vmul.f32 %v4110, %v2714
        %v4114 = vmul.f32 %v4111, %v2718
        %v4115 = vadd.f32 %v4112, %v2729
        %v4116 = vadd.f32 %v4113, %v2733
        %v4117 = vadd.f32 %v4114, %v2737
        %v4118 = vmax.f32 %v4115, 0.0
        %v4119 = vmax.f32 %v4116, 0.0
        %v4120 = vmax.f32 %v4117, 0.0
        %4121 = vmatprep.subr.mxu0 %v2297
        %4122 = vmatpush1.msra.mxu0 %v2296
        %4123 = vmatprep.subr.mxu0 %v2300
        %4124 = vmatpush1.msra.mxu0 %v2299
        %4125 = vmatprep.subr.mxu0 %v2303
        %4126 = vmatpush1.msra.mxu0 %v2302
        %4127 = vmatprep.subr.mxu0 %v2306
        %4128 = vmatpush1.msra.mxu0 %v2305
        %4129 = vmatprep.subr.mxu0 %v2309
        %4130 = vmatpush1.msra.mxu0 %v2308
        %4131 = vmatprep.subr.mxu0 %v2312
        %4132 = vmatpush1.msra.mxu0 %v2311
        %4133 = vmatprep.subr.mxu0 %v2315
        %4134 = vmatpush1.msra.mxu0 %v2314
        %4135 = vmatprep.subr.mxu0 %v2318
        %4136 = vmatpush1.msra.mxu0 %v2317
        %4137 = vmatprep.subr.mxu0 %v2321
        %4138 = vmatpush1.msra.mxu0 %v2320
        %4139 = vmatprep.subr.mxu0 %v2324
        %4140 = vmatpush1.msra.mxu0 %v2323
        %4141 = vmatprep.subr.mxu0 %v2327
        %4142 = vmatpush1.msra.mxu0 %v2326
        %4143 = vmatprep.subr.mxu0 %v2330
        %4144 = vmatpush1.msra.mxu0 %v2329
        %4145 = vmatprep.subr.mxu0 %v2333
        %4146 = vmatpush1.msra.mxu0 %v2332
        %4147 = vmatprep.subr.mxu0 %v2336
        %4148 = vmatpush1.msra.mxu0 %v2335
        %4149 = vmatprep.subr.mxu0 %v2339
        %4150 = vmatpush1.msra.mxu0 %v2338
        %4151 = vmatprep.subr.mxu0 %v2342
        %4152 = vmatpush1.msra.mxu0 %v2341
        %4153 = vmatprep.subr.mxu0 %v2345
        %4154 = vmatpush1.msra.mxu0 %v2344
        %4155 = vmatprep.subr.mxu0 %v2348
        %4156 = vmatpush1.msra.mxu0 %v2347
        %4157 = vmatprep.subr.mxu0 %v2351
        %4158 = vmatpush1.msra.mxu0 %v2350
        %4159 = vmatprep.subr.mxu0 %v2354
        %4160 = vmatpush1.msra.mxu0 %v2353
        %4161 = vmatprep.subr.mxu0 0.0
        %4162 = vmatpush1.msra.mxu0 0.0
        %4163 = vmatprep.subr.mxu0 0.0
        %4164 = vmatpush1.msra.mxu0 0.0
        %4165 = vmatprep.subr.mxu0 0.0
        %4166 = vmatpush1.msra.mxu0 0.0
        %4167 = vmatprep.subr.mxu0 0.0
        %4168 = vmatpush1.msra.mxu0 0.0
        %4169 = vmatprep.subr.mxu0 0.0
        %4170 = vmatpush1.msra.mxu0 0.0
        %4171 = vmatprep.subr.mxu0 0.0
        %4172 = vmatpush1.msra.mxu0 0.0
        %4173 = vmatprep.subr.mxu0 0.0
        %4174 = vmatpush1.msra.mxu0 0.0
        %4175 = vmatprep.subr.mxu0 0.0
        %4176 = vmatpush1.msra.mxu0 0.0
        %4177 = vmatprep.subr.mxu0 0.0
        %4178 = vmatpush1.msra.mxu0 0.0
        %4179 = vmatprep.subr.mxu0 0.0
        %4180 = vmatpush1.msra.mxu0 0.0
        %4181 = vmatprep.subr.mxu0 0.0
        %4182 = vmatpush1.msra.mxu0 0.0
        %4183 = vmatprep.subr.mxu0 0.0
        %4184 = vmatpush1.msra.mxu0 0.0
        %4185 = vmatprep.mubr.f32.mxu0 %v3966
        %4186 = vmatmul.mubr.f32.gmra.mrb[0].mxu0 %v2293
        %v4187 = vpop.f32.mrb[0].mxu0
        %v4188 = vadd.f32 0.0, %v4187
        %v4189 = vpop.f32.mrb[0].mxu0
        %v4190 = vadd.f32 0.0, %v4189
        %4191 = vdwg.mxu0
        %4192 = vmatprep.subr.mxu0 0.0
        %4193 = vmatpush1.msra.mxu0 %v2298
        %4194 = vmatprep.subr.mxu0 0.0
        %4195 = vmatpush1.msra.mxu0 %v2301
        %4196 = vmatprep.subr.mxu0 0.0
        %4197 = vmatpush1.msra.mxu0 %v2304
        %4198 = vmatprep.subr.mxu0 0.0
        %4199 = vmatpush1.msra.mxu0 %v2307
        %4200 = vmatprep.subr.mxu0 0.0
        %4201 = vmatpush1.msra.mxu0 %v2310
        %4202 = vmatprep.subr.mxu0 0.0
        %4203 = vmatpush1.msra.mxu0 %v2313
        %4204 = vmatprep.subr.mxu0 0.0
        %4205 = vmatpush1.msra.mxu0 %v2316
        %4206 = vmatprep.subr.mxu0 0.0
        %4207 = vmatpush1.msra.mxu0 %v2319
        %4208 = vmatprep.subr.mxu0 0.0
        %4209 = vmatpush1.msra.mxu0 %v2322
        %4210 = vmatprep.subr.mxu0 0.0
        %4211 = vmatpush1.msra.mxu0 %v2325
        %4212 = vmatprep.subr.mxu0 0.0
        %4213 = vmatpush1.msra.mxu0 %v2328
        %4214 = vmatprep.subr.mxu0 0.0
        %4215 = vmatpush1.msra.mxu0 %v2331
        %4216 = vmatprep.subr.mxu0 0.0
        %4217 = vmatpush1.msra.mxu0 %v2334
        %4218 = vmatprep.subr.mxu0 0.0
        %4219 = vmatpush1.msra.mxu0 %v2337
        %4220 = vmatprep.subr.mxu0 0.0
        %4221 = vmatpush1.msra.mxu0 %v2340
        %4222 = vmatprep.subr.mxu0 0.0
        %4223 = vmatpush1.msra.mxu0 %v2343
        %4224 = vmatprep.subr.mxu0 0.0
        %4225 = vmatpush1.msra.mxu0 %v2346
        %4226 = vmatprep.subr.mxu0 0.0
        %4227 = vmatpush1.msra.mxu0 %v2349
        %4228 = vmatprep.subr.mxu0 0.0
        %4229 = vmatpush1.msra.mxu0 %v2352
        %4230 = vmatprep.subr.mxu0 0.0
        %4231 = vmatpush1.msra.mxu0 %v2355
        %4232 = vmatprep.subr.mxu0 0.0
        %4233 = vmatpush1.msra.mxu0 0.0
        %4234 = vmatprep.subr.mxu0 0.0
        %4235 = vmatpush1.msra.mxu0 0.0
        %4236 = vmatprep.subr.mxu0 0.0
        %4237 = vmatpush1.msra.mxu0 0.0
        %4238 = vmatprep.subr.mxu0 0.0
        %4239 = vmatpush1.msra.mxu0 0.0
        %4240 = vmatprep.subr.mxu0 0.0
        %4241 = vmatpush1.msra.mxu0 0.0
        %4242 = vmatprep.subr.mxu0 0.0
        %4243 = vmatpush1.msra.mxu0 0.0
        %4244 = vmatprep.subr.mxu0 0.0
        %4245 = vmatpush1.msra.mxu0 0.0
        %4246 = vmatprep.subr.mxu0 0.0
        %4247 = vmatpush1.msra.mxu0 0.0
        %4248 = vmatprep.subr.mxu0 0.0
        %4249 = vmatpush1.msra.mxu0 0.0
        %4250 = vmatprep.subr.mxu0 0.0
        %4251 = vmatpush1.msra.mxu0 0.0
        %4252 = vmatprep.subr.mxu0 0.0
        %4253 = vmatpush1.msra.mxu0 0.0
        %4254 = vmatprep.subr.mxu0 0.0
        %4255 = vmatpush1.msra.mxu0 0.0
        %4256 = vmatprep.mubr.f32.mxu0 %v3966
        %4257 = vmatmul.mubr.f32.gmra.mrb[0].mxu0 %v2293
        %v4258 = vpop.f32.mrb[0].mxu0
        %v4259 = vadd.f32 0.0, %v4258
        %v4260 = vpop.f32.mrb[0].mxu0
        %4261 = vdwg.mxu0
        %4262 = vmatprep.subr.mxu0 %v2748
        %4263 = vmatpush1.msra.mxu0 %v2747
        %4264 = vmatprep.subr.mxu0 %v2751
        %4265 = vmatpush1.msra.mxu0 %v2750
        %4266 = vmatprep.subr.mxu0 %v2754
        %4267 = vmatpush1.msra.mxu0 %v2753
        %4268 = vmatprep.subr.mxu0 %v2757
        %4269 = vmatpush1.msra.mxu0 %v2756
        %4270 = vmatprep.subr.mxu0 %v2760
        %4271 = vmatpush1.msra.mxu0 %v2759
        %4272 = vmatprep.subr.mxu0 %v2763
        %4273 = vmatpush1.msra.mxu0 %v2762
        %4274 = vmatprep.subr.mxu0 %v2766
        %4275 = vmatpush1.msra.mxu0 %v2765
        %4276 = vmatprep.subr.mxu0 %v2769
        %4277 = vmatpush1.msra.mxu0 %v2768
        %4278 = vmatprep.subr.mxu0 %v2772
        %4279 = vmatpush1.msra.mxu0 %v2771
        %4280 = vmatprep.subr.mxu0 %v2775
        %4281 = vmatpush1.msra.mxu0 %v2774
        %4282 = vmatprep.subr.mxu0 %v2778
        %4283 = vmatpush1.msra.mxu0 %v2777
        %4284 = vmatprep.subr.mxu0 %v2781
        %4285 = vmatpush1.msra.mxu0 %v2780
        %4286 = vmatprep.subr.mxu0 %v2784
        %4287 = vmatpush1.msra.mxu0 %v2783
        %4288 = vmatprep.subr.mxu0 %v2787
        %4289 = vmatpush1.msra.mxu0 %v2786
        %4290 = vmatprep.subr.mxu0 %v2790
        %4291 = vmatpush1.msra.mxu0 %v2789
        %4292 = vmatprep.subr.mxu0 %v2793
        %4293 = vmatpush1.msra.mxu0 %v2792
        %4294 = vmatprep.subr.mxu0 %v2796
        %4295 = vmatpush1.msra.mxu0 %v2795
        %4296 = vmatprep.subr.mxu0 %v2799
        %4297 = vmatpush1.msra.mxu0 %v2798
        %4298 = vmatprep.subr.mxu0 %v2802
        %4299 = vmatpush1.msra.mxu0 %v2801
        %4300 = vmatprep.subr.mxu0 %v2805
        %4301 = vmatpush1.msra.mxu0 %v2804
        %4302 = vmatprep.subr.mxu0 0.0
        %4303 = vmatpush1.msra.mxu0 0.0
        %4304 = vmatprep.subr.mxu0 0.0
        %4305 = vmatpush1.msra.mxu0 0.0
        %4306 = vmatprep.subr.mxu0 0.0
        %4307 = vmatpush1.msra.mxu0 0.0
        %4308 = vmatprep.subr.mxu0 0.0
        %4309 = vmatpush1.msra.mxu0 0.0
        %4310 = vmatprep.subr.mxu0 0.0
        %4311 = vmatpush1.msra.mxu0 0.0
        %4312 = vmatprep.subr.mxu0 0.0
        %4313 = vmatpush1.msra.mxu0 0.0
        %4314 = vmatprep.subr.mxu0 0.0
        %4315 = vmatpush1.msra.mxu0 0.0
        %4316 = vmatprep.subr.mxu0 0.0
        %4317 = vmatpush1.msra.mxu0 0.0
        %4318 = vmatprep.subr.mxu0 0.0
        %4319 = vmatpush1.msra.mxu0 0.0
        %4320 = vmatprep.subr.mxu0 0.0
        %4321 = vmatpush1.msra.mxu0 0.0
        %4322 = vmatprep.subr.mxu0 0.0
        %4323 = vmatpush1.msra.mxu0 0.0
        %4324 = vmatprep.subr.mxu0 0.0
        %4325 = vmatpush1.msra.mxu0 0.0
        %4326 = vmatprep.mubr.f32.mxu0 %v3528
        %4327 = vmatmul.mubr.f32.gmra.mrb[0].mxu0 %v1957
        %v4328 = vpop.f32.mrb[0].mxu0
        %v4329 = vadd.f32 %v4188, %v4328
        %v4330 = vpop.f32.mrb[0].mxu0
        %v4331 = vadd.f32 %v4190, %v4330
        %4332 = vdwg.mxu0
        %4333 = vmatprep.subr.mxu0 0.0
        %4334 = vmatpush1.msra.mxu0 %v2749
        %4335 = vmatprep.subr.mxu0 0.0
        %4336 = vmatpush1.msra.mxu0 %v2752
        %4337 = vmatprep.subr.mxu0 0.0
        %4338 = vmatpush1.msra.mxu0 %v2755
        %4339 = vmatprep.subr.mxu0 0.0
        %4340 = vmatpush1.msra.mxu0 %v2758
        %4341 = vmatprep.subr.mxu0 0.0
        %4342 = vmatpush1.msra.mxu0 %v2761
        %4343 = vmatprep.subr.mxu0 0.0
        %4344 = vmatpush1.msra.mxu0 %v2764
        %4345 = vmatprep.subr.mxu0 0.0
        %4346 = vmatpush1.msra.mxu0 %v2767
        %4347 = vmatprep.subr.mxu0 0.0
        %4348 = vmatpush1.msra.mxu0 %v2770
        %4349 = vmatprep.subr.mxu0 0.0
        %4350 = vmatpush1.msra.mxu0 %v2773
        %4351 = vmatprep.subr.mxu0 0.0
        %4352 = vmatpush1.msra.mxu0 %v2776
        %4353 = vmatprep.subr.mxu0 0.0
        %4354 = vmatpush1.msra.mxu0 %v2779
        %4355 = vmatprep.subr.mxu0 0.0
        %4356 = vmatpush1.msra.mxu0 %v2782
        %4357 = vmatprep.subr.mxu0 0.0
        %4358 = vmatpush1.msra.mxu0 %v2785
        %4359 = vmatprep.subr.mxu0 0.0
        %4360 = vmatpush1.msra.mxu0 %v2788
        %4361 = vmatprep.subr.mxu0 0.0
        %4362 = vmatpush1.msra.mxu0 %v2791
        %4363 = vmatprep.subr.mxu0 0.0
        %4364 = vmatpush1.msra.mxu0 %v2794
        %4365 = vmatprep.subr.mxu0 0.0
        %4366 = vmatpush1.msra.mxu0 %v2797
        %4367 = vmatprep.subr.mxu0 0.0
        %4368 = vmatpush1.msra.mxu0 %v2800
        %4369 = vmatprep.subr.mxu0 0.0
        %4370 = vmatpush1.msra.mxu0 %v2803
        %4371 = vmatprep.subr.mxu0 0.0
        %4372 = vmatpush1.msra.mxu0 %v2806
        %4373 = vmatprep.subr.mxu0 0.0
        %4374 = vmatpush1.msra.mxu0 0.0
        %4375 = vmatprep.subr.mxu0 0.0
        %4376 = vmatpush1.msra.mxu0 0.0
        %4377 = vmatprep.subr.mxu0 0.0
        %4378 = vmatpush1.msra.mxu0 0.0
        %4379 = vmatprep.subr.mxu0 0.0
        %4380 = vmatpush1.msra.mxu0 0.0
        %4381 = vmatprep.subr.mxu0 0.0
        %4382 = vmatpush1.msra.mxu0 0.0
        %4383 = vmatprep.subr.mxu0 0.0
        %4384 = vmatpush1.msra.mxu0 0.0
        %4385 = vmatprep.subr.mxu0 0.0
        %4386 = vmatpush1.msra.mxu0 0.0
        %4387 = vmatprep.subr.mxu0 0.0
        %4388 = vmatpush1.msra.mxu0 0.0
        %4389 = vmatprep.subr.mxu0 0.0
        %4390 = vmatpush1.msra.mxu0 0.0
        %4391 = vmatprep.subr.mxu0 0.0
        %4392 = vmatpush1.msra.mxu0 0.0
        %4393 = vmatprep.subr.mxu0 0.0
        %4394 = vmatpush1.msra.mxu0 0.0
        %4395 = vmatprep.subr.mxu0 0.0
        %4396 = vmatpush1.msra.mxu0 0.0
        %4397 = vmatprep.mubr.f32.mxu0 %v3528
        %4398 = vmatmul.mubr.f32.gmra.mrb[0].mxu0 %v1957
        %v4399 = vpop.f32.mrb[0].mxu0
        %v4400 = vadd.f32 %v4259, %v4399
        %v4401 = vpop.f32.mrb[0].mxu0
        %4402 = vdwg.mxu0
        %v4403 = vmul.f32 %v4329, %v2710
        %v4404 = vmul.f32 %v4331, %v2714
        %v4405 = vmul.f32 %v4400, %v2718
        %v4406 = vadd.f32 %v4403, %v2729
        %v4407 = vadd.f32 %v4404, %v2733
        %v4408 = vadd.f32 %v4405, %v2737
        %v4409 = vmax.f32 %v4406, 0.0
        %v4410 = vmax.f32 %v4407, 0.0
        %v4411 = vmax.f32 %v4408, 0.0
        %v4412 = vmax.f32 %v2744, %v3242
        %v4413 = vmax.f32 %v2745, %v3243
        %v4414 = vmax.f32 %v2746, %v3244
        %v4415 = vmax.f32 %v4412, %v3680
        %v4416 = vmax.f32 %v4413, %v3681
        %v4417 = vmax.f32 %v4414, %v3682
        %4419 = vrot.lane.b32.xlu0 %v4415, 64
        %v4420 = vpop.permute.xlu0 %4419
        %v4422 = vmax.f32 %v4415, %v4420
        %v4423 = vmax.f32 %v4422, %v4416
        %v4424 = vld [vmem:[%s7] sm:$0xff]
        %v4425 = vld [vmem:[%s7 + $0x8] sm:$0xff]
        %v4426 = vld [vmem:[%s7 + $0x10] sm:$0xff]
        %v4427 = vld [vmem:[%s7 + $0x18] sm:$0xff]
        %v4428 = vld [vmem:[%s7 + $0x20] sm:$0xff]
        %v4429 = vld [vmem:[%s7 + $0x28] sm:$0xff]
        %v4430 = vld [vmem:[%s7 + $0x30] sm:$0xff]
        %v4431 = vld [vmem:[%s7 + $0x38] sm:$0xff]
        %4433 = vrot.lane.b32.xlu0 %v4416, 64
        %v4434 = vpop.permute.xlu0 %4433
        %v4436 = vmax.f32 %v4416, %v4434
        %v4437 = vmax.f32 %v4436, %v4417
        %s4438 = scalar_lea.vmem %s7, 64
        %v4439 = vld [vmem:[%s4438] sm:$0xff]
        %v4440 = vld [vmem:[%s4438 + $0x8] sm:$0xff]
        %v4441 = vld [vmem:[%s4438 + $0x10] sm:$0xff]
        %v4442 = vld [vmem:[%s4438 + $0x18] sm:$0xff]
        %v4443 = vld [vmem:[%s4438 + $0x20] sm:$0xff]
        %v4444 = vld [vmem:[%s4438 + $0x28] sm:$0xff]
        %v4445 = vld [vmem:[%s4438 + $0x30] sm:$0xff]
        %v4446 = vld [vmem:[%s4438 + $0x38] sm:$0xff]
        %vm4447 = vcmask 523264
        %v4449 = vsel %vm4447, %v4437, 0
        %4451 = vmatprep.subr.mxu0 0.0
        %4452 = vmatpush1.msra.mxu0 %v4439
        %4453 = vmatprep.subr.mxu0 0.0
        %4454 = vmatpush1.msra.mxu0 %v4440
        %4455 = vmatprep.subr.mxu0 0.0
        %4456 = vmatpush1.msra.mxu0 %v4441
        %4457 = vmatprep.subr.mxu0 0.0
        %4458 = vmatpush1.msra.mxu0 %v4442
        %4459 = vmatprep.subr.mxu0 0.0
        %4460 = vmatpush1.msra.mxu0 %v4443
        %4461 = vmatprep.subr.mxu0 0.0
        %4462 = vmatpush1.msra.mxu0 %v4444
        %4463 = vmatprep.subr.mxu0 0.0
        %4464 = vmatpush1.msra.mxu0 %v4445
        %4465 = vmatprep.subr.mxu0 0.0
        %4466 = vmatpush1.msra.mxu0 %v4446
        %4467 = vmatprep.subr.mxu0 0.0
        %4468 = vmatpush1.msra.mxu0 0.0
        %4469 = vmatprep.subr.mxu0 0.0
        %4470 = vmatpush1.msra.mxu0 0.0
        %4471 = vmatprep.subr.mxu0 0.0
        %4472 = vmatpush1.msra.mxu0 0.0
        %4473 = vmatprep.subr.mxu0 0.0
        %4474 = vmatpush1.msra.mxu0 0.0
        %4475 = vmatprep.subr.mxu0 0.0
        %4476 = vmatpush1.msra.mxu0 0.0
        %4477 = vmatprep.subr.mxu0 0.0
        %4478 = vmatpush1.msra.mxu0 0.0
        %4479 = vmatprep.subr.mxu0 0.0
        %4480 = vmatpush1.msra.mxu0 0.0
        %4481 = vmatprep.subr.mxu0 0.0
        %4482 = vmatpush1.msra.mxu0 0.0
        %4483 = vmatprep.subr.mxu0 0.0
        %4484 = vmatpush1.msra.mxu0 0.0
        %4485 = vmatprep.subr.mxu0 0.0
        %4486 = vmatpush1.msra.mxu0 0.0
        %4487 = vmatprep.subr.mxu0 0.0
        %4488 = vmatpush1.msra.mxu0 0.0
        %4489 = vmatprep.subr.mxu0 0.0
        %4490 = vmatpush1.msra.mxu0 0.0
        %4491 = vmatprep.subr.mxu0 0.0
        %4492 = vmatpush1.msra.mxu0 0.0
        %4493 = vmatprep.subr.mxu0 0.0
        %4494 = vmatpush1.msra.mxu0 0.0
        %4495 = vmatprep.subr.mxu0 0.0
        %4496 = vmatpush1.msra.mxu0 0.0
        %4497 = vmatprep.subr.mxu0 0.0
        %4498 = vmatpush1.msra.mxu0 0.0
        %4499 = vmatprep.subr.mxu0 0.0
        %4500 = vmatpush1.msra.mxu0 0.0
        %4501 = vmatprep.subr.mxu0 0.0
        %4502 = vmatpush1.msra.mxu0 0.0
        %4503 = vmatprep.subr.mxu0 0.0
        %4504 = vmatpush1.msra.mxu0 0.0
        %4505 = vmatprep.subr.mxu0 0.0
        %4506 = vmatpush1.msra.mxu0 0.0
        %4507 = vmatprep.subr.mxu0 0.0
        %4508 = vmatpush1.msra.mxu0 0.0
        %4509 = vmatprep.subr.mxu0 0.0
        %4510 = vmatpush1.msra.mxu0 0.0
        %4511 = vmatprep.subr.mxu0 0.0
        %4512 = vmatpush1.msra.mxu0 0.0
        %4513 = vmatprep.subr.mxu0 0.0
        %4514 = vmatpush1.msra.mxu0 0.0
        %4515 = vmatprep.mubr.f32.mxu0 0.0
        %4516 = vmatmul.mubr.f32.gmra.mrb[0].mxu0 %v4449
        %v4517 = vpop.f32.mrb[0].mxu0
        %v4518 = vadd.f32 0.0, %v4517
        %v4519 = vpop.f32.mrb[0].mxu0
        %4520 = vdwg.mxu0
        %v4522 = vsel %vm4447, %v4423, 0
        %4524 = vmatprep.subr.mxu0 0.0
        %4525 = vmatpush1.msra.mxu0 %v4424
        %4526 = vmatprep.subr.mxu0 0.0
        %4527 = vmatpush1.msra.mxu0 %v4425
        %4528 = vmatprep.subr.mxu0 0.0
        %4529 = vmatpush1.msra.mxu0 %v4426
        %4530 = vmatprep.subr.mxu0 0.0
        %4531 = vmatpush1.msra.mxu0 %v4427
        %4532 = vmatprep.subr.mxu0 0.0
        %4533 = vmatpush1.msra.mxu0 %v4428
        %4534 = vmatprep.subr.mxu0 0.0
        %4535 = vmatpush1.msra.mxu0 %v4429
        %4536 = vmatprep.subr.mxu0 0.0
        %4537 = vmatpush1.msra.mxu0 %v4430
        %4538 = vmatprep.subr.mxu0 0.0
        %4539 = vmatpush1.msra.mxu0 %v4431
        %4540 = vmatprep.subr.mxu0 0.0
        %4541 = vmatpush1.msra.mxu0 0.0
        %4542 = vmatprep.subr.mxu0 0.0
        %4543 = vmatpush1.msra.mxu0 0.0
        %4544 = vmatprep.subr.mxu0 0.0
        %4545 = vmatpush1.msra.mxu0 0.0
        %4546 = vmatprep.subr.mxu0 0.0
        %4547 = vmatpush1.msra.mxu0 0.0
        %4548 = vmatprep.subr.mxu0 0.0
        %4549 = vmatpush1.msra.mxu0 0.0
        %4550 = vmatprep.subr.mxu0 0.0
        %4551 = vmatpush1.msra.mxu0 0.0
        %4552 = vmatprep.subr.mxu0 0.0
        %4553 = vmatpush1.msra.mxu0 0.0
        %4554 = vmatprep.subr.mxu0 0.0
        %4555 = vmatpush1.msra.mxu0 0.0
        %4556 = vmatprep.subr.mxu0 0.0
        %4557 = vmatpush1.msra.mxu0 0.0
        %4558 = vmatprep.subr.mxu0 0.0
        %4559 = vmatpush1.msra.mxu0 0.0
        %4560 = vmatprep.subr.mxu0 0.0
        %4561 = vmatpush1.msra.mxu0 0.0
        %4562 = vmatprep.subr.mxu0 0.0
        %4563 = vmatpush1.msra.mxu0 0.0
        %4564 = vmatprep.subr.mxu0 0.0
        %4565 = vmatpush1.msra.mxu0 0.0
        %4566 = vmatprep.subr.mxu0 0.0
        %4567 = vmatpush1.msra.mxu0 0.0
        %4568 = vmatprep.subr.mxu0 0.0
        %4569 = vmatpush1.msra.mxu0 0.0
        %4570 = vmatprep.subr.mxu0 0.0
        %4571 = vmatpush1.msra.mxu0 0.0
        %4572 = vmatprep.subr.mxu0 0.0
        %4573 = vmatpush1.msra.mxu0 0.0
        %4574 = vmatprep.subr.mxu0 0.0
        %4575 = vmatpush1.msra.mxu0 0.0
        %4576 = vmatprep.subr.mxu0 0.0
        %4577 = vmatpush1.msra.mxu0 0.0
        %4578 = vmatprep.subr.mxu0 0.0
        %4579 = vmatpush1.msra.mxu0 0.0
        %4580 = vmatprep.subr.mxu0 0.0
        %4581 = vmatpush1.msra.mxu0 0.0
        %4582 = vmatprep.subr.mxu0 0.0
        %4583 = vmatpush1.msra.mxu0 0.0
        %4584 = vmatprep.subr.mxu0 0.0
        %4585 = vmatpush1.msra.mxu0 0.0
        %4586 = vmatprep.subr.mxu0 0.0
        %4587 = vmatpush1.msra.mxu0 0.0
        %4588 = vmatprep.mubr.f32.mxu0 0.0
        %4589 = vmatmul.mubr.f32.gmra.mrb[0].mxu0 %v4522
        %v4590 = vpop.f32.mrb[0].mxu0
        %v4591 = vadd.f32 %v4518, %v4590
        %v4592 = vpop.f32.mrb[0].mxu0
        %4593 = vdwg.mxu0
        %v4594 = vmax.f32 %v3680, %v4118
        %v4595 = vmax.f32 %v3681, %v4119
        %v4596 = vmax.f32 %v3682, %v4120
        %v4597 = vmax.f32 %v4594, %v4409
        %v4598 = vmax.f32 %v4595, %v4410
        %v4599 = vmax.f32 %v4596, %v4411
        %4601 = vrot.lane.b32.xlu0 %v4597, 64
        %v4602 = vpop.permute.xlu0 %4601
        %v4604 = vmax.f32 %v4597, %v4602
        %v4605 = vmax.f32 %v4604, %v4598
        %s4606 = scalar_lea.vmem %s7, 128
        %v4607 = vld [vmem:[%s4606] sm:$0xff]
        %v4608 = vld [vmem:[%s4606 + $0x8] sm:$0xff]
        %v4609 = vld [vmem:[%s4606 + $0x10] sm:$0xff]
        %v4610 = vld [vmem:[%s4606 + $0x18] sm:$0xff]
        %v4611 = vld [vmem:[%s4606 + $0x20] sm:$0xff]
        %v4612 = vld [vmem:[%s4606 + $0x28] sm:$0xff]
        %v4613 = vld [vmem:[%s4606 + $0x30] sm:$0xff]
        %v4614 = vld [vmem:[%s4606 + $0x38] sm:$0xff]
        %v4616 = vsel %vm4447, %v4605, 0
        %4618 = vmatprep.subr.mxu0 0.0
        %4619 = vmatpush1.msra.mxu0 %v4607
        %4620 = vmatprep.subr.mxu0 0.0
        %4621 = vmatpush1.msra.mxu0 %v4608
        %4622 = vmatprep.subr.mxu0 0.0
        %4623 = vmatpush1.msra.mxu0 %v4609
        %4624 = vmatprep.subr.mxu0 0.0
        %4625 = vmatpush1.msra.mxu0 %v4610
        %4626 = vmatprep.subr.mxu0 0.0
        %4627 = vmatpush1.msra.mxu0 %v4611
        %4628 = vmatprep.subr.mxu0 0.0
        %4629 = vmatpush1.msra.mxu0 %v4612
        %4630 = vmatprep.subr.mxu0 0.0
        %4631 = vmatpush1.msra.mxu0 %v4613
        %4632 = vmatprep.subr.mxu0 0.0
        %4633 = vmatpush1.msra.mxu0 %v4614
        %4634 = vmatprep.subr.mxu0 0.0
        %4635 = vmatpush1.msra.mxu0 0.0
        %4636 = vmatprep.subr.mxu0 0.0
        %4637 = vmatpush1.msra.mxu0 0.0
        %4638 = vmatprep.subr.mxu0 0.0
        %4639 = vmatpush1.msra.mxu0 0.0
        %4640 = vmatprep.subr.mxu0 0.0
        %4641 = vmatpush1.msra.mxu0 0.0
        %4642 = vmatprep.subr.mxu0 0.0
        %4643 = vmatpush1.msra.mxu0 0.0
        %4644 = vmatprep.subr.mxu0 0.0
        %4645 = vmatpush1.msra.mxu0 0.0
        %4646 = vmatprep.subr.mxu0 0.0
        %4647 = vmatpush1.msra.mxu0 0.0
        %4648 = vmatprep.subr.mxu0 0.0
        %4649 = vmatpush1.msra.mxu0 0.0
        %4650 = vmatprep.subr.mxu0 0.0
        %4651 = vmatpush1.msra.mxu0 0.0
        %4652 = vmatprep.subr.mxu0 0.0
        %4653 = vmatpush1.msra.mxu0 0.0
        %4654 = vmatprep.subr.mxu0 0.0
        %4655 = vmatpush1.msra.mxu0 0.0
        %4656 = vmatprep.subr.mxu0 0.0
        %4657 = vmatpush1.msra.mxu0 0.0
        %4658 = vmatprep.subr.mxu0 0.0
        %4659 = vmatpush1.msra.mxu0 0.0
        %4660 = vmatprep.subr.mxu0 0.0
        %4661 = vmatpush1.msra.mxu0 0.0
        %4662 = vmatprep.subr.mxu0 0.0
        %4663 = vmatpush1.msra.mxu0 0.0
        %4664 = vmatprep.subr.mxu0 0.0
        %4665 = vmatpush1.msra.mxu0 0.0
        %4666 = vmatprep.subr.mxu0 0.0
        %4667 = vmatpush1.msra.mxu0 0.0
        %4668 = vmatprep.subr.mxu0 0.0
        %4669 = vmatpush1.msra.mxu0 0.0
        %4670 = vmatprep.subr.mxu0 0.0
        %4671 = vmatpush1.msra.mxu0 0.0
        %4672 = vmatprep.subr.mxu0 0.0
        %4673 = vmatpush1.msra.mxu0 0.0
        %4674 = vmatprep.subr.mxu0 0.0
        %4675 = vmatpush1.msra.mxu0 0.0
        %4676 = vmatprep.subr.mxu0 0.0
        %4677 = vmatpush1.msra.mxu0 0.0
        %4678 = vmatprep.subr.mxu0 0.0
        %4679 = vmatpush1.msra.mxu0 0.0
        %4680 = vmatprep.subr.mxu0 0.0
        %4681 = vmatpush1.msra.mxu0 0.0
        %4682 = vmatprep.mubr.f32.mxu0 0.0
        %4683 = vmatmul.mubr.f32.gmra.mrb[0].mxu0 %v4616
        %v4684 = vpop.f32.mrb[0].mxu0
        %v4685 = vadd.f32 0.0, %v4684
        %v4686 = vpop.f32.mrb[0].mxu0
        %4687 = vdwg.mxu0
        %v4688 = vadd.f32 %v4591, %v4685
        %4690 = vrot.lane.b32.xlu0 %v4598, 64
        %v4691 = vpop.permute.xlu0 %4690
        %v4693 = vmax.f32 %v4598, %v4691
        %v4694 = vmax.f32 %v4693, %v4599
        %s4695 = scalar_lea.vmem %s7, 192
        %v4696 = vld [vmem:[%s4695] sm:$0xff]
        %v4697 = vld [vmem:[%s4695 + $0x8] sm:$0xff]
        %v4698 = vld [vmem:[%s4695 + $0x10] sm:$0xff]
        %v4699 = vld [vmem:[%s4695 + $0x18] sm:$0xff]
        %v4700 = vld [vmem:[%s4695 + $0x20] sm:$0xff]
        %v4701 = vld [vmem:[%s4695 + $0x28] sm:$0xff]
        %v4702 = vld [vmem:[%s4695 + $0x30] sm:$0xff]
        %v4703 = vld [vmem:[%s4695 + $0x38] sm:$0xff]
        %v4705 = vsel %vm4447, %v4694, 0
        %4707 = vmatprep.subr.mxu0 0.0
        %4708 = vmatpush1.msra.mxu0 %v4696
        %4709 = vmatprep.subr.mxu0 0.0
        %4710 = vmatpush1.msra.mxu0 %v4697
        %4711 = vmatprep.subr.mxu0 0.0
        %4712 = vmatpush1.msra.mxu0 %v4698
        %4713 = vmatprep.subr.mxu0 0.0
        %4714 = vmatpush1.msra.mxu0 %v4699
        %4715 = vmatprep.subr.mxu0 0.0
        %4716 = vmatpush1.msra.mxu0 %v4700
        %4717 = vmatprep.subr.mxu0 0.0
        %4718 = vmatpush1.msra.mxu0 %v4701
        %4719 = vmatprep.subr.mxu0 0.0
        %4720 = vmatpush1.msra.mxu0 %v4702
        %4721 = vmatprep.subr.mxu0 0.0
        %4722 = vmatpush1.msra.mxu0 %v4703
        %4723 = vmatprep.subr.mxu0 0.0
        %4724 = vmatpush1.msra.mxu0 0.0
        %4725 = vmatprep.subr.mxu0 0.0
        %4726 = vmatpush1.msra.mxu0 0.0
        %4727 = vmatprep.subr.mxu0 0.0
        %4728 = vmatpush1.msra.mxu0 0.0
        %4729 = vmatprep.subr.mxu0 0.0
        %4730 = vmatpush1.msra.mxu0 0.0
        %4731 = vmatprep.subr.mxu0 0.0
        %4732 = vmatpush1.msra.mxu0 0.0
        %4733 = vmatprep.subr.mxu0 0.0
        %4734 = vmatpush1.msra.mxu0 0.0
        %4735 = vmatprep.subr.mxu0 0.0
        %4736 = vmatpush1.msra.mxu0 0.0
        %4737 = vmatprep.subr.mxu0 0.0
        %4738 = vmatpush1.msra.mxu0 0.0
        %4739 = vmatprep.subr.mxu0 0.0
        %4740 = vmatpush1.msra.mxu0 0.0
        %4741 = vmatprep.subr.mxu0 0.0
        %4742 = vmatpush1.msra.mxu0 0.0
        %4743 = vmatprep.subr.mxu0 0.0
        %4744 = vmatpush1.msra.mxu0 0.0
        %4745 = vmatprep.subr.mxu0 0.0
        %4746 = vmatpush1.msra.mxu0 0.0
        %4747 = vmatprep.subr.mxu0 0.0
        %4748 = vmatpush1.msra.mxu0 0.0
        %4749 = vmatprep.subr.mxu0 0.0
        %4750 = vmatpush1.msra.mxu0 0.0
        %4751 = vmatprep.subr.mxu0 0.0
        %4752 = vmatpush1.msra.mxu0 0.0
        %4753 = vmatprep.subr.mxu0 0.0
        %4754 = vmatpush1.msra.mxu0 0.0
        %4755 = vmatprep.subr.mxu0 0.0
        %4756 = vmatpush1.msra.mxu0 0.0
        %4757 = vmatprep.subr.mxu0 0.0
        %4758 = vmatpush1.msra.mxu0 0.0
        %4759 = vmatprep.subr.mxu0 0.0
        %4760 = vmatpush1.msra.mxu0 0.0
        %4761 = vmatprep.subr.mxu0 0.0
        %4762 = vmatpush1.msra.mxu0 0.0
        %4763 = vmatprep.subr.mxu0 0.0
        %4764 = vmatpush1.msra.mxu0 0.0
        %4765 = vmatprep.subr.mxu0 0.0
        %4766 = vmatpush1.msra.mxu0 0.0
        %4767 = vmatprep.subr.mxu0 0.0
        %4768 = vmatpush1.msra.mxu0 0.0
        %4769 = vmatprep.subr.mxu0 0.0
        %4770 = vmatpush1.msra.mxu0 0.0
        %4771 = vmatprep.mubr.f32.mxu0 0.0
        %4772 = vmatmul.mubr.f32.gmra.mrb[0].mxu0 %v4705
        %v4773 = vpop.f32.mrb[0].mxu0
        %v4774 = vadd.f32 0.0, %v4773
        %v4775 = vpop.f32.mrb[0].mxu0
        %4776 = vdwg.mxu0
        %v4777 = vadd.f32 %v4688, %v4774
        %v4778 = vld [vmem:[%s8] sm:$0x1]
        %v4780 = vlaneseq
        %v4781 = vshrl.u32 %v4780, 7
        %v4782 = vsub.s32 0, %v4781
        %v4783 = vrot.slane %v4778, %v4782
        %v4785 = vadd.f32 %v4777, %v4783
        %v4786 = vmax.f32 %v4785, 0.0
        %v4787 = vld [vmem:[%s9] sm:$0xff]
        %v4788 = vld [vmem:[%s9 + $0x8] sm:$0xff]
        %v4789 = vld [vmem:[%s9 + $0x10] sm:$0xff]
        %v4790 = vld [vmem:[%s9 + $0x18] sm:$0xff]
        %v4791 = vld [vmem:[%s9 + $0x20] sm:$0xff]
        %v4792 = vld [vmem:[%s9 + $0x28] sm:$0xff]
        %v4793 = vld [vmem:[%s9 + $0x30] sm:$0xff]
        %v4794 = vld [vmem:[%s9 + $0x38] sm:$0xff]
        %v4795 = vld [vmem:[%s9 + $0x40] sm:$0xff]
        %v4796 = vld [vmem:[%s9 + $0x48] sm:$0xff]
        %v4797 = vld [vmem:[%s9 + $0x50] sm:$0xff]
        %v4798 = vld [vmem:[%s9 + $0x58] sm:$0xff]
        %v4799 = vld [vmem:[%s9 + $0x60] sm:$0xff]
        %v4800 = vld [vmem:[%s9 + $0x68] sm:$0xff]
        %v4801 = vld [vmem:[%s9 + $0x70] sm:$0xff]
        %v4802 = vld [vmem:[%s9 + $0x78] sm:$0xff]
        %v4803 = vld [vmem:[%s9 + $0x80] sm:$0xff]
        %v4804 = vld [vmem:[%s9 + $0x88] sm:$0xff]
        %v4805 = vld [vmem:[%s9 + $0x90] sm:$0xff]
        %v4806 = vld [vmem:[%s9 + $0x98] sm:$0xff]
        %v4807 = vld [vmem:[%s9 + $0xa0] sm:$0xff]
        %v4808 = vld [vmem:[%s9 + $0xa8] sm:$0xff]
        %v4809 = vld [vmem:[%s9 + $0xb0] sm:$0xff]
        %v4810 = vld [vmem:[%s9 + $0xb8] sm:$0xff]
        %v4811 = vld [vmem:[%s9 + $0xc0] sm:$0xff]
        %v4812 = vld [vmem:[%s9 + $0xc8] sm:$0xff]
        %v4813 = vld [vmem:[%s9 + $0xd0] sm:$0xff]
        %v4814 = vld [vmem:[%s9 + $0xd8] sm:$0xff]
        %v4815 = vld [vmem:[%s9 + $0xe0] sm:$0xff]
        %v4816 = vld [vmem:[%s9 + $0xe8] sm:$0xff]
        %v4817 = vld [vmem:[%s9 + $0xf0] sm:$0xff]
        %v4818 = vld [vmem:[%s9 + $0xf8] sm:$0xff]
        %v4819 = vld [vmem:[%s10] sm:$0x3]
        %v4821 = vlaneseq
        %v4822 = vshrl.u32 %v4821, 7
        %v4823 = vsub.s32 0, %v4822
        %v4824 = vrot.slane %v4819, %v4823
        %v4825 = vlaneseq
        %v4826 = vshrl.u32 %v4825, 7
        %v4827 = vsub.s32 1, %v4826
        %v4828 = vrot.slane %v4819, %v4827
        %4831 = vmatprep.subr.mxu0 %v4788
        %4832 = vmatpush1.msra.mxu0 %v4787
        %4833 = vmatprep.subr.mxu0 %v4790
        %4834 = vmatpush1.msra.mxu0 %v4789
        %4835 = vmatprep.subr.mxu0 %v4792
        %4836 = vmatpush1.msra.mxu0 %v4791
        %4837 = vmatprep.subr.mxu0 %v4794
        %4838 = vmatpush1.msra.mxu0 %v4793
        %4839 = vmatprep.subr.mxu0 %v4796
        %4840 = vmatpush1.msra.mxu0 %v4795
        %4841 = vmatprep.subr.mxu0 %v4798
        %4842 = vmatpush1.msra.mxu0 %v4797
        %4843 = vmatprep.subr.mxu0 %v4800
        %4844 = vmatpush1.msra.mxu0 %v4799
        %4845 = vmatprep.subr.mxu0 %v4802
        %4846 = vmatpush1.msra.mxu0 %v4801
        %4847 = vmatprep.subr.mxu0 %v4804
        %4848 = vmatpush1.msra.mxu0 %v4803
        %4849 = vmatprep.subr.mxu0 %v4806
        %4850 = vmatpush1.msra.mxu0 %v4805
        %4851 = vmatprep.subr.mxu0 %v4808
        %4852 = vmatpush1.msra.mxu0 %v4807
        %4853 = vmatprep.subr.mxu0 %v4810
        %4854 = vmatpush1.msra.mxu0 %v4809
        %4855 = vmatprep.subr.mxu0 %v4812
        %4856 = vmatpush1.msra.mxu0 %v4811
        %4857 = vmatprep.subr.mxu0 %v4814
        %4858 = vmatpush1.msra.mxu0 %v4813
        %4859 = vmatprep.subr.mxu0 %v4816
        %4860 = vmatpush1.msra.mxu0 %v4815
        %4861 = vmatprep.subr.mxu0 %v4818
        %4862 = vmatpush1.msra.mxu0 %v4817
        %4863 = vmatprep.subr.mxu0 0.0
        %4864 = vmatpush1.msra.mxu0 0.0
        %4865 = vmatprep.subr.mxu0 0.0
        %4866 = vmatpush1.msra.mxu0 0.0
        %4867 = vmatprep.subr.mxu0 0.0
        %4868 = vmatpush1.msra.mxu0 0.0
        %4869 = vmatprep.subr.mxu0 0.0
        %4870 = vmatpush1.msra.mxu0 0.0
        %4871 = vmatprep.subr.mxu0 0.0
        %4872 = vmatpush1.msra.mxu0 0.0
        %4873 = vmatprep.subr.mxu0 0.0
        %4874 = vmatpush1.msra.mxu0 0.0
        %4875 = vmatprep.subr.mxu0 0.0
        %4876 = vmatpush1.msra.mxu0 0.0
        %4877 = vmatprep.subr.mxu0 0.0
        %4878 = vmatpush1.msra.mxu0 0.0
        %4879 = vmatprep.subr.mxu0 0.0
        %4880 = vmatpush1.msra.mxu0 0.0
        %4881 = vmatprep.subr.mxu0 0.0
        %4882 = vmatpush1.msra.mxu0 0.0
        %4883 = vmatprep.subr.mxu0 0.0
        %4884 = vmatpush1.msra.mxu0 0.0
        %4885 = vmatprep.subr.mxu0 0.0
        %4886 = vmatpush1.msra.mxu0 0.0
        %4887 = vmatprep.subr.mxu0 0.0
        %4888 = vmatpush1.msra.mxu0 0.0
        %4889 = vmatprep.subr.mxu0 0.0
        %4890 = vmatpush1.msra.mxu0 0.0
        %4891 = vmatprep.subr.mxu0 0.0
        %4892 = vmatpush1.msra.mxu0 0.0
        %4893 = vmatprep.subr.mxu0 0.0
        %4894 = vmatpush1.msra.mxu0 0.0
        %4895 = vmatprep.mubr.f32.mxu0 0.0
        %4896 = vmatmul.mubr.f32.gmra.mrb[0].mxu0 %v4786
        %v4897 = vpop.f32.mrb[0].mxu0
        %v4898 = vadd.f32 %v4824, %v4897
        %v4899 = vpop.f32.mrb[0].mxu0
        %v4900 = vadd.f32 %v4828, %v4899
        %4901 = vdwg.mxu0
        %v4902 = vmax.f32 %v4898, 0.0
        %v4903 = vmax.f32 %v4900, 0.0
        %v4904 = vld [vmem:[%s11] sm:$0xff]
        %v4905 = vld [vmem:[%s11 + $0x8] sm:$0xff]
        %v4906 = vld [vmem:[%s11 + $0x10] sm:$0xff]
        %v4907 = vld [vmem:[%s11 + $0x18] sm:$0xff]
        %v4908 = vld [vmem:[%s11 + $0x20] sm:$0xff]
        %v4909 = vld [vmem:[%s11 + $0x28] sm:$0xff]
        %v4910 = vld [vmem:[%s11 + $0x30] sm:$0xff]
        %v4911 = vld [vmem:[%s11 + $0x38] sm:$0xff]
        %v4912 = vld [vmem:[%s11 + $0x40] sm:$0xff]
        %v4913 = vld [vmem:[%s11 + $0x48] sm:$0xff]
        %v4914 = vld [vmem:[%s11 + $0x50] sm:$0xff]
        %v4915 = vld [vmem:[%s11 + $0x58] sm:$0xff]
        %v4916 = vld [vmem:[%s11 + $0x60] sm:$0xff]
        %v4917 = vld [vmem:[%s11 + $0x68] sm:$0xff]
        %v4918 = vld [vmem:[%s11 + $0x70] sm:$0xff]
        %v4919 = vld [vmem:[%s11 + $0x78] sm:$0xff]
        %v4920 = vld [vmem:[%s11 + $0x80] sm:$0xff]
        %v4921 = vld [vmem:[%s11 + $0x88] sm:$0xff]
        %v4922 = vld [vmem:[%s11 + $0x90] sm:$0xff]
        %v4923 = vld [vmem:[%s11 + $0x98] sm:$0xff]
        %v4924 = vld [vmem:[%s11 + $0xa0] sm:$0xff]
        %v4925 = vld [vmem:[%s11 + $0xa8] sm:$0xff]
        %v4926 = vld [vmem:[%s11 + $0xb0] sm:$0xff]
        %v4927 = vld [vmem:[%s11 + $0xb8] sm:$0xff]
        %v4928 = vld [vmem:[%s11 + $0xc0] sm:$0xff]
        %v4929 = vld [vmem:[%s11 + $0xc8] sm:$0xff]
        %v4930 = vld [vmem:[%s11 + $0xd0] sm:$0xff]
        %v4931 = vld [vmem:[%s11 + $0xd8] sm:$0xff]
        %v4932 = vld [vmem:[%s11 + $0xe0] sm:$0xff]
        %v4933 = vld [vmem:[%s11 + $0xe8] sm:$0xff]
        %v4934 = vld [vmem:[%s11 + $0xf0] sm:$0xff]
        %v4935 = vld [vmem:[%s11 + $0xf8] sm:$0xff]
        %v4936 = vld [vmem:[%s12] sm:$0x1]
        %v4938 = vlaneseq
        %v4939 = vshrl.u32 %v4938, 7
        %v4940 = vsub.s32 0, %v4939
        %v4941 = vrot.slane %v4936, %v4940
        %4943 = vmatprep.subr.mxu0 0.0
        %4944 = vmatpush1.msra.mxu0 %v4904
        %4945 = vmatprep.subr.mxu0 0.0
        %4946 = vmatpush1.msra.mxu0 %v4905
        %4947 = vmatprep.subr.mxu0 0.0
        %4948 = vmatpush1.msra.mxu0 %v4906
        %4949 = vmatprep.subr.mxu0 0.0
        %4950 = vmatpush1.msra.mxu0 %v4907
        %4951 = vmatprep.subr.mxu0 0.0
        %4952 = vmatpush1.msra.mxu0 %v4908
        %4953 = vmatprep.subr.mxu0 0.0
        %4954 = vmatpush1.msra.mxu0 %v4909
        %4955 = vmatprep.subr.mxu0 0.0
        %4956 = vmatpush1.msra.mxu0 %v4910
        %4957 = vmatprep.subr.mxu0 0.0
        %4958 = vmatpush1.msra.mxu0 %v4911
        %4959 = vmatprep.subr.mxu0 0.0
        %4960 = vmatpush1.msra.mxu0 %v4912
        %4961 = vmatprep.subr.mxu0 0.0
        %4962 = vmatpush1.msra.mxu0 %v4913
        %4963 = vmatprep.subr.mxu0 0.0
        %4964 = vmatpush1.msra.mxu0 %v4914
        %4965 = vmatprep.subr.mxu0 0.0
        %4966 = vmatpush1.msra.mxu0 %v4915
        %4967 = vmatprep.subr.mxu0 0.0
        %4968 = vmatpush1.msra.mxu0 %v4916
        %4969 = vmatprep.subr.mxu0 0.0
        %4970 = vmatpush1.msra.mxu0 %v4917
        %4971 = vmatprep.subr.mxu0 0.0
        %4972 = vmatpush1.msra.mxu0 %v4918
        %4973 = vmatprep.subr.mxu0 0.0
        %4974 = vmatpush1.msra.mxu0 %v4919
        %4975 = vmatprep.subr.mxu0 0.0
        %4976 = vmatpush1.msra.mxu0 %v4920
        %4977 = vmatprep.subr.mxu0 0.0
        %4978 = vmatpush1.msra.mxu0 %v4921
        %4979 = vmatprep.subr.mxu0 0.0
        %4980 = vmatpush1.msra.mxu0 %v4922
        %4981 = vmatprep.subr.mxu0 0.0
        %4982 = vmatpush1.msra.mxu0 %v4923
        %4983 = vmatprep.subr.mxu0 0.0
        %4984 = vmatpush1.msra.mxu0 %v4924
        %4985 = vmatprep.subr.mxu0 0.0
        %4986 = vmatpush1.msra.mxu0 %v4925
        %4987 = vmatprep.subr.mxu0 0.0
        %4988 = vmatpush1.msra.mxu0 %v4926
        %4989 = vmatprep.subr.mxu0 0.0
        %4990 = vmatpush1.msra.mxu0 %v4927
        %4991 = vmatprep.subr.mxu0 0.0
        %4992 = vmatpush1.msra.mxu0 %v4928
        %4993 = vmatprep.subr.mxu0 0.0
        %4994 = vmatpush1.msra.mxu0 %v4929
        %4995 = vmatprep.subr.mxu0 0.0
        %4996 = vmatpush1.msra.mxu0 %v4930
        %4997 = vmatprep.subr.mxu0 0.0
        %4998 = vmatpush1.msra.mxu0 %v4931
        %4999 = vmatprep.subr.mxu0 0.0
        %5000 = vmatpush1.msra.mxu0 %v4932
        %5001 = vmatprep.subr.mxu0 0.0
        %5002 = vmatpush1.msra.mxu0 %v4933
        %5003 = vmatprep.subr.mxu0 0.0
        %5004 = vmatpush1.msra.mxu0 %v4934
        %5005 = vmatprep.subr.mxu0 0.0
        %5006 = vmatpush1.msra.mxu0 %v4935
        %5007 = vmatprep.mubr.f32.mxu0 %v4903
        %5008 = vmatmul.mubr.f32.gmra.mrb[0].mxu0 %v4902
        %v5009 = vpop.f32.mrb[0].mxu0
        %v5010 = vadd.f32 %v4941, %v5009
        %v5011 = vpop.f32.mrb[0].mxu0
        %5012 = vdwg.mxu0
        %vm5013 = vcmask 64512
        %5014 = vst.msk [vmem:[%s496] sm:$0xff] %vm5013, %v5010
        %p5015 = scmp.lt.s32.totalorder %s24, 1
        %s5016 = scalar_select %p5015, %s24, 1
        %s5017 = smul.addr %s5016, 8
        %s5018 = scalar_lea.vmem %s13, %s5017
        // Predicated region
        $region96: #{pnet_pallas.1} parent=90 // pred_check
          %p5019 = pneg %p320
        $region97: #{pnet_pallas.1} parent=90 // pred_check_branch
          %5021 = sbr.rel (%p5019) target = $region99
        $region98: #{pnet_pallas.1} parent=90 // pred_region
          _
        $region99: #{pnet_pallas.1} parent=90 // pred_fallthru
          _
      $region91: #{pnet_pallas.1} parent=5 // pred_fallthru
        _
      %p5022 = scmp.le.s32.totalorder 2, %s19
      // Predicated region
      $region100: #{pnet_pallas.1} parent=5 // pred_check
        %p5023 = pneg %p5022
      $region101: #{pnet_pallas.1} parent=5 // pred_check_branch
        %5025 = sbr.rel (%p5023) target = $region103
      $region102: #{pnet_pallas.1} parent=5 // pred_region
        %s5026 = ssub.s32 %s19, 2
        // Predicated region
        $region104: #{pnet_pallas.1} parent=102 // pred_check
          %p5027 = pneg %p326
        $region105: #{pnet_pallas.1} parent=102 // pred_check_branch
          %5029 = sbr.rel (%p5027) target = $region107
        $region106: #{pnet_pallas.1} parent=102 // pred_region
          %p5030 = scmp.lt.s32.totalorder %s25, 1
          %s5031 = scalar_select %p5030, %s25, 1
          %s5032 = smul.addr %s5031, 8
          %s5033 = scalar_lea.vmem %s13, %s5032
        $region107: #{pnet_pallas.1} parent=102 // pred_fallthru
          _
      $region103: #{pnet_pallas.1} parent=5 // pred_fallthru
        _
    $region6: #{pnet_pallas.1} parent=1 // loop_footer
      %s23 = sadd.s32 1, %s19
    $region7: #{pnet_pallas.1} parent=1 // loop_footer_branch
      %18 = sbr.rel target = $region3
    $region8: #{pnet_pallas.1} parent=1 // loop_exit
      _

</llo_original>
